<compile_context>
chip_gen: v5e
topology: v5e:2x2
jax: 0.10.0
libtpu: 0.0.40
codegen_flags: <defaults>
</compile_context>

<pallas_src>
import functools

import jax
import jax.numpy as jnp
from jax import lax
from jax.experimental import pallas as pl
from jax.experimental.pallas import tpu as pltpu


def _non_local_kernel(c_out, tk, n_valid, needs_mask,
                      xq_ref, xk_ref, w_ref, b_ref, ww_ref, bw_ref,
                      out_ref,
                      theta_scr, pg_cache, m_scr, l_scr, acc_scr):
    """One (batch, query-tile, key-tile) grid step.

    xq_ref : (1, C_in, tq)        query positions (channels on sublanes)
    xk_ref : (1, C_in, tk)        key positions (only read while qi == 0)
    w_ref  : (3*C_out, C_in) bf16 packed [theta; phi; g] 1x1-conv weights
    b_ref  : (3*C_out, 1)    f32  packed biases
    ww_ref : (C_in, C_out)        W 1x1-conv weight (zero-init in the module)
    bw_ref : (C_in, 1)            W bias
    out_ref: (1, C_in, tq)        z = W(y) + x for this query tile (lane-dense)
    theta_scr: (tq, C_out) bf16   theta projection of the current query tile
    pg_cache : (nk, 2*C_out, tk) bf16  cached phi|g projection of ALL key tiles
    m/l/acc  : online-softmax state (f32)
    """
    qi = pl.program_id(1)
    ki = pl.program_id(2)

    @pl.when(ki == 0)
    def _init_query_tile():
        # theta projection (bf16 operands, f32 accumulate) — once per query tile.
        x_q = xq_ref[0].astype(jnp.bfloat16)                         # (C_in, tq)
        w_all = w_ref[...]
        b_all = b_ref[...]
        theta_t = (jnp.dot(w_all[:c_out], x_q,
                           preferred_element_type=jnp.float32)
                   + b_all[:c_out])                                  # (C_out, tq)
        theta_scr[...] = theta_t.T.astype(jnp.bfloat16)              # (tq, C_out)
        m_scr[...] = jnp.full_like(m_scr, -jnp.inf)
        l_scr[...] = jnp.zeros_like(l_scr)
        acc_scr[...] = jnp.zeros_like(acc_scr)

    @pl.when(qi == 0)
    def _project_key_tile():
        # Fused phi|g projection of this key tile — computed ONCE per batch,
        # cached in VMEM, and reused by every later query tile.
        x_k = xk_ref[0].astype(jnp.bfloat16)                         # (C_in, tk)
        w_all = w_ref[...]
        b_all = b_ref[...]
        pg = (jnp.dot(w_all[c_out:], x_k,
                      preferred_element_type=jnp.float32)
              + b_all[c_out:])                                       # (2*C_out, tk)
        pg_cache[ki] = pg.astype(jnp.bfloat16)

    pg_bf = pg_cache[ki]                                             # (2*C_out, tk)
    phi_t = pg_bf[:c_out]                                            # (C_out, tk)
    g_t = pg_bf[c_out:]                                              # (C_out, tk)

    # Scores (tq, tk): bf16 x bf16 -> f32 accumulate (single-pass MXU).
    s = jnp.dot(theta_scr[...], phi_t, preferred_element_type=jnp.float32)

    if needs_mask:
        # Mask padded key columns: zero-padded x still yields nonzero phi/g
        # because of the conv biases, so they must not contribute to softmax.
        col = ki * tk + lax.broadcasted_iota(jnp.int32, s.shape, 1)
        valid = col < n_valid
        s = jnp.where(valid, s, -1e30)

    # Online softmax with deferred normalisation.
    m_prev = m_scr[...]
    m_new = jnp.maximum(m_prev, jnp.max(s, axis=-1, keepdims=True))
    alpha = jnp.exp(m_prev - m_new)
    p = jnp.exp(s - m_new)
    if needs_mask:
        p = jnp.where(valid, p, 0.0)
    l_scr[...] = alpha * l_scr[...] + jnp.sum(p, axis=-1, keepdims=True)
    # (tq, tk) @ (C_out, tk)^T -> (tq, C_out); bf16 operands, f32 accumulate.
    pv = lax.dot_general(p.astype(jnp.bfloat16), g_t,
                         dimension_numbers=(((1,), (1,)), ((), ())),
                         preferred_element_type=jnp.float32)
    acc_scr[...] = alpha * acc_scr[...] + pv
    m_scr[...] = m_new

    @pl.when(ki == pl.num_programs(2) - 1)
    def _finalize():
        # Deferred softmax normalisation on the small (tq, C_out) accumulator.
        y = acc_scr[...] * pl.reciprocal(l_scr[...], approx=True)    # (tq, C_out)
        # W 1x1 conv in f32 (once per query tile; keeps the residual path accurate).
        w_y = (jnp.dot(ww_ref[...], y.T, preferred_element_type=jnp.float32)
               + bw_ref[...])                                        # (C_in, tq)
        out_ref[0] = (w_y + xq_ref[0]).astype(out_ref.dtype)         # lane-dense store


def _pick_tile(n_pad, preferred):
    """Largest multiple of 128 <= preferred that divides n_pad (n_pad % 128 == 0)."""
    t = max(128, (min(preferred, n_pad) // 128) * 128)
    while n_pad % t:
        t -= 128
    return t


def _vmem_limit_bytes(c_in, c_out, tq, tk, n_pad):
    f32, bf16 = 4, 2
    # double-buffered pipeline blocks: x_q, x_k, out (f32) + small weight blocks
    blocks = 2 * (f32 * c_in * tq + f32 * c_in * tk + f32 * c_in * tq)
    weights = 2 * (bf16 * 3 * c_out * c_in + f32 * 3 * c_out
                   + f32 * c_in * c_out + f32 * c_in)
    # persistent scratch: bf16 theta, bf16 phi|g key cache, f32 acc/m/l
    scratch = (bf16 * tq * c_out + bf16 * 2 * c_out * n_pad
               + f32 * (tq * c_out + 2 * tq))
    # streamed per-step temporaries: s / p (f32) + bf16 copy of p
    live = 3 * f32 * tq * tk + bf16 * tq * tk
    est = blocks + weights + scratch + live + (2 << 20)
    # Derive the cap from hardware instead of a fixed clamp:
    #   ~83 MiB on 128 MiB parts (v5e/v6e), ~42 MiB on 64 MiB parts (v7x).
    try:
        cap = int(pltpu.get_tpu_info().vmem_capacity_bytes)
    except Exception:  # conservative default if the hw query is unavailable
        cap = 64 << 20
    upper = int(cap * 0.65)
    return int(min(max(2 * est, 16 << 20), upper))


def _non_local_impl(x_nchw, params, *, tq, tk):
    B, C_in, H, W = x_nchw.shape
    N = H * W
    C_out = params["theta_w"].shape[0]

    # NCHW -> (B, C_in, N): channels on sublanes, spatial positions on lanes.
    x_cn = x_nchw.reshape(B, C_in, N)

    # Pad N to a lane multiple; padded key columns are masked in-kernel and
    # padded query positions are sliced off the output below.
    N_pad = ((N + 127) // 128) * 128
    needs_mask = N_pad != N
    if needs_mask:
        x_cn = jnp.pad(x_cn, ((0, 0), (0, 0), (0, N_pad - N)))

    tq = _pick_tile(N_pad, tq)
    tk = _pick_tile(N_pad, tk)
    nq, nk = N_pad // tq, N_pad // tk

    # Pack theta/phi/g 1x1 convs: weights in bf16 (single-pass MXU), biases f32.
    w_tpg = jnp.concatenate(
        [params["theta_w"], params["phi_w"], params["g_w"]], axis=0
    ).astype(jnp.bfloat16)                                                  # (3C_out, C_in)
    b_tpg = jnp.concatenate(
        [params["theta_b"], params["phi_b"], params["g_b"]])[:, None]      # (3C_out, 1)
    w_W = params["W_w"]                                                    # (C_in, C_out)
    b_W = params["W_b"][:, None]                                           # (C_in, 1)

    kernel = functools.partial(_non_local_kernel, C_out, tk, N, needs_mask)

    def const_spec(shape):
        return pl.BlockSpec(shape, lambda b, qi, ki: (0, 0))

    out_cn = pl.pallas_call(
        kernel,
        out_shape=jax.ShapeDtypeStruct((B, C_in, N_pad), x_cn.dtype),
        grid_spec=pltpu.PrefetchScalarGridSpec(
            num_scalar_prefetch=0,
            grid=(B, nq, nk),
            in_specs=[
                pl.BlockSpec((1, C_in, tq), lambda b, qi, ki: (b, 0, qi)),   # x (queries)
                # Raw keys are only consumed while qi == 0 (projection cached
                # in VMEM); pin the block index afterwards so key tiles are
                # not re-fetched from HBM for every query tile.
                pl.BlockSpec((1, C_in, tk),
                             lambda b, qi, ki: (b, 0, jnp.where(qi == 0, ki, 0))),
                const_spec((3 * C_out, C_in)),
                const_spec((3 * C_out, 1)),
                const_spec((C_in, C_out)),
                const_spec((C_in, 1)),
            ],
            out_specs=pl.BlockSpec((1, C_in, tq), lambda b, qi, ki: (b, 0, qi)),
            scratch_shapes=[
                pltpu.VMEM((tq, C_out), jnp.bfloat16),          # theta (bf16 score operand)
                pltpu.VMEM((nk, 2 * C_out, tk), jnp.bfloat16),  # phi|g key cache (whole N)
                pltpu.VMEM((tq, 1), jnp.float32),               # running max m
                pltpu.VMEM((tq, 1), jnp.float32),               # running sum l
                pltpu.VMEM((tq, C_out), jnp.float32),           # unnormalised y accumulator
            ],
        ),
        compiler_params=pltpu.CompilerParams(
            # qi must stay "arbitrary": the key cache is filled during the
            # qi == 0 sweep and reused by later query tiles, which requires
            # sequential qi order on a core.  Batch stays "parallel" so v7x's
            # second TensorCore gets work whenever B >= 2.
            dimension_semantics=("parallel", "arbitrary", "arbitrary"),
            vmem_limit_bytes=_vmem_limit_bytes(C_in, C_out, tq, tk, N_pad),
        ),
    )(x_cn, x_cn, w_tpg, b_tpg, w_W, b_W)

    if needs_mask:
        out_cn = out_cn[:, :, :N]
    return out_cn.reshape(B, C_in, H, W)


def non_local_block(x_nchw, params, *, tq=256, tk=512):
    """Forward pass of Non_local_Block.  x_nchw: (B, C_in, H, W) float32."""
    return _non_local_impl(x_nchw, params, tq=tq, tk=tk)


def init_params(key, in_channel, out_channel):
    """Parameters in PyTorch Conv2d layout (out, in); W conv is zero-init as in the module."""
    ks = jax.random.split(key, 6)
    bound = 1.0 / (in_channel ** 0.5)

    def u(k, shape):
        return jax.random.uniform(k, shape, jnp.float32, -bound, bound)

    return {
        "g_w": u(ks[0], (out_channel, in_channel)), "g_b": u(ks[1], (out_channel,)),
        "theta_w": u(ks[2], (out_channel, in_channel)), "theta_b": u(ks[3], (out_channel,)),
        "phi_w": u(ks[4], (out_channel, in_channel)), "phi_b": u(ks[5], (out_channel,)),
        # nn.init.constant(W.weight, 0); nn.init.constant(W.bias, 0)
        "W_w": jnp.zeros((in_channel, out_channel), jnp.float32),
        "W_b": jnp.zeros((in_channel,), jnp.float32),
    }


def non_local_block_ref(x, params):
    """Pure-JAX fp32 reference mirroring the PyTorch module."""
    B, C_in, H, W = x.shape
    N = H * W
    xf = x.reshape(B, C_in, N)
    hp = lax.Precision.HIGHEST

    def conv1x1(w, b, inp):                      # w (O, I), b (O,), inp (B, I, N)
        return jnp.einsum("oi,bin->bon", w, inp, precision=hp) + b[None, :, None]

    g_x = conv1x1(params["g_w"], params["g_b"], xf)
    theta_x = conv1x1(params["theta_w"], params["theta_b"], xf)
    phi_x = conv1x1(params["phi_w"], params["phi_b"], xf)
    f1 = jnp.einsum("bcq,bck->bqk", theta_x, phi_x, precision=hp)
    f_div_c = jax.nn.softmax(f1, axis=-1)
    y = jnp.einsum("bqk,bck->bcq", f_div_c, g_x, precision=hp)
    w_y = conv1x1(params["W_w"], params["W_b"], y)
    return (w_y + xf).reshape(B, C_in, H, W)


if __name__ == "__main__":
    key = jax.random.PRNGKey(0)
    k_x, k_p, k_w, k_b, k_x2 = jax.random.split(key, 5)

    B, C_in, C_out, H, W = 2, 4, 8, 16, 16
    x = jax.random.normal(k_x, (B, C_in, H, W), jnp.float32)

    # 1) Faithful module init (W conv zero-initialised, as in the PyTorch code).
    params = init_params(k_p, C_in, C_out)
    out = jax.block_until_ready(non_local_block(x, params))
    ref = non_local_block_ref(x, params)
    assert out.shape == (B, C_in, H, W)
    assert jnp.allclose(out, ref, atol=1e-4, rtol=1e-4), "mismatch (zero-W path)"

    # 2) Non-zero W so the attention / softmax path is actually exercised
    #    (the module's zero-init makes the output equal x, hiding bugs).
    #    Looser tolerance: bf16 matmul operands + approx reciprocal.
    wb = 1.0 / (C_out ** 0.5)
    params_nz = dict(params)
    params_nz["W_w"] = jax.random.uniform(k_w, (C_in, C_out), jnp.float32, -wb, wb)
    params_nz["W_b"] = jax.random.uniform(k_b, (C_in,), jnp.float32, -wb, wb)
    ref_nz = non_local_block_ref(x, params_nz)

    # multi-tile path (grid = (B, 2, 2): exercises online-softmax + key-cache reuse)
    out_nz = jax.block_until_ready(non_local_block(x, params_nz, tq=128, tk=128))
    assert jnp.allclose(out_nz, ref_nz, atol=5e-2, rtol=5e-2), "mismatch (tiled path)"

    # single-tile path (tile picker collapses to tq = tk = N)
    out_nz1 = jax.block_until_ready(non_local_block(x, params_nz))
    assert jnp.allclose(out_nz1, ref_nz, atol=5e-2, rtol=5e-2), "mismatch (single-tile path)"

    # 3) Non-multiple-of-128 spatial size: exercises the pad + key-mask path.
    H2 = W2 = 13                                   # N = 169 -> padded to 256
    x2 = jax.random.normal(k_x2, (B, C_in, H2, W2), jnp.float32)
    ref2 = non_local_block_ref(x2, params_nz)
    out2 = jax.block_until_ready(non_local_block(x2, params_nz, tq=128, tk=128))
    assert out2.shape == (B, C_in, H2, W2)
    assert jnp.allclose(out2, ref2, atol=5e-2, rtol=5e-2), "mismatch (padded/masked path)"

    print("KERNEL_OK")
</pallas_src>

<mosaic_0001>
module attributes {stable_mosaic.version = 11 : i64} {
  func.func @_non_local_kernel(%arg0: i32, %arg1: i32, %arg2: i32, %arg3: memref<1x4x256xf32, #tpu.memory_space<vmem>>, %arg4: memref<1x4x256xf32, #tpu.memory_space<vmem>>, %arg5: memref<24x4xbf16, #tpu.memory_space<vmem>>, %arg6: memref<24x1xf32, #tpu.memory_space<vmem>>, %arg7: memref<4x8xf32, #tpu.memory_space<vmem>>, %arg8: memref<4x1xf32, #tpu.memory_space<vmem>>, %arg9: memref<1x4x256xf32, #tpu.memory_space<vmem>>, %arg10: memref<256x8xbf16, #tpu.memory_space<vmem>>, %arg11: memref<1x16x256xbf16, #tpu.memory_space<vmem>>, %arg12: memref<256x1xf32, #tpu.memory_space<vmem>>, %arg13: memref<256x1xf32, #tpu.memory_space<vmem>>, %arg14: memref<256x8xf32, #tpu.memory_space<vmem>>) attributes {dimension_semantics = [#tpu.dimension_semantics<parallel>, #tpu.dimension_semantics<arbitrary>, #tpu.dimension_semantics<arbitrary>], iteration_bounds = array<i64: 2, 1, 1>, scalar_prefetch = 0 : i64, scratch_operands = 5 : i64, tpu.core_type = #tpu.core_type<tc>, window_params = [{transform_indices = @transform_0, window_bounds = array<i64: 1, 4, 256>}, {transform_indices = @transform_1, window_bounds = array<i64: 1, 4, 256>}, {pipeline_mode = #tpu.pipeline_mode<synchronous>, transform_indices = @transform_2, window_bounds = array<i64: 24, 4>}, {pipeline_mode = #tpu.pipeline_mode<synchronous>, transform_indices = @transform_3, window_bounds = array<i64: 24, 1>}, {pipeline_mode = #tpu.pipeline_mode<synchronous>, transform_indices = @transform_4, window_bounds = array<i64: 4, 8>}, {pipeline_mode = #tpu.pipeline_mode<synchronous>, transform_indices = @transform_5, window_bounds = array<i64: 4, 1>}, {transform_indices = @transform_6, window_bounds = array<i64: 1, 4, 256>}]} {
    %c0_i32 = arith.constant 0 : i32
    %0 = arith.cmpi eq, %arg2, %c0_i32 : i32
    %1 = arith.extui %0 : i1 to i32
    %c0_i32_0 = arith.constant 0 : i32
    %2 = arith.cmpi ne, %1, %c0_i32_0 : i32
    scf.if %2 {
      %c0_23 = arith.constant 0 : index
      %c0_24 = arith.constant 0 : index
      %c0_25 = arith.constant 0 : index
      %39 = vector.load %arg3[%c0_23, %c0_24, %c0_25] : memref<1x4x256xf32, #tpu.memory_space<vmem>>, vector<1x4x256xf32>
      %40 = vector.shape_cast %39 : vector<1x4x256xf32> to vector<4x256xf32>
      %41 = arith.truncf %40 : vector<4x256xf32> to vector<4x256xbf16>
      %c0_26 = arith.constant 0 : index
      %c0_27 = arith.constant 0 : index
      %42 = vector.load %arg5[%c0_26, %c0_27] : memref<24x4xbf16, #tpu.memory_space<vmem>>, vector<24x4xbf16>
      %c0_28 = arith.constant 0 : index
      %c0_29 = arith.constant 0 : index
      %43 = vector.load %arg6[%c0_28, %c0_29] : memref<24x1xf32, #tpu.memory_space<vmem>>, vector<24x1xf32>
      %44 = vector.extract_strided_slice %42 {offsets = [0, 0], sizes = [8, 4], strides = [1, 1]} : vector<24x4xbf16> to vector<8x4xbf16>
      %cst_30 = arith.constant dense<0.000000e+00> : vector<8x256xf32>
      %45 = tpu.matmul %44, %41, %cst_30 {dimension_numbers = #tpu.dot_dimension_numbers<[1], [0], [0], [1], [0, 0, 1, 1], [], []>} : vector<8x4xbf16>, vector<4x256xbf16>, vector<8x256xf32> -> vector<8x256xf32>
      %46 = vector.extract_strided_slice %43 {offsets = [0, 0], sizes = [8, 1], strides = [1, 1]} : vector<24x1xf32> to vector<8x1xf32>
      %47 = vector.broadcast %46 : vector<8x1xf32> to vector<8x256xf32>
      %48 = arith.addf %45, %47 : vector<8x256xf32>
      %49 = tpu.transpose %48, [1, 0] : vector<8x256xf32> -> vector<256x8xf32>
      %50 = arith.truncf %49 : vector<256x8xf32> to vector<256x8xbf16>
      %c0_31 = arith.constant 0 : index
      %c0_32 = arith.constant 0 : index
      %51 = vector.load %arg10[%c0_31, %c0_32] : memref<256x8xbf16, #tpu.memory_space<vmem>>, vector<256x8xbf16>
      tpu.vector_store %arg10[%c0_31, %c0_32], %50 {strides = array<i32>} : memref<256x8xbf16, #tpu.memory_space<vmem>>, vector<256x8xbf16>,
      %cst_33 = arith.constant 0xFF800000 : f32
      %52 = vector.broadcast %cst_33 : f32 to vector<256x1xf32>
      %c0_34 = arith.constant 0 : index
      %c0_35 = arith.constant 0 : index
      %53 = vector.load %arg12[%c0_34, %c0_35] : memref<256x1xf32, #tpu.memory_space<vmem>>, vector<256x1xf32>
      tpu.vector_store %arg12[%c0_34, %c0_35], %52 {strides = array<i32>} : memref<256x1xf32, #tpu.memory_space<vmem>>, vector<256x1xf32>,
      %cst_36 = arith.constant 0.000000e+00 : f32
      %54 = vector.broadcast %cst_36 : f32 to vector<256x1xf32>
      %c0_37 = arith.constant 0 : index
      %c0_38 = arith.constant 0 : index
      %55 = vector.load %arg13[%c0_37, %c0_38] : memref<256x1xf32, #tpu.memory_space<vmem>>, vector<256x1xf32>
      tpu.vector_store %arg13[%c0_37, %c0_38], %54 {strides = array<i32>} : memref<256x1xf32, #tpu.memory_space<vmem>>, vector<256x1xf32>,
      %cst_39 = arith.constant 0.000000e+00 : f32
      %56 = vector.broadcast %cst_39 : f32 to vector<256x8xf32>
      %c0_40 = arith.constant 0 : index
      %c0_41 = arith.constant 0 : index
      %57 = vector.load %arg14[%c0_40, %c0_41] : memref<256x8xf32, #tpu.memory_space<vmem>>, vector<256x8xf32>
      tpu.vector_store %arg14[%c0_40, %c0_41], %56 {strides = array<i32>} : memref<256x8xf32, #tpu.memory_space<vmem>>, vector<256x8xf32>,
    } else {
    }
    %c0_i32_1 = arith.constant 0 : i32
    %3 = arith.cmpi eq, %arg1, %c0_i32_1 : i32
    %4 = arith.extui %3 : i1 to i32
    %c0_i32_2 = arith.constant 0 : i32
    %5 = arith.cmpi ne, %4, %c0_i32_2 : i32
    scf.if %5 {
      %c0_23 = arith.constant 0 : index
      %c0_24 = arith.constant 0 : index
      %c0_25 = arith.constant 0 : index
      %39 = vector.load %arg4[%c0_23, %c0_24, %c0_25] : memref<1x4x256xf32, #tpu.memory_space<vmem>>, vector<1x4x256xf32>
      %40 = vector.shape_cast %39 : vector<1x4x256xf32> to vector<4x256xf32>
      %41 = arith.truncf %40 : vector<4x256xf32> to vector<4x256xbf16>
      %c0_26 = arith.constant 0 : index
      %c0_27 = arith.constant 0 : index
      %42 = vector.load %arg5[%c0_26, %c0_27] : memref<24x4xbf16, #tpu.memory_space<vmem>>, vector<24x4xbf16>
      %c0_28 = arith.constant 0 : index
      %c0_29 = arith.constant 0 : index
      %43 = vector.load %arg6[%c0_28, %c0_29] : memref<24x1xf32, #tpu.memory_space<vmem>>, vector<24x1xf32>
      %44 = vector.extract_strided_slice %42 {offsets = [8, 0], sizes = [16, 4], strides = [1, 1]} : vector<24x4xbf16> to vector<16x4xbf16>
      %cst_30 = arith.constant dense<0.000000e+00> : vector<16x256xf32>
      %45 = tpu.matmul %44, %41, %cst_30 {dimension_numbers = #tpu.dot_dimension_numbers<[1], [0], [0], [1], [0, 0, 1, 1], [], []>} : vector<16x4xbf16>, vector<4x256xbf16>, vector<16x256xf32> -> vector<16x256xf32>
      %46 = vector.extract_strided_slice %43 {offsets = [8, 0], sizes = [16, 1], strides = [1, 1]} : vector<24x1xf32> to vector<16x1xf32>
      %47 = vector.broadcast %46 : vector<16x1xf32> to vector<16x256xf32>
      %48 = arith.addf %45, %47 : vector<16x256xf32>
      %49 = arith.truncf %48 : vector<16x256xf32> to vector<16x256xbf16>
      %50 = arith.index_cast %arg2 : i32 to index
      %c0_31 = arith.constant 0 : index
      %c0_32 = arith.constant 0 : index
      %51 = vector.load %arg11[%50, %c0_31, %c0_32] : memref<1x16x256xbf16, #tpu.memory_space<vmem>>, vector<1x16x256xbf16>
      %52 = vector.shape_cast %51 : vector<1x16x256xbf16> to vector<16x256xbf16>
      %53 = vector.shape_cast %49 : vector<16x256xbf16> to vector<1x16x256xbf16>
      tpu.vector_store %arg11[%50, %c0_31, %c0_32], %53 {strides = array<i32>} : memref<1x16x256xbf16, #tpu.memory_space<vmem>>, vector<1x16x256xbf16>,
    } else {
    }
    %6 = arith.index_cast %arg2 : i32 to index
    %c0 = arith.constant 0 : index
    %c0_3 = arith.constant 0 : index
    %7 = vector.load %arg11[%6, %c0, %c0_3] : memref<1x16x256xbf16, #tpu.memory_space<vmem>>, vector<1x16x256xbf16>
    %8 = vector.shape_cast %7 : vector<1x16x256xbf16> to vector<16x256xbf16>
    %9 = vector.extract_strided_slice %8 {offsets = [0, 0], sizes = [8, 256], strides = [1, 1]} : vector<16x256xbf16> to vector<8x256xbf16>
    %10 = vector.extract_strided_slice %8 {offsets = [8, 0], sizes = [8, 256], strides = [1, 1]} : vector<16x256xbf16> to vector<8x256xbf16>
    %c0_4 = arith.constant 0 : index
    %c0_5 = arith.constant 0 : index
    %11 = vector.load %arg10[%c0_4, %c0_5] : memref<256x8xbf16, #tpu.memory_space<vmem>>, vector<256x8xbf16>
    %cst = arith.constant dense<0.000000e+00> : vector<256x256xf32>
    %12 = tpu.matmul %11, %9, %cst {dimension_numbers = #tpu.dot_dimension_numbers<[1], [0], [0], [1], [0, 0, 1, 1], [], []>} : vector<256x8xbf16>, vector<8x256xbf16>, vector<256x256xf32> -> vector<256x256xf32>
    %c0_6 = arith.constant 0 : index
    %c0_7 = arith.constant 0 : index
    %13 = vector.load %arg12[%c0_6, %c0_7] : memref<256x1xf32, #tpu.memory_space<vmem>>, vector<256x1xf32>
    %cst_8 = arith.constant dense<0xFF800000> : vector<256xf32>
    %14 = vector.multi_reduction <maximumf>, %12, %cst_8 [1] : vector<256x256xf32> to vector<256xf32>
    %15 = vector.shape_cast %14 : vector<256xf32> to vector<256x1xf32>
    %16 = arith.maximumf %13, %15 : vector<256x1xf32>
    %17 = arith.subf %13, %16 : vector<256x1xf32>
    %18 = math.exp %17 : vector<256x1xf32>
    %19 = vector.broadcast %16 : vector<256x1xf32> to vector<256x256xf32>
    %20 = arith.subf %12, %19 : vector<256x256xf32>
    %21 = math.exp %20 : vector<256x256xf32>
    %c0_9 = arith.constant 0 : index
    %c0_10 = arith.constant 0 : index
    %22 = vector.load %arg13[%c0_9, %c0_10] : memref<256x1xf32, #tpu.memory_space<vmem>>, vector<256x1xf32>
    %23 = arith.mulf %18, %22 : vector<256x1xf32>
    %cst_11 = arith.constant dense<0.000000e+00> : vector<256xf32>
    %24 = vector.multi_reduction <add>, %21, %cst_11 [1] : vector<256x256xf32> to vector<256xf32>
    %25 = vector.shape_cast %24 : vector<256xf32> to vector<256x1xf32>
    %26 = arith.addf %23, %25 : vector<256x1xf32>
    %c0_12 = arith.constant 0 : index
    %c0_13 = arith.constant 0 : index
    %27 = vector.load %arg13[%c0_12, %c0_13] : memref<256x1xf32, #tpu.memory_space<vmem>>, vector<256x1xf32>
    tpu.vector_store %arg13[%c0_12, %c0_13], %26 {strides = array<i32>} : memref<256x1xf32, #tpu.memory_space<vmem>>, vector<256x1xf32>,
    %28 = arith.truncf %21 : vector<256x256xf32> to vector<256x256xbf16>
    %cst_14 = arith.constant dense<0.000000e+00> : vector<256x8xf32>
    %29 = tpu.matmul %28, %10, %cst_14 {dimension_numbers = #tpu.dot_dimension_numbers<[1], [1], [0], [0], [0, 0, 1, 0], [], []>} : vector<256x256xbf16>, vector<8x256xbf16>, vector<256x8xf32> -> vector<256x8xf32>
    %c0_15 = arith.constant 0 : index
    %c0_16 = arith.constant 0 : index
    %30 = vector.load %arg14[%c0_15, %c0_16] : memref<256x8xf32, #tpu.memory_space<vmem>>, vector<256x8xf32>
    %31 = vector.broadcast %18 : vector<256x1xf32> to vector<256x8xf32>
    %32 = arith.mulf %31, %30 : vector<256x8xf32>
    %33 = arith.addf %32, %29 : vector<256x8xf32>
    %c0_17 = arith.constant 0 : index
    %c0_18 = arith.constant 0 : index
    %34 = vector.load %arg14[%c0_17, %c0_18] : memref<256x8xf32, #tpu.memory_space<vmem>>, vector<256x8xf32>
    tpu.vector_store %arg14[%c0_17, %c0_18], %33 {strides = array<i32>} : memref<256x8xf32, #tpu.memory_space<vmem>>, vector<256x8xf32>,
    %c0_19 = arith.constant 0 : index
    %c0_20 = arith.constant 0 : index
    %35 = vector.load %arg12[%c0_19, %c0_20] : memref<256x1xf32, #tpu.memory_space<vmem>>, vector<256x1xf32>
    tpu.vector_store %arg12[%c0_19, %c0_20], %16 {strides = array<i32>} : memref<256x1xf32, #tpu.memory_space<vmem>>, vector<256x1xf32>,
    %c0_i32_21 = arith.constant 0 : i32
    %36 = arith.cmpi eq, %arg2, %c0_i32_21 : i32
    %37 = arith.extui %36 : i1 to i32
    %c0_i32_22 = arith.constant 0 : i32
    %38 = arith.cmpi ne, %37, %c0_i32_22 : i32
    scf.if %38 {
      %c0_23 = arith.constant 0 : index
      %c0_24 = arith.constant 0 : index
      %39 = vector.load %arg14[%c0_23, %c0_24] : memref<256x8xf32, #tpu.memory_space<vmem>>, vector<256x8xf32>
      %c0_25 = arith.constant 0 : index
      %c0_26 = arith.constant 0 : index
      %40 = vector.load %arg13[%c0_25, %c0_26] : memref<256x1xf32, #tpu.memory_space<vmem>>, vector<256x1xf32>
      %41 = tpu.reciprocal %40 {approx = true} : vector<256x1xf32> -> vector<256x1xf32>
      %42 = vector.broadcast %41 : vector<256x1xf32> to vector<256x8xf32>
      %43 = arith.mulf %39, %42 : vector<256x8xf32>
      %c0_27 = arith.constant 0 : index
      %c0_28 = arith.constant 0 : index
      %44 = vector.load %arg7[%c0_27, %c0_28] : memref<4x8xf32, #tpu.memory_space<vmem>>, vector<4x8xf32>
      %45 = tpu.transpose %43, [1, 0] : vector<256x8xf32> -> vector<8x256xf32>
      %cst_29 = arith.constant dense<0.000000e+00> : vector<4x256xf32>
      %46 = tpu.matmul %44, %45, %cst_29 {dimension_numbers = #tpu.dot_dimension_numbers<[1], [0], [0], [1], [0, 0, 1, 1], [], []>} : vector<4x8xf32>, vector<8x256xf32>, vector<4x256xf32> -> vector<4x256xf32>
      %c0_30 = arith.constant 0 : index
      %c0_31 = arith.constant 0 : index
      %47 = vector.load %arg8[%c0_30, %c0_31] : memref<4x1xf32, #tpu.memory_space<vmem>>, vector<4x1xf32>
      %48 = vector.broadcast %47 : vector<4x1xf32> to vector<4x256xf32>
      %49 = arith.addf %46, %48 : vector<4x256xf32>
      %c0_32 = arith.constant 0 : index
      %c0_33 = arith.constant 0 : index
      %c0_34 = arith.constant 0 : index
      %50 = vector.load %arg3[%c0_32, %c0_33, %c0_34] : memref<1x4x256xf32, #tpu.memory_space<vmem>>, vector<1x4x256xf32>
      %51 = vector.shape_cast %50 : vector<1x4x256xf32> to vector<4x256xf32>
      %52 = arith.addf %49, %51 : vector<4x256xf32>
      %c0_35 = arith.constant 0 : index
      %c0_36 = arith.constant 0 : index
      %c0_37 = arith.constant 0 : index
      %53 = vector.load %arg9[%c0_35, %c0_36, %c0_37] : memref<1x4x256xf32, #tpu.memory_space<vmem>>, vector<1x4x256xf32>
      %54 = vector.shape_cast %53 : vector<1x4x256xf32> to vector<4x256xf32>
      %55 = vector.shape_cast %52 : vector<4x256xf32> to vector<1x4x256xf32>
      tpu.vector_store %arg9[%c0_35, %c0_36, %c0_37], %55 {strides = array<i32>} : memref<1x4x256xf32, #tpu.memory_space<vmem>>, vector<1x4x256xf32>,
    } else {
    }
    return
  }
  func.func @transform_0(%arg0: i32, %arg1: i32, %arg2: i32) -> (i32, i32, i32) {
    %c0_i32 = arith.constant 0 : i32
    %c0_i32_0 = arith.constant 0 : i32
    return %arg0, %c0_i32, %arg1 : i32, i32, i32
  }
  func.func @transform_1(%arg0: i32, %arg1: i32, %arg2: i32) -> (i32, i32, i32) {
    %c0_i32 = arith.constant 0 : i32
    %0 = arith.cmpi eq, %arg1, %c0_i32 : i32
    %c0_i32_0 = arith.constant 0 : i32
    %1 = arith.select %0, %arg2, %c0_i32_0 : i32
    %c0_i32_1 = arith.constant 0 : i32
    %c0_i32_2 = arith.constant 0 : i32
    return %arg0, %c0_i32_1, %1 : i32, i32, i32
  }
  func.func @transform_2(%arg0: i32, %arg1: i32, %arg2: i32) -> (i32, i32) {
    %c0_i32 = arith.constant 0 : i32
    %c0_i32_0 = arith.constant 0 : i32
    %c0_i32_1 = arith.constant 0 : i32
    return %c0_i32, %c0_i32_0 : i32, i32
  }
  func.func @transform_3(%arg0: i32, %arg1: i32, %arg2: i32) -> (i32, i32) {
    %c0_i32 = arith.constant 0 : i32
    %c0_i32_0 = arith.constant 0 : i32
    %c0_i32_1 = arith.constant 0 : i32
    return %c0_i32, %c0_i32_0 : i32, i32
  }
  func.func @transform_4(%arg0: i32, %arg1: i32, %arg2: i32) -> (i32, i32) {
    %c0_i32 = arith.constant 0 : i32
    %c0_i32_0 = arith.constant 0 : i32
    %c0_i32_1 = arith.constant 0 : i32
    return %c0_i32, %c0_i32_0 : i32, i32
  }
  func.func @transform_5(%arg0: i32, %arg1: i32, %arg2: i32) -> (i32, i32) {
    %c0_i32 = arith.constant 0 : i32
    %c0_i32_0 = arith.constant 0 : i32
    %c0_i32_1 = arith.constant 0 : i32
    return %c0_i32, %c0_i32_0 : i32, i32
  }
  func.func @transform_6(%arg0: i32, %arg1: i32, %arg2: i32) -> (i32, i32, i32) {
    %c0_i32 = arith.constant 0 : i32
    %c0_i32_0 = arith.constant 0 : i32
    return %arg0, %c0_i32, %arg1 : i32, i32, i32
  }
}

</mosaic_0001>

<llo_original>
// kernel: tpu_custom_call.1
$region0: #{tpu_custom_call.1}
  #allocation0 [shape = 'u32[]', space=smem, size = 0x4, offset = 0x4, fixed_abs, tag = 'smem constant byte address 0x4 - core index']
  #allocation1 [shape = 'u32[72,128]{1,0:T(1,128)}', space=vmem, size = 0x9000, scoped, tag = 'internal scratch']
  #allocation2 [shape = 'bf16[256,8]{1,0:T(8,128)(2,1)}', space=vmem, size = 0x10000, scoped, tag = 'scratch operand']
  #allocation3 [shape = 'bf16[1,16,256]{2,1,0:T(8,128)(2,1)}', space=vmem, size = 0x2000, scoped, tag = 'scratch operand']
  #allocation4 [shape = 'f32[256,1]{1,0:T(8,128)}', space=vmem, size = 0x20000, scoped, tag = 'scratch operand']
  #allocation5 [shape = 'f32[256,1]{1,0:T(8,128)}', space=vmem, size = 0x20000, scoped, tag = 'scratch operand']
  #allocation6 [shape = 'f32[256,8]{1,0:T(8,128)}', space=vmem, size = 0x20000, scoped, tag = 'scratch operand']
  %s0 = inlined_call_operand.vmem [shape: f32[2,4,256], index: 0, kind: input, shape index: {}]
  %s1 = inlined_call_operand.vmem [shape: f32[2,4,256], index: 1, kind: input, shape index: {}]
  %s2 = inlined_call_operand.vmem [shape: bf16[24,4], index: 2, kind: input, shape index: {}]
  %s3 = inlined_call_operand.vmem [shape: f32[24,1], index: 3, kind: input, shape index: {}]
  %s4 = inlined_call_operand.vmem [shape: f32[4,8], index: 4, kind: input, shape index: {}]
  %s5 = inlined_call_operand.vmem [shape: f32[4,1], index: 5, kind: input, shape index: {}]
  %s6 = inlined_call_operand.hbm [shape: f32[2,4,256], index: 6, kind: output, shape index: {}]
  %s7 = sld [smem:[#allocation0]]
  $region69: #{tpu_custom_call.1} parent=0
    _
  %s9 = ssub.s32 1, %s7
  %s10 = scalar_select 0, %s9, %s7
  $region1: #{tpu_custom_call.1} parent=0
    #allocation7 [shape = 'u8[8192]{0}', space=vmem, size = 0x2000, scoped, tag = 'output window, operand 0']
    #allocation8 [shape = 's32[2]{0}', space=sflag, size = 0x8, scoped, tag = 'scoped memory for tpu_custom_call.1']
    %11 = vsyncpa [#allocation8], 0
    %s12 = scalar_lea.sflag [#allocation8], 1
    %13 = vsyncpa %s12, 0
    loop: start=0, step=1, limit=4
    $region2: #{tpu_custom_call.1} parent=1 // loop_pre_header
      _
    $region3: #{tpu_custom_call.1} parent=1 // loop_header
      %s15 = sphi 0, %s19
      %p16 = scmp.ge.s32.totalorder %s15, 4
      %s22 = sphi 0, %s41
      %s23 = sphi 0, %s37
      %s24 = sphi 0, %s33
      %s25 = sphi 0, %s22
      %s26 = sphi 0, %s23
      %s27 = sphi 0, %s24
      %s28 = sphi 0, %s25
      %s29 = sphi 0, %s26
      %s30 = sphi 0, %s27
      %s46 = sphi 0, %s48
      %s49 = sphi 0, %s46
      %s50 = sphi 0, %s49
      %s66 = sphi 0, %s50
      %s78 = sphi 0, %s80
      %s81 = sphi 0, %s78
      %s82 = sphi 0, %s81
      %s98 = sphi 0, %s82
      %s102 = sphi 0, %s102
      %s104 = sphi 0, %s102
      %s105 = sphi 0, %s104
      %s119 = sphi 0, %s105
      %s123 = sphi 0, %s123
      %s125 = sphi 0, %s123
      %s126 = sphi 0, %s125
      %s140 = sphi 0, %s126
      %s144 = sphi 0, %s144
      %s146 = sphi 0, %s144
      %s147 = sphi 0, %s146
      %s161 = sphi 0, %s147
      %s165 = sphi 0, %s165
      %s167 = sphi 0, %s165
      %s168 = sphi 0, %s167
      %s182 = sphi 0, %s168
      %s190 = sphi 0, %s192
      %s193 = sphi 0, %s190
      %s194 = sphi 0, %s193
      %s210 = sphi 0, %s194
    $region4: #{tpu_custom_call.1} parent=1 // loop_header_branch
      %18 = sbr.rel (%p16) target = $region8
    $region5: #{tpu_custom_call.1} parent=1 // loop_body
      %s20 = ssub.s32 %s15, 1
      %s21 = ssub.s32 %s15, 2
      %s31 = sadd.s32 1, %s24
      %p32 = scmp.ge.s32.totalorder %s31, 1
      %s33 = scalar_select %p32, 0, %s31
      %s34 = sadd.s32 1, %s23
      %s35 = scalar_select %p32, %s34, %s23
      %p36 = scmp.ge.s32.totalorder %s35, 1
      %s37 = scalar_select %p36, 0, %s35
      %s38 = sadd.s32 1, %s22
      %s39 = scalar_select %p36, %s38, %s22
      %p40 = scmp.ge.s32.totalorder %s39, 2
      %s41 = scalar_select %p40, 0, %s39
      %s42 = ssub.s32 %s22, %s41
      %s43 = ssub.s32 %s23, %s37
      %s44 = sor.u32 %s42, %s43
      %p45 = scmp.eq.s32.totalorder %s44, 0
      %s47 = sadd.s32 %s46, 1
      %s48 = scalar_select %p45, %s46, %s47
      %p51 = pneg %p45
      %p52 = scmp.eq.s32.totalorder %s15, 1
      %p53 = por %p51, %p52
      %p54 = scmp.ne.s32.totalorder %s46, %s49
      %p55 = scmp.eq.s32.totalorder %s15, 0
      %p56 = por %p54, %p55
      %p57 = scmp.ne.s32.totalorder %s46, %s49
      %p58 = scmp.eq.s32.totalorder %s20, 1
      %p59 = por %p57, %p58
      %p60 = scmp.ne.s32.totalorder %s49, %s50
      %p61 = scmp.eq.s32.totalorder %s20, 0
      %p62 = por %p60, %p61
      %p63 = scmp.ne.s32.totalorder %s49, %s50
      %p64 = scmp.eq.s32.totalorder %s21, 1
      %p65 = por %p63, %p64
      %p67 = scmp.ne.s32.totalorder %s50, %s66
      %p68 = scmp.eq.s32.totalorder %s21, 0
      %p69 = por %p67, %p68
      %p70 = scmp.eq.s32.totalorder %s23, 0
      %s71 = scalar_select %p70, %s24, 0
      %p72 = scmp.eq.s32.totalorder %s37, 0
      %s73 = scalar_select %p72, %s33, 0
      %s74 = ssub.s32 %s22, %s41
      %s75 = ssub.s32 %s71, %s73
      %s76 = sor.u32 %s74, %s75
      %p77 = scmp.eq.s32.totalorder %s76, 0
      %s79 = sadd.s32 %s78, 1
      %s80 = scalar_select %p77, %s78, %s79
      %p83 = pneg %p77
      %p84 = scmp.eq.s32.totalorder %s15, 1
      %p85 = por %p83, %p84
      %p86 = scmp.ne.s32.totalorder %s78, %s81
      %p87 = scmp.eq.s32.totalorder %s15, 0
      %p88 = por %p86, %p87
      %p89 = scmp.ne.s32.totalorder %s78, %s81
      %p90 = scmp.eq.s32.totalorder %s20, 1
      %p91 = por %p89, %p90
      %p92 = scmp.ne.s32.totalorder %s81, %s82
      %p93 = scmp.eq.s32.totalorder %s20, 0
      %p94 = por %p92, %p93
      %p95 = scmp.ne.s32.totalorder %s81, %s82
      %p96 = scmp.eq.s32.totalorder %s21, 1
      %p97 = por %p95, %p96
      %p99 = scmp.ne.s32.totalorder %s82, %s98
      %p100 = scmp.eq.s32.totalorder %s21, 0
      %p101 = por %p99, %p100
      %s103 = sadd.s32 %s102, 1
      %p106 = scmp.eq.s32.totalorder %s15, 1
      %p107 = scmp.ne.s32.totalorder %s102, %s104
      %p108 = scmp.eq.s32.totalorder %s15, 0
      %p109 = por %p107, %p108
      %p110 = scmp.ne.s32.totalorder %s102, %s104
      %p111 = scmp.eq.s32.totalorder %s20, 1
      %p112 = por %p110, %p111
      %p113 = scmp.ne.s32.totalorder %s104, %s105
      %p114 = scmp.eq.s32.totalorder %s20, 0
      %p115 = por %p113, %p114
      %p116 = scmp.ne.s32.totalorder %s104, %s105
      %p117 = scmp.eq.s32.totalorder %s21, 1
      %p118 = por %p116, %p117
      %p120 = scmp.ne.s32.totalorder %s105, %s119
      %p121 = scmp.eq.s32.totalorder %s21, 0
      %p122 = por %p120, %p121
      %s124 = sadd.s32 %s123, 1
      %p127 = scmp.eq.s32.totalorder %s15, 1
      %p128 = scmp.ne.s32.totalorder %s123, %s125
      %p129 = scmp.eq.s32.totalorder %s15, 0
      %p130 = por %p128, %p129
      %p131 = scmp.ne.s32.totalorder %s123, %s125
      %p132 = scmp.eq.s32.totalorder %s20, 1
      %p133 = por %p131, %p132
      %p134 = scmp.ne.s32.totalorder %s125, %s126
      %p135 = scmp.eq.s32.totalorder %s20, 0
      %p136 = por %p134, %p135
      %p137 = scmp.ne.s32.totalorder %s125, %s126
      %p138 = scmp.eq.s32.totalorder %s21, 1
      %p139 = por %p137, %p138
      %p141 = scmp.ne.s32.totalorder %s126, %s140
      %p142 = scmp.eq.s32.totalorder %s21, 0
      %p143 = por %p141, %p142
      %s145 = sadd.s32 %s144, 1
      %p148 = scmp.eq.s32.totalorder %s15, 1
      %p149 = scmp.ne.s32.totalorder %s144, %s146
      %p150 = scmp.eq.s32.totalorder %s15, 0
      %p151 = por %p149, %p150
      %p152 = scmp.ne.s32.totalorder %s144, %s146
      %p153 = scmp.eq.s32.totalorder %s20, 1
      %p154 = por %p152, %p153
      %p155 = scmp.ne.s32.totalorder %s146, %s147
      %p156 = scmp.eq.s32.totalorder %s20, 0
      %p157 = por %p155, %p156
      %p158 = scmp.ne.s32.totalorder %s146, %s147
      %p159 = scmp.eq.s32.totalorder %s21, 1
      %p160 = por %p158, %p159
      %p162 = scmp.ne.s32.totalorder %s147, %s161
      %p163 = scmp.eq.s32.totalorder %s21, 0
      %p164 = por %p162, %p163
      %s166 = sadd.s32 %s165, 1
      %p169 = scmp.eq.s32.totalorder %s15, 1
      %p170 = scmp.ne.s32.totalorder %s165, %s167
      %p171 = scmp.eq.s32.totalorder %s15, 0
      %p172 = por %p170, %p171
      %p173 = scmp.ne.s32.totalorder %s165, %s167
      %p174 = scmp.eq.s32.totalorder %s20, 1
      %p175 = por %p173, %p174
      %p176 = scmp.ne.s32.totalorder %s167, %s168
      %p177 = scmp.eq.s32.totalorder %s20, 0
      %p178 = por %p176, %p177
      %p179 = scmp.ne.s32.totalorder %s167, %s168
      %p180 = scmp.eq.s32.totalorder %s21, 1
      %p181 = por %p179, %p180
      %p183 = scmp.ne.s32.totalorder %s168, %s182
      %p184 = scmp.eq.s32.totalorder %s21, 0
      %p185 = por %p183, %p184
      %s186 = ssub.s32 %s22, %s41
      %s187 = ssub.s32 %s23, %s37
      %s188 = sor.u32 %s186, %s187
      %p189 = scmp.eq.s32.totalorder %s188, 0
      %s191 = sadd.s32 %s190, 1
      %s192 = scalar_select %p189, %s190, %s191
      %p195 = pneg %p189
      %p196 = scmp.eq.s32.totalorder %s15, 1
      %p197 = por %p195, %p196
      %p198 = scmp.ne.s32.totalorder %s190, %s193
      %p199 = scmp.eq.s32.totalorder %s15, 0
      %p200 = por %p198, %p199
      %p201 = scmp.ne.s32.totalorder %s190, %s193
      %p202 = scmp.eq.s32.totalorder %s20, 1
      %p203 = por %p201, %p202
      %p204 = scmp.ne.s32.totalorder %s193, %s194
      %p205 = scmp.eq.s32.totalorder %s20, 0
      %p206 = por %p204, %p205
      %p207 = scmp.ne.s32.totalorder %s193, %s194
      %p208 = scmp.eq.s32.totalorder %s21, 1
      %p209 = por %p207, %p208
      %p211 = scmp.ne.s32.totalorder %s194, %s210
      %p212 = scmp.eq.s32.totalorder %s21, 0
      %p213 = por %p211, %p212
      %p214 = scmp.le.s32.totalorder 1, %s15
      %p215 = scmp.lt.s32.totalorder %s15, 3
      %p216 = pnand %p214, %p215
      %p217 = pneg %p216
      // Predicated region
      $region9: #{tpu_custom_call.1} parent=5 // pred_check
        _
      $region10: #{tpu_custom_call.1} parent=5 // pred_check_branch
        %219 = sbr.rel (%p216) target = $region12
      $region11: #{tpu_custom_call.1} parent=5 // pred_region
        %s220 = ssub.s32 %s15, 1
        // Predicated region
        $region13: #{tpu_custom_call.1} parent=11 // pred_check
          %p221 = pneg %p115
        $region14: #{tpu_custom_call.1} parent=11 // pred_check_branch
          %223 = sbr.rel (%p221) target = $region16
        $region15: #{tpu_custom_call.1} parent=11 // pred_region
          _
        $region16: #{tpu_custom_call.1} parent=11 // pred_fallthru
          _
        // Predicated region
        $region17: #{tpu_custom_call.1} parent=11 // pred_check
          %p224 = pneg %p136
        $region18: #{tpu_custom_call.1} parent=11 // pred_check_branch
          %226 = sbr.rel (%p224) target = $region20
        $region19: #{tpu_custom_call.1} parent=11 // pred_region
          _
        $region20: #{tpu_custom_call.1} parent=11 // pred_fallthru
          _
        // Predicated region
        $region21: #{tpu_custom_call.1} parent=11 // pred_check
          %p227 = pneg %p157
        $region22: #{tpu_custom_call.1} parent=11 // pred_check_branch
          %229 = sbr.rel (%p227) target = $region24
        $region23: #{tpu_custom_call.1} parent=11 // pred_region
          _
        $region24: #{tpu_custom_call.1} parent=11 // pred_fallthru
          _
        // Predicated region
        $region25: #{tpu_custom_call.1} parent=11 // pred_check
          %p230 = pneg %p178
        $region26: #{tpu_custom_call.1} parent=11 // pred_check_branch
          %232 = sbr.rel (%p230) target = $region28
        $region27: #{tpu_custom_call.1} parent=11 // pred_region
          _
        $region28: #{tpu_custom_call.1} parent=11 // pred_fallthru
          _
      $region12: #{tpu_custom_call.1} parent=5 // pred_fallthru
        _
      %p233 = scmp.lt.s32.totalorder %s15, 2
      // Predicated region
      $region29: #{tpu_custom_call.1} parent=5 // pred_check
        %p234 = pneg %p233
      $region30: #{tpu_custom_call.1} parent=5 // pred_check_branch
        %236 = sbr.rel (%p234) target = $region32
      $region31: #{tpu_custom_call.1} parent=5 // pred_region
        // Predicated region
        $region33: #{tpu_custom_call.1} parent=31 // pred_check
          %p237 = pneg %p56
        $region34: #{tpu_custom_call.1} parent=31 // pred_check_branch
          %239 = sbr.rel (%p237) target = $region36
        $region35: #{tpu_custom_call.1} parent=31 // pred_region
          %s240 = smul.u32 2, %s23
          %p241 = scmp.lt.s32.totalorder %s22, 1
          %s242 = scalar_select %p241, %s22, 1
          %p243 = scmp.lt.s32.totalorder %s240, 1
          %s244 = scalar_select %p243, %s240, 1
          %s245 = smul.addr %s242, 2
          %s246 = sadd.s32 %s244, %s245
          %s247 = smul.addr %s246, 4
          %s248 = scalar_lea.vmem %s0, %s247
          %s249 = smul.u32 2, %s23
        $region36: #{tpu_custom_call.1} parent=31 // pred_fallthru
          _
        // Predicated region
        $region37: #{tpu_custom_call.1} parent=31 // pred_check
          %p250 = pneg %p88
        $region38: #{tpu_custom_call.1} parent=31 // pred_check_branch
          %252 = sbr.rel (%p250) target = $region40
        $region39: #{tpu_custom_call.1} parent=31 // pred_region
          %p253 = scmp.eq.s32.totalorder %s23, 0
          %s254 = scalar_select %p253, %s24, 0
          %s255 = smul.u32 2, %s254
          %p256 = scmp.lt.s32.totalorder %s22, 1
          %s257 = scalar_select %p256, %s22, 1
          %p258 = scmp.lt.s32.totalorder %s255, 1
          %s259 = scalar_select %p258, %s255, 1
          %s260 = smul.addr %s257, 2
          %s261 = sadd.s32 %s259, %s260
          %s262 = smul.addr %s261, 4
          %s263 = scalar_lea.vmem %s1, %s262
          %p264 = scmp.eq.s32.totalorder %s23, 0
          %s265 = scalar_select %p264, %s24, 0
          %s266 = smul.u32 2, %s265
        $region40: #{tpu_custom_call.1} parent=31 // pred_fallthru
          _
      $region32: #{tpu_custom_call.1} parent=5 // pred_fallthru
        _
      %p267 = scmp.le.s32.totalorder 1, %s15
      %p268 = scmp.lt.s32.totalorder %s15, 3
      %p269 = pnand %p267, %p268
      %p270 = pneg %p269
      // Predicated region
      $region41: #{tpu_custom_call.1} parent=5 // pred_check
        _
      $region42: #{tpu_custom_call.1} parent=5 // pred_check_branch
        %272 = sbr.rel (%p269) target = $region44
      $region43: #{tpu_custom_call.1} parent=5 // pred_region
        %s273 = ssub.s32 %s15, 1
        %s274 = smul.u32 2, %s26
        %p275 = scmp.lt.s32.totalorder %s25, 1
        %s276 = scalar_select %p275, %s25, 1
        %p277 = scmp.lt.s32.totalorder %s274, 1
        %s278 = scalar_select %p277, %s274, 1
        %s279 = smul.addr %s276, 2
        %s280 = sadd.s32 %s278, %s279
        %s281 = smul.addr %s280, 4
        %s282 = scalar_lea.vmem %s0, %s281
        %p283 = pneg %p62
        %p284 = pneg %p59
        %p285 = scmp.eq.s32.totalorder %s26, 0
        %s286 = scalar_select %p285, %s27, 0
        %s287 = smul.u32 2, %s286
        %p288 = scmp.lt.s32.totalorder %s25, 1
        %s289 = scalar_select %p288, %s25, 1
        %p290 = scmp.lt.s32.totalorder %s287, 1
        %s291 = scalar_select %p290, %s287, 1
        %s292 = smul.addr %s289, 2
        %s293 = sadd.s32 %s291, %s292
        %s294 = smul.addr %s293, 4
        %s295 = scalar_lea.vmem %s1, %s294
        %p296 = pneg %p94
        %p297 = pneg %p91
        %p298 = pneg %p115
        %p299 = pneg %p112
        %p300 = pneg %p136
        %p301 = pneg %p133
        %p302 = pneg %p157
        %p303 = pneg %p154
        %p304 = pneg %p178
        %p305 = pneg %p175
        %p306 = pneg %p206
        %p307 = pneg %p203
        %s308 = sand.u32 %s193, 1
        %s309 = scalar_lea.sflag [#allocation8], %s308
        %s310 = sand.u32 %s193, 1
        %s311 = smul.addr %s310, 8
        %s312 = scalar_lea.vmem [#allocation7], %s311
        %s313 = smul.u32 2, %s26
        %p314 = scmp.lt.s32.totalorder %s25, 1
        %s315 = scalar_select %p314, %s25, 1
        %p316 = scmp.lt.s32.totalorder %s313, 1
        %s317 = scalar_select %p316, %s313, 1
        %s318 = smul.addr %s315, 2
        %s319 = sadd.s32 %s317, %s318
        %s320 = smul.addr %s319, 4
        %s321 = scalar_lea.vmem %s0, %s320
        %s322 = smul.u32 2, %s26
        %p323 = scmp.eq.s32.totalorder %s26, 0
        %s324 = scalar_select %p323, %s27, 0
        %s325 = smul.u32 2, %s324
        %p326 = scmp.lt.s32.totalorder %s25, 1
        %s327 = scalar_select %p326, %s25, 1
        %p328 = scmp.lt.s32.totalorder %s325, 1
        %s329 = scalar_select %p328, %s325, 1
        %s330 = smul.addr %s327, 2
        %s331 = sadd.s32 %s329, %s330
        %s332 = smul.addr %s331, 4
        %s333 = scalar_lea.vmem %s1, %s332
        %p334 = scmp.eq.s32.totalorder %s26, 0
        %s335 = scalar_select %p334, %s27, 0
        %s336 = smul.u32 2, %s335
        %s337 = smul.u32 2, %s26
        %p339 = scmp.eq.s32.totalorder %s27, 0
        // Predicated region
        $region45: #{tpu_custom_call.1} parent=43 // pred_check
          %p340 = pneg %p339
        $region46: #{tpu_custom_call.1} parent=43 // pred_check_branch
          %342 = sbr.rel (%p340) target = $region48
        $region47: #{tpu_custom_call.1} parent=43 // pred_region
          %v343 = vld [vmem:[%s321] sm:$0xff]
          %345 = vst [vmem:[#allocation1] ss:$2 sm:$0xff] %v343
          %v346 = vld.sshfl [vmem:[#allocation1] sm:$0xff pattern:$0x75316420]
          %v347 = vld.sshfl [vmem:[#allocation1 + $0x8] sm:$0xff pattern:$0x75316420]
          %v350 = vpack.c.bf16 %v346, %v346
          %v351 = vpack.c.bf16 %v347, %v347
          %v352 = vld [vmem:[%s2] sm:$0xf]
          %v353 = vld [vmem:[%s3] sm:$0xff]
          %355 = vset.pattern.permute.xlu0 0
          %356 = vperm.xlu0 %355, %v353
          %v357 = vpop.permute.xlu0 %356
          %vm359 = vcmask 31744
          %v361 = vsel %vm359, %v352, 0
          %vm363 = vcmask 1041408
          %v365 = vsel %vm363, %v350, 0
          %v368 = vsel %vm363, %v351, 0
          %370 = vmatpush.bf16.msra.mxu0 0
          %371 = vmatpush.bf16.msra.mxu0 0
          %372 = vmatpush.bf16.msra.mxu0 0
          %373 = vmatpush.bf16.msra.mxu0 0
          %374 = vmatpush.bf16.msra.mxu0 0
          %375 = vmatpush.bf16.msra.mxu0 0
          %376 = vmatpush.bf16.msra.mxu0 0
          %377 = vmatpush.bf16.msra.mxu0 %v365
          %378 = vmatmul.bf16.gmra.mxu0 %v361
          %v379 = vpop.f32.mrf.mxu0
          %v380 = vadd.f32 %v357, %v379
          %v381 = vpop.f32.mrf.mxu0
          %382 = vdwg.mxu0
          %383 = vmatpush.bf16.msra.mxu0 0
          %384 = vmatpush.bf16.msra.mxu0 0
          %385 = vmatpush.bf16.msra.mxu0 0
          %386 = vmatpush.bf16.msra.mxu0 0
          %387 = vmatpush.bf16.msra.mxu0 0
          %388 = vmatpush.bf16.msra.mxu0 0
          %389 = vmatpush.bf16.msra.mxu0 0
          %390 = vmatpush.bf16.msra.mxu0 %v368
          %391 = vmatmul.bf16.gmra.mxu0 %v361
          %v392 = vpop.f32.mrf.mxu0
          %v393 = vadd.f32 %v357, %v392
          %v394 = vpop.f32.mrf.mxu0
          %395 = vdwg.mxu0
          %396 = vxpose.xlu0.b32.start [1/16] %v380, 128
          %397 = vxpose.xlu0.b32.cont [2/16] 0.0, 128
          %398 = vxpose.xlu0.b32.cont [3/16] 0.0, 128
          %399 = vxpose.xlu0.b32.cont [4/16] 0.0, 128
          %400 = vxpose.xlu0.b32.cont [5/16] 0.0, 128
          %401 = vxpose.xlu0.b32.cont [6/16] 0.0, 128
          %402 = vxpose.xlu0.b32.cont [7/16] 0.0, 128
          %403 = vxpose.xlu0.b32.cont [8/16] 0.0, 128
          %404 = vxpose.xlu0.b32.cont [9/16] 0.0, 128
          %405 = vxpose.xlu0.b32.cont [10/16] 0.0, 128
          %406 = vxpose.xlu0.b32.cont [11/16] 0.0, 128
          %407 = vxpose.xlu0.b32.cont [12/16] 0.0, 128
          %408 = vxpose.xlu0.b32.cont [13/16] 0.0, 128
          %409 = vxpose.xlu0.b32.cont [14/16] 0.0, 128
          %410 = vxpose.xlu0.b32.cont [15/16] 0.0, 128
          %411 = vxpose.xlu0.b32.end [16/16] 0.0, 128
          %v412 = vpop.trf.xlu0
          %v413 = vpop.trf.xlu0
          %v414 = vpop.trf.xlu0
          %v415 = vpop.trf.xlu0
          %v416 = vpop.trf.xlu0
          %v417 = vpop.trf.xlu0
          %v418 = vpop.trf.xlu0
          %v419 = vpop.trf.xlu0
          %v420 = vpop.trf.xlu0
          %v421 = vpop.trf.xlu0
          %v422 = vpop.trf.xlu0
          %v423 = vpop.trf.xlu0
          %v424 = vpop.trf.xlu0
          %v425 = vpop.trf.xlu0
          %v426 = vpop.trf.xlu0
          %v427 = vpop.trf.xlu0
          %428 = vxpose.xlu0.b32.start [1/16] %v393, 128
          %429 = vxpose.xlu0.b32.cont [2/16] 0.0, 128
          %430 = vxpose.xlu0.b32.cont [3/16] 0.0, 128
          %431 = vxpose.xlu0.b32.cont [4/16] 0.0, 128
          %432 = vxpose.xlu0.b32.cont [5/16] 0.0, 128
          %433 = vxpose.xlu0.b32.cont [6/16] 0.0, 128
          %434 = vxpose.xlu0.b32.cont [7/16] 0.0, 128
          %435 = vxpose.xlu0.b32.cont [8/16] 0.0, 128
          %436 = vxpose.xlu0.b32.cont [9/16] 0.0, 128
          %437 = vxpose.xlu0.b32.cont [10/16] 0.0, 128
          %438 = vxpose.xlu0.b32.cont [11/16] 0.0, 128
          %439 = vxpose.xlu0.b32.cont [12/16] 0.0, 128
          %440 = vxpose.xlu0.b32.cont [13/16] 0.0, 128
          %441 = vxpose.xlu0.b32.cont [14/16] 0.0, 128
          %442 = vxpose.xlu0.b32.cont [15/16] 0.0, 128
          %443 = vxpose.xlu0.b32.end [16/16] 0.0, 128
          %v444 = vpop.trf.xlu0
          %v445 = vpop.trf.xlu0
          %v446 = vpop.trf.xlu0
          %v447 = vpop.trf.xlu0
          %v448 = vpop.trf.xlu0
          %v449 = vpop.trf.xlu0
          %v450 = vpop.trf.xlu0
          %v451 = vpop.trf.xlu0
          %v452 = vpop.trf.xlu0
          %v453 = vpop.trf.xlu0
          %v454 = vpop.trf.xlu0
          %v455 = vpop.trf.xlu0
          %v456 = vpop.trf.xlu0
          %v457 = vpop.trf.xlu0
          %v458 = vpop.trf.xlu0
          %v459 = vpop.trf.xlu0
          %v460 = vpack.c.bf16 %v412, %v412
          %v461 = vpack.c.bf16 %v413, %v413
          %v462 = vpack.c.bf16 %v414, %v414
          %v463 = vpack.c.bf16 %v415, %v415
          %v464 = vpack.c.bf16 %v416, %v416
          %v465 = vpack.c.bf16 %v417, %v417
          %v466 = vpack.c.bf16 %v418, %v418
          %v467 = vpack.c.bf16 %v419, %v419
          %v468 = vpack.c.bf16 %v420, %v420
          %v469 = vpack.c.bf16 %v421, %v421
          %v470 = vpack.c.bf16 %v422, %v422
          %v471 = vpack.c.bf16 %v423, %v423
          %v472 = vpack.c.bf16 %v424, %v424
          %v473 = vpack.c.bf16 %v425, %v425
          %v474 = vpack.c.bf16 %v426, %v426
          %v475 = vpack.c.bf16 %v427, %v427
          %v476 = vpack.c.bf16 %v444, %v444
          %v477 = vpack.c.bf16 %v445, %v445
          %v478 = vpack.c.bf16 %v446, %v446
          %v479 = vpack.c.bf16 %v447, %v447
          %v480 = vpack.c.bf16 %v448, %v448
          %v481 = vpack.c.bf16 %v449, %v449
          %v482 = vpack.c.bf16 %v450, %v450
          %v483 = vpack.c.bf16 %v451, %v451
          %v484 = vpack.c.bf16 %v452, %v452
          %v485 = vpack.c.bf16 %v453, %v453
          %v486 = vpack.c.bf16 %v454, %v454
          %v487 = vpack.c.bf16 %v455, %v455
          %v488 = vpack.c.bf16 %v456, %v456
          %v489 = vpack.c.bf16 %v457, %v457
          %v490 = vpack.c.bf16 %v458, %v458
          %v491 = vpack.c.bf16 %v459, %v459
          %vm492 = vcmask 60416
          %493 = vst.msk [vmem:[#allocation2] sm:$0xf] %vm492, %v460
          %494 = vst.msk [vmem:[#allocation2 + $0x4] sm:$0xf] %vm492, %v461
          %495 = vst.msk [vmem:[#allocation2 + $0x8] sm:$0xf] %vm492, %v462
          %496 = vst.msk [vmem:[#allocation2 + $0xc] sm:$0xf] %vm492, %v463
          %497 = vst.msk [vmem:[#allocation2 + $0x10] sm:$0xf] %vm492, %v464
          %498 = vst.msk [vmem:[#allocation2 + $0x14] sm:$0xf] %vm492, %v465
          %499 = vst.msk [vmem:[#allocation2 + $0x18] sm:$0xf] %vm492, %v466
          %500 = vst.msk [vmem:[#allocation2 + $0x1c] sm:$0xf] %vm492, %v467
          %501 = vst.msk [vmem:[#allocation2 + $0x20] sm:$0xf] %vm492, %v468
          %502 = vst.msk [vmem:[#allocation2 + $0x24] sm:$0xf] %vm492, %v469
          %503 = vst.msk [vmem:[#allocation2 + $0x28] sm:$0xf] %vm492, %v470
          %504 = vst.msk [vmem:[#allocation2 + $0x2c] sm:$0xf] %vm492, %v471
          %505 = vst.msk [vmem:[#allocation2 + $0x30] sm:$0xf] %vm492, %v472
          %506 = vst.msk [vmem:[#allocation2 + $0x34] sm:$0xf] %vm492, %v473
          %507 = vst.msk [vmem:[#allocation2 + $0x38] sm:$0xf] %vm492, %v474
          %508 = vst.msk [vmem:[#allocation2 + $0x3c] sm:$0xf] %vm492, %v475
          %509 = vst.msk [vmem:[#allocation2 + $0x40] sm:$0xf] %vm492, %v476
          %510 = vst.msk [vmem:[#allocation2 + $0x44] sm:$0xf] %vm492, %v477
          %511 = vst.msk [vmem:[#allocation2 + $0x48] sm:$0xf] %vm492, %v478
          %512 = vst.msk [vmem:[#allocation2 + $0x4c] sm:$0xf] %vm492, %v479
          %513 = vst.msk [vmem:[#allocation2 + $0x50] sm:$0xf] %vm492, %v480
          %514 = vst.msk [vmem:[#allocation2 + $0x54] sm:$0xf] %vm492, %v481
          %515 = vst.msk [vmem:[#allocation2 + $0x58] sm:$0xf] %vm492, %v482
          %516 = vst.msk [vmem:[#allocation2 + $0x5c] sm:$0xf] %vm492, %v483
          %517 = vst.msk [vmem:[#allocation2 + $0x60] sm:$0xf] %vm492, %v484
          %518 = vst.msk [vmem:[#allocation2 + $0x64] sm:$0xf] %vm492, %v485
          %519 = vst.msk [vmem:[#allocation2 + $0x68] sm:$0xf] %vm492, %v486
          %520 = vst.msk [vmem:[#allocation2 + $0x6c] sm:$0xf] %vm492, %v487
          %521 = vst.msk [vmem:[#allocation2 + $0x70] sm:$0xf] %vm492, %v488
          %522 = vst.msk [vmem:[#allocation2 + $0x74] sm:$0xf] %vm492, %v489
          %523 = vst.msk [vmem:[#allocation2 + $0x78] sm:$0xf] %vm492, %v490
          %524 = vst.msk [vmem:[#allocation2 + $0x7c] sm:$0xf] %vm492, %v491
          %vm525 = vcmask 7168
          %526 = vst.msk [vmem:[#allocation4] sm:$0xff] %vm525, -inf
          %527 = vst.msk [vmem:[#allocation4 + $0x8] sm:$0xff] %vm525, -inf
          %528 = vst.msk [vmem:[#allocation4 + $0x10] sm:$0xff] %vm525, -inf
          %529 = vst.msk [vmem:[#allocation4 + $0x18] sm:$0xff] %vm525, -inf
          %530 = vst.msk [vmem:[#allocation4 + $0x20] sm:$0xff] %vm525, -inf
          %531 = vst.msk [vmem:[#allocation4 + $0x28] sm:$0xff] %vm525, -inf
          %532 = vst.msk [vmem:[#allocation4 + $0x30] sm:$0xff] %vm525, -inf
          %533 = vst.msk [vmem:[#allocation4 + $0x38] sm:$0xff] %vm525, -inf
          %534 = vst.msk [vmem:[#allocation4 + $0x40] sm:$0xff] %vm525, -inf
          %535 = vst.msk [vmem:[#allocation4 + $0x48] sm:$0xff] %vm525, -inf
          %536 = vst.msk [vmem:[#allocation4 + $0x50] sm:$0xff] %vm525, -inf
          %537 = vst.msk [vmem:[#allocation4 + $0x58] sm:$0xff] %vm525, -inf
          %538 = vst.msk [vmem:[#allocation4 + $0x60] sm:$0xff] %vm525, -inf
          %539 = vst.msk [vmem:[#allocation4 + $0x68] sm:$0xff] %vm525, -inf
          %540 = vst.msk [vmem:[#allocation4 + $0x70] sm:$0xff] %vm525, -inf
          %541 = vst.msk [vmem:[#allocation4 + $0x78] sm:$0xff] %vm525, -inf
          %542 = vst.msk [vmem:[#allocation4 + $0x80] sm:$0xff] %vm525, -inf
          %543 = vst.msk [vmem:[#allocation4 + $0x88] sm:$0xff] %vm525, -inf
          %544 = vst.msk [vmem:[#allocation4 + $0x90] sm:$0xff] %vm525, -inf
          %545 = vst.msk [vmem:[#allocation4 + $0x98] sm:$0xff] %vm525, -inf
          %546 = vst.msk [vmem:[#allocation4 + $0xa0] sm:$0xff] %vm525, -inf
          %547 = vst.msk [vmem:[#allocation4 + $0xa8] sm:$0xff] %vm525, -inf
          %548 = vst.msk [vmem:[#allocation4 + $0xb0] sm:$0xff] %vm525, -inf
          %549 = vst.msk [vmem:[#allocation4 + $0xb8] sm:$0xff] %vm525, -inf
          %550 = vst.msk [vmem:[#allocation4 + $0xc0] sm:$0xff] %vm525, -inf
          %551 = vst.msk [vmem:[#allocation4 + $0xc8] sm:$0xff] %vm525, -inf
          %552 = vst.msk [vmem:[#allocation4 + $0xd0] sm:$0xff] %vm525, -inf
          %553 = vst.msk [vmem:[#allocation4 + $0xd8] sm:$0xff] %vm525, -inf
          %554 = vst.msk [vmem:[#allocation4 + $0xe0] sm:$0xff] %vm525, -inf
          %555 = vst.msk [vmem:[#allocation4 + $0xe8] sm:$0xff] %vm525, -inf
          %556 = vst.msk [vmem:[#allocation4 + $0xf0] sm:$0xff] %vm525, -inf
          %557 = vst.msk [vmem:[#allocation4 + $0xf8] sm:$0xff] %vm525, -inf
          %558 = vst.msk [vmem:[#allocation5] sm:$0xff] %vm525, 0.0
          %559 = vst.msk [vmem:[#allocation5 + $0x8] sm:$0xff] %vm525, 0.0
          %560 = vst.msk [vmem:[#allocation5 + $0x10] sm:$0xff] %vm525, 0.0
          %561 = vst.msk [vmem:[#allocation5 + $0x18] sm:$0xff] %vm525, 0.0
          %562 = vst.msk [vmem:[#allocation5 + $0x20] sm:$0xff] %vm525, 0.0
          %563 = vst.msk [vmem:[#allocation5 + $0x28] sm:$0xff] %vm525, 0.0
          %564 = vst.msk [vmem:[#allocation5 + $0x30] sm:$0xff] %vm525, 0.0
          %565 = vst.msk [vmem:[#allocation5 + $0x38] sm:$0xff] %vm525, 0.0
          %566 = vst.msk [vmem:[#allocation5 + $0x40] sm:$0xff] %vm525, 0.0
          %567 = vst.msk [vmem:[#allocation5 + $0x48] sm:$0xff] %vm525, 0.0
          %568 = vst.msk [vmem:[#allocation5 + $0x50] sm:$0xff] %vm525, 0.0
          %569 = vst.msk [vmem:[#allocation5 + $0x58] sm:$0xff] %vm525, 0.0
          %570 = vst.msk [vmem:[#allocation5 + $0x60] sm:$0xff] %vm525, 0.0
          %571 = vst.msk [vmem:[#allocation5 + $0x68] sm:$0xff] %vm525, 0.0
          %572 = vst.msk [vmem:[#allocation5 + $0x70] sm:$0xff] %vm525, 0.0
          %573 = vst.msk [vmem:[#allocation5 + $0x78] sm:$0xff] %vm525, 0.0
          %574 = vst.msk [vmem:[#allocation5 + $0x80] sm:$0xff] %vm525, 0.0
          %575 = vst.msk [vmem:[#allocation5 + $0x88] sm:$0xff] %vm525, 0.0
          %576 = vst.msk [vmem:[#allocation5 + $0x90] sm:$0xff] %vm525, 0.0
          %577 = vst.msk [vmem:[#allocation5 + $0x98] sm:$0xff] %vm525, 0.0
          %578 = vst.msk [vmem:[#allocation5 + $0xa0] sm:$0xff] %vm525, 0.0
          %579 = vst.msk [vmem:[#allocation5 + $0xa8] sm:$0xff] %vm525, 0.0
          %580 = vst.msk [vmem:[#allocation5 + $0xb0] sm:$0xff] %vm525, 0.0
          %581 = vst.msk [vmem:[#allocation5 + $0xb8] sm:$0xff] %vm525, 0.0
          %582 = vst.msk [vmem:[#allocation5 + $0xc0] sm:$0xff] %vm525, 0.0
          %583 = vst.msk [vmem:[#allocation5 + $0xc8] sm:$0xff] %vm525, 0.0
          %584 = vst.msk [vmem:[#allocation5 + $0xd0] sm:$0xff] %vm525, 0.0
          %585 = vst.msk [vmem:[#allocation5 + $0xd8] sm:$0xff] %vm525, 0.0
          %586 = vst.msk [vmem:[#allocation5 + $0xe0] sm:$0xff] %vm525, 0.0
          %587 = vst.msk [vmem:[#allocation5 + $0xe8] sm:$0xff] %vm525, 0.0
          %588 = vst.msk [vmem:[#allocation5 + $0xf0] sm:$0xff] %vm525, 0.0
          %589 = vst.msk [vmem:[#allocation5 + $0xf8] sm:$0xff] %vm525, 0.0
          %vm590 = vcmask 64512
          %591 = vst.msk [vmem:[#allocation6] sm:$0xff] %vm590, 0.0
          %592 = vst.msk [vmem:[#allocation6 + $0x8] sm:$0xff] %vm590, 0.0
          %593 = vst.msk [vmem:[#allocation6 + $0x10] sm:$0xff] %vm590, 0.0
          %594 = vst.msk [vmem:[#allocation6 + $0x18] sm:$0xff] %vm590, 0.0
          %595 = vst.msk [vmem:[#allocation6 + $0x20] sm:$0xff] %vm590, 0.0
          %596 = vst.msk [vmem:[#allocation6 + $0x28] sm:$0xff] %vm590, 0.0
          %597 = vst.msk [vmem:[#allocation6 + $0x30] sm:$0xff] %vm590, 0.0
          %598 = vst.msk [vmem:[#allocation6 + $0x38] sm:$0xff] %vm590, 0.0
          %599 = vst.msk [vmem:[#allocation6 + $0x40] sm:$0xff] %vm590, 0.0
          %600 = vst.msk [vmem:[#allocation6 + $0x48] sm:$0xff] %vm590, 0.0
          %601 = vst.msk [vmem:[#allocation6 + $0x50] sm:$0xff] %vm590, 0.0
          %602 = vst.msk [vmem:[#allocation6 + $0x58] sm:$0xff] %vm590, 0.0
          %603 = vst.msk [vmem:[#allocation6 + $0x60] sm:$0xff] %vm590, 0.0
          %604 = vst.msk [vmem:[#allocation6 + $0x68] sm:$0xff] %vm590, 0.0
          %605 = vst.msk [vmem:[#allocation6 + $0x70] sm:$0xff] %vm590, 0.0
          %606 = vst.msk [vmem:[#allocation6 + $0x78] sm:$0xff] %vm590, 0.0
          %607 = vst.msk [vmem:[#allocation6 + $0x80] sm:$0xff] %vm590, 0.0
          %608 = vst.msk [vmem:[#allocation6 + $0x88] sm:$0xff] %vm590, 0.0
          %609 = vst.msk [vmem:[#allocation6 + $0x90] sm:$0xff] %vm590, 0.0
          %610 = vst.msk [vmem:[#allocation6 + $0x98] sm:$0xff] %vm590, 0.0
          %611 = vst.msk [vmem:[#allocation6 + $0xa0] sm:$0xff] %vm590, 0.0
          %612 = vst.msk [vmem:[#allocation6 + $0xa8] sm:$0xff] %vm590, 0.0
          %613 = vst.msk [vmem:[#allocation6 + $0xb0] sm:$0xff] %vm590, 0.0
          %614 = vst.msk [vmem:[#allocation6 + $0xb8] sm:$0xff] %vm590, 0.0
          %615 = vst.msk [vmem:[#allocation6 + $0xc0] sm:$0xff] %vm590, 0.0
          %616 = vst.msk [vmem:[#allocation6 + $0xc8] sm:$0xff] %vm590, 0.0
          %617 = vst.msk [vmem:[#allocation6 + $0xd0] sm:$0xff] %vm590, 0.0
          %618 = vst.msk [vmem:[#allocation6 + $0xd8] sm:$0xff] %vm590, 0.0
          %619 = vst.msk [vmem:[#allocation6 + $0xe0] sm:$0xff] %vm590, 0.0
          %620 = vst.msk [vmem:[#allocation6 + $0xe8] sm:$0xff] %vm590, 0.0
          %621 = vst.msk [vmem:[#allocation6 + $0xf0] sm:$0xff] %vm590, 0.0
          %622 = vst.msk [vmem:[#allocation6 + $0xf8] sm:$0xff] %vm590, 0.0
        $region48: #{tpu_custom_call.1} parent=43 // pred_fallthru
          _
        %p623 = scmp.eq.s32.totalorder %s26, 0
        // Predicated region
        $region49: #{tpu_custom_call.1} parent=43 // pred_check
          %p624 = pneg %p623
        $region50: #{tpu_custom_call.1} parent=43 // pred_check_branch
          %626 = sbr.rel (%p624) target = $region52
        $region51: #{tpu_custom_call.1} parent=43 // pred_region
          %v627 = vld [vmem:[%s333] sm:$0xff]
          %629 = vst [vmem:[#allocation1] ss:$2 sm:$0xff] %v627
          %v630 = vld.sshfl [vmem:[#allocation1] sm:$0xff pattern:$0x75316420]
          %v631 = vld.sshfl [vmem:[#allocation1 + $0x8] sm:$0xff pattern:$0x75316420]
          %v634 = vpack.c.bf16 %v630, %v630
          %v635 = vpack.c.bf16 %v631, %v631
          %v636 = vld [vmem:[%s2 + $0x4] sm:$0xf]
          %v637 = vld [vmem:[%s2 + $0x8] sm:$0xf]
          %v638 = vld [vmem:[%s3 + $0x8] sm:$0xff]
          %v639 = vld [vmem:[%s3 + $0x10] sm:$0xff]
          %641 = vset.pattern.permute.xlu0 0
          %642 = vperm.xlu0 %641, %v638
          %v643 = vpop.permute.xlu0 %642
          %646 = vset.pattern.permute.xlu0 0
          %647 = vperm.xlu0 %646, %v639
          %v648 = vpop.permute.xlu0 %647
          %v652 = vunpack.c.l.b16 %v636
          %v653 = vunpack.c.l.b16 %v637
          %v654 = vpack.c.b16 %v653, %v652
          %vm655 = vcmask 31744
          %v657 = vsel %vm655, %v654, 0
          %vm659 = vcmask 1041408
          %v661 = vsel %vm659, %v634, 0
          %v664 = vsel %vm659, %v635, 0
          %666 = vmatpush.bf16.msra.mxu0 0
          %667 = vmatpush.bf16.msra.mxu0 0
          %668 = vmatpush.bf16.msra.mxu0 0
          %669 = vmatpush.bf16.msra.mxu0 0
          %670 = vmatpush.bf16.msra.mxu0 0
          %671 = vmatpush.bf16.msra.mxu0 0
          %672 = vmatpush.bf16.msra.mxu0 0
          %673 = vmatpush.bf16.msra.mxu0 %v661
          %674 = vmatmul.bf16.gmra.mxu0 %v657
          %v675 = vpop.f32.mrf.mxu0
          %v676 = vadd.f32 %v643, %v675
          %v677 = vpop.f32.mrf.mxu0
          %v678 = vadd.f32 %v648, %v677
          %679 = vdwg.mxu0
          %680 = vmatpush.bf16.msra.mxu0 0
          %681 = vmatpush.bf16.msra.mxu0 0
          %682 = vmatpush.bf16.msra.mxu0 0
          %683 = vmatpush.bf16.msra.mxu0 0
          %684 = vmatpush.bf16.msra.mxu0 0
          %685 = vmatpush.bf16.msra.mxu0 0
          %686 = vmatpush.bf16.msra.mxu0 0
          %687 = vmatpush.bf16.msra.mxu0 %v664
          %688 = vmatmul.bf16.gmra.mxu0 %v657
          %v689 = vpop.f32.mrf.mxu0
          %v690 = vadd.f32 %v643, %v689
          %v691 = vpop.f32.mrf.mxu0
          %v692 = vadd.f32 %v648, %v691
          %693 = vdwg.mxu0
          %v694 = vpack.c.bf16 %v690, %v676
          %v695 = vpack.c.bf16 %v692, %v678
          %s696 = smul.u32 %s27, 4
          %s697 = smul.addr %s696, 4
          %s698 = scalar_lea.vmem [#allocation3], %s697
          %699 = vst [vmem:[%s698] sm:$0xff] %v694
          %700 = vst [vmem:[%s698 + $0x8] sm:$0xff] %v695
        $region52: #{tpu_custom_call.1} parent=43 // pred_fallthru
          _
        %s701 = smul.u32 %s27, 4
        %s702 = smul.addr %s701, 4
        %s703 = scalar_lea.vmem [#allocation3], %s702
        %v704 = vld [vmem:[%s703] sm:$0xff]
        %v705 = vld [vmem:[%s703 + $0x8] sm:$0xff]
        %v706 = vld [vmem:[#allocation2] sm:$0xf]
        %v707 = vld [vmem:[#allocation2 + $0x4] sm:$0xf]
        %v708 = vld [vmem:[#allocation2 + $0x8] sm:$0xf]
        %v709 = vld [vmem:[#allocation2 + $0xc] sm:$0xf]
        %v710 = vld [vmem:[#allocation2 + $0x10] sm:$0xf]
        %v711 = vld [vmem:[#allocation2 + $0x14] sm:$0xf]
        %v712 = vld [vmem:[#allocation2 + $0x18] sm:$0xf]
        %v713 = vld [vmem:[#allocation2 + $0x1c] sm:$0xf]
        %v714 = vld [vmem:[#allocation2 + $0x20] sm:$0xf]
        %v715 = vld [vmem:[#allocation2 + $0x24] sm:$0xf]
        %v716 = vld [vmem:[#allocation2 + $0x28] sm:$0xf]
        %v717 = vld [vmem:[#allocation2 + $0x2c] sm:$0xf]
        %v718 = vld [vmem:[#allocation2 + $0x30] sm:$0xf]
        %v719 = vld [vmem:[#allocation2 + $0x34] sm:$0xf]
        %v720 = vld [vmem:[#allocation2 + $0x38] sm:$0xf]
        %v721 = vld [vmem:[#allocation2 + $0x3c] sm:$0xf]
        %v722 = vld [vmem:[#allocation2 + $0x40] sm:$0xf]
        %v723 = vld [vmem:[#allocation2 + $0x44] sm:$0xf]
        %v724 = vld [vmem:[#allocation2 + $0x48] sm:$0xf]
        %v725 = vld [vmem:[#allocation2 + $0x4c] sm:$0xf]
        %v726 = vld [vmem:[#allocation2 + $0x50] sm:$0xf]
        %v727 = vld [vmem:[#allocation2 + $0x54] sm:$0xf]
        %v728 = vld [vmem:[#allocation2 + $0x58] sm:$0xf]
        %v729 = vld [vmem:[#allocation2 + $0x5c] sm:$0xf]
        %v730 = vld [vmem:[#allocation2 + $0x60] sm:$0xf]
        %v731 = vld [vmem:[#allocation2 + $0x64] sm:$0xf]
        %v732 = vld [vmem:[#allocation2 + $0x68] sm:$0xf]
        %v733 = vld [vmem:[#allocation2 + $0x6c] sm:$0xf]
        %v734 = vld [vmem:[#allocation2 + $0x70] sm:$0xf]
        %v735 = vld [vmem:[#allocation2 + $0x74] sm:$0xf]
        %v736 = vld [vmem:[#allocation2 + $0x78] sm:$0xf]
        %v737 = vld [vmem:[#allocation2 + $0x7c] sm:$0xf]
        %v770 = vunpack.c.l.b16 %v706
        %v771 = vunpack.c.l.b16 %v707
        %v772 = vunpack.c.l.b16 %v708
        %v773 = vunpack.c.l.b16 %v709
        %v774 = vunpack.c.l.b16 %v710
        %v775 = vunpack.c.l.b16 %v711
        %v776 = vunpack.c.l.b16 %v712
        %v777 = vunpack.c.l.b16 %v713
        %v778 = vunpack.c.l.b16 %v714
        %v779 = vunpack.c.l.b16 %v715
        %v780 = vunpack.c.l.b16 %v716
        %v781 = vunpack.c.l.b16 %v717
        %v782 = vunpack.c.l.b16 %v718
        %v783 = vunpack.c.l.b16 %v719
        %v784 = vunpack.c.l.b16 %v720
        %v785 = vunpack.c.l.b16 %v721
        %v786 = vunpack.c.l.b16 %v722
        %v787 = vunpack.c.l.b16 %v723
        %v788 = vunpack.c.l.b16 %v724
        %v789 = vunpack.c.l.b16 %v725
        %v790 = vunpack.c.l.b16 %v726
        %v791 = vunpack.c.l.b16 %v727
        %v792 = vunpack.c.l.b16 %v728
        %v793 = vunpack.c.l.b16 %v729
        %v794 = vunpack.c.l.b16 %v730
        %v795 = vunpack.c.l.b16 %v731
        %v796 = vunpack.c.l.b16 %v732
        %v797 = vunpack.c.l.b16 %v733
        %v798 = vunpack.c.l.b16 %v734
        %v799 = vunpack.c.l.b16 %v735
        %v800 = vunpack.c.l.b16 %v736
        %v801 = vunpack.c.l.b16 %v737
        %v802 = vpack.c.b16 %v771, %v770
        %v803 = vpack.c.b16 %v773, %v772
        %v804 = vpack.c.b16 %v775, %v774
        %v805 = vpack.c.b16 %v777, %v776
        %v806 = vpack.c.b16 %v779, %v778
        %v807 = vpack.c.b16 %v781, %v780
        %v808 = vpack.c.b16 %v783, %v782
        %v809 = vpack.c.b16 %v785, %v784
        %v810 = vpack.c.b16 %v787, %v786
        %v811 = vpack.c.b16 %v789, %v788
        %v812 = vpack.c.b16 %v791, %v790
        %v813 = vpack.c.b16 %v793, %v792
        %v814 = vpack.c.b16 %v795, %v794
        %v815 = vpack.c.b16 %v797, %v796
        %v816 = vpack.c.b16 %v799, %v798
        %v817 = vpack.c.b16 %v801, %v800
        %v819 = vunpack.c.l.b16 %v704
        %v820 = vunpack.c.h.b16 %v704
        %v821 = vpack.c.b16 %v819, %v819
        %v822 = vpack.c.b16 %v820, %v820
        %vm823 = vcmask 64512
        %v825 = vsel %vm823, %v802, 0
        %v828 = vsel %vm823, %v803, 0
        %v831 = vsel %vm823, %v804, 0
        %v834 = vsel %vm823, %v805, 0
        %v837 = vsel %vm823, %v806, 0
        %v840 = vsel %vm823, %v807, 0
        %v843 = vsel %vm823, %v808, 0
        %v846 = vsel %vm823, %v809, 0
        %v849 = vsel %vm823, %v810, 0
        %v852 = vsel %vm823, %v811, 0
        %v855 = vsel %vm823, %v812, 0
        %v858 = vsel %vm823, %v813, 0
        %v861 = vsel %vm823, %v814, 0
        %v864 = vsel %vm823, %v815, 0
        %v867 = vsel %vm823, %v816, 0
        %v870 = vsel %vm823, %v817, 0
        %vm872 = vcmask 1043456
        %v874 = vsel %vm872, %v821, 0
        %v877 = vsel %vm872, %v822, 0
        %879 = vmatpush.bf16.msra.mxu0 0
        %880 = vmatpush.bf16.msra.mxu0 0
        %881 = vmatpush.bf16.msra.mxu0 0
        %882 = vmatpush.bf16.msra.mxu0 0
        %883 = vmatpush.bf16.msra.mxu0 0
        %884 = vmatpush.bf16.msra.mxu0 0
        %885 = vmatpush.bf16.msra.mxu0 0
        %886 = vmatpush.bf16.msra.mxu0 %v874
        %887 = vmatmul.bf16.gmra.mxu0 %v825
        %v888 = vpop.f32.mrf.mxu0
        %v889 = vadd.f32 0.0, %v888
        %v890 = vpop.f32.mrf.mxu0
        %v891 = vadd.f32 0.0, %v890
        %892 = vmatmul.bf16.gmra.mxu0 %v828
        %v893 = vpop.f32.mrf.mxu0
        %v894 = vadd.f32 0.0, %v893
        %v895 = vpop.f32.mrf.mxu0
        %v896 = vadd.f32 0.0, %v895
        %897 = vmatmul.bf16.gmra.mxu0 %v831
        %v898 = vpop.f32.mrf.mxu0
        %v899 = vadd.f32 0.0, %v898
        %v900 = vpop.f32.mrf.mxu0
        %v901 = vadd.f32 0.0, %v900
        %902 = vmatmul.bf16.gmra.mxu0 %v834
        %v903 = vpop.f32.mrf.mxu0
        %v904 = vadd.f32 0.0, %v903
        %v905 = vpop.f32.mrf.mxu0
        %v906 = vadd.f32 0.0, %v905
        %907 = vmatmul.bf16.gmra.mxu0 %v837
        %v908 = vpop.f32.mrf.mxu0
        %v909 = vadd.f32 0.0, %v908
        %v910 = vpop.f32.mrf.mxu0
        %v911 = vadd.f32 0.0, %v910
        %912 = vmatmul.bf16.gmra.mxu0 %v840
        %v913 = vpop.f32.mrf.mxu0
        %v914 = vadd.f32 0.0, %v913
        %v915 = vpop.f32.mrf.mxu0
        %v916 = vadd.f32 0.0, %v915
        %917 = vmatmul.bf16.gmra.mxu0 %v843
        %v918 = vpop.f32.mrf.mxu0
        %v919 = vadd.f32 0.0, %v918
        %v920 = vpop.f32.mrf.mxu0
        %v921 = vadd.f32 0.0, %v920
        %922 = vmatmul.bf16.gmra.mxu0 %v846
        %v923 = vpop.f32.mrf.mxu0
        %v924 = vadd.f32 0.0, %v923
        %v925 = vpop.f32.mrf.mxu0
        %v926 = vadd.f32 0.0, %v925
        %927 = vmatmul.bf16.gmra.mxu0 %v849
        %v928 = vpop.f32.mrf.mxu0
        %v929 = vadd.f32 0.0, %v928
        %v930 = vpop.f32.mrf.mxu0
        %v931 = vadd.f32 0.0, %v930
        %932 = vmatmul.bf16.gmra.mxu0 %v852
        %v933 = vpop.f32.mrf.mxu0
        %v934 = vadd.f32 0.0, %v933
        %v935 = vpop.f32.mrf.mxu0
        %v936 = vadd.f32 0.0, %v935
        %937 = vmatmul.bf16.gmra.mxu0 %v855
        %v938 = vpop.f32.mrf.mxu0
        %v939 = vadd.f32 0.0, %v938
        %v940 = vpop.f32.mrf.mxu0
        %v941 = vadd.f32 0.0, %v940
        %942 = vmatmul.bf16.gmra.mxu0 %v858
        %v943 = vpop.f32.mrf.mxu0
        %v944 = vadd.f32 0.0, %v943
        %v945 = vpop.f32.mrf.mxu0
        %v946 = vadd.f32 0.0, %v945
        %947 = vmatmul.bf16.gmra.mxu0 %v861
        %v948 = vpop.f32.mrf.mxu0
        %v949 = vadd.f32 0.0, %v948
        %v950 = vpop.f32.mrf.mxu0
        %v951 = vadd.f32 0.0, %v950
        %952 = vmatmul.bf16.gmra.mxu0 %v864
        %v953 = vpop.f32.mrf.mxu0
        %v954 = vadd.f32 0.0, %v953
        %v955 = vpop.f32.mrf.mxu0
        %v956 = vadd.f32 0.0, %v955
        %957 = vmatmul.bf16.gmra.mxu0 %v867
        %v958 = vpop.f32.mrf.mxu0
        %v959 = vadd.f32 0.0, %v958
        %v960 = vpop.f32.mrf.mxu0
        %v961 = vadd.f32 0.0, %v960
        %962 = vmatmul.bf16.gmra.mxu0 %v870
        %v963 = vpop.f32.mrf.mxu0
        %v964 = vadd.f32 0.0, %v963
        %v965 = vpop.f32.mrf.mxu0
        %v966 = vadd.f32 0.0, %v965
        %967 = vdwg.mxu0
        %968 = vmatpush.bf16.msra.mxu0 0
        %969 = vmatpush.bf16.msra.mxu0 0
        %970 = vmatpush.bf16.msra.mxu0 0
        %971 = vmatpush.bf16.msra.mxu0 0
        %972 = vmatpush.bf16.msra.mxu0 0
        %973 = vmatpush.bf16.msra.mxu0 0
        %974 = vmatpush.bf16.msra.mxu0 0
        %975 = vmatpush.bf16.msra.mxu0 %v877
        %976 = vmatmul.bf16.gmra.mxu0 %v825
        %v977 = vpop.f32.mrf.mxu0
        %v978 = vadd.f32 0.0, %v977
        %v979 = vpop.f32.mrf.mxu0
        %v980 = vadd.f32 0.0, %v979
        %981 = vmatmul.bf16.gmra.mxu0 %v828
        %v982 = vpop.f32.mrf.mxu0
        %v983 = vadd.f32 0.0, %v982
        %v984 = vpop.f32.mrf.mxu0
        %v985 = vadd.f32 0.0, %v984
        %986 = vmatmul.bf16.gmra.mxu0 %v831
        %v987 = vpop.f32.mrf.mxu0
        %v988 = vadd.f32 0.0, %v987
        %v989 = vpop.f32.mrf.mxu0
        %v990 = vadd.f32 0.0, %v989
        %991 = vmatmul.bf16.gmra.mxu0 %v834
        %v992 = vpop.f32.mrf.mxu0
        %v993 = vadd.f32 0.0, %v992
        %v994 = vpop.f32.mrf.mxu0
        %v995 = vadd.f32 0.0, %v994
        %996 = vmatmul.bf16.gmra.mxu0 %v837
        %v997 = vpop.f32.mrf.mxu0
        %v998 = vadd.f32 0.0, %v997
        %v999 = vpop.f32.mrf.mxu0
        %v1000 = vadd.f32 0.0, %v999
        %1001 = vmatmul.bf16.gmra.mxu0 %v840
        %v1002 = vpop.f32.mrf.mxu0
        %v1003 = vadd.f32 0.0, %v1002
        %v1004 = vpop.f32.mrf.mxu0
        %v1005 = vadd.f32 0.0, %v1004
        %1006 = vmatmul.bf16.gmra.mxu0 %v843
        %v1007 = vpop.f32.mrf.mxu0
        %v1008 = vadd.f32 0.0, %v1007
        %v1009 = vpop.f32.mrf.mxu0
        %v1010 = vadd.f32 0.0, %v1009
        %1011 = vmatmul.bf16.gmra.mxu0 %v846
        %v1012 = vpop.f32.mrf.mxu0
        %v1013 = vadd.f32 0.0, %v1012
        %v1014 = vpop.f32.mrf.mxu0
        %v1015 = vadd.f32 0.0, %v1014
        %1016 = vmatmul.bf16.gmra.mxu0 %v849
        %v1017 = vpop.f32.mrf.mxu0
        %v1018 = vadd.f32 0.0, %v1017
        %v1019 = vpop.f32.mrf.mxu0
        %v1020 = vadd.f32 0.0, %v1019
        %1021 = vmatmul.bf16.gmra.mxu0 %v852
        %v1022 = vpop.f32.mrf.mxu0
        %v1023 = vadd.f32 0.0, %v1022
        %v1024 = vpop.f32.mrf.mxu0
        %v1025 = vadd.f32 0.0, %v1024
        %1026 = vmatmul.bf16.gmra.mxu0 %v855
        %v1027 = vpop.f32.mrf.mxu0
        %v1028 = vadd.f32 0.0, %v1027
        %v1029 = vpop.f32.mrf.mxu0
        %v1030 = vadd.f32 0.0, %v1029
        %1031 = vmatmul.bf16.gmra.mxu0 %v858
        %v1032 = vpop.f32.mrf.mxu0
        %v1033 = vadd.f32 0.0, %v1032
        %v1034 = vpop.f32.mrf.mxu0
        %v1035 = vadd.f32 0.0, %v1034
        %1036 = vmatmul.bf16.gmra.mxu0 %v861
        %v1037 = vpop.f32.mrf.mxu0
        %v1038 = vadd.f32 0.0, %v1037
        %v1039 = vpop.f32.mrf.mxu0
        %v1040 = vadd.f32 0.0, %v1039
        %1041 = vmatmul.bf16.gmra.mxu0 %v864
        %v1042 = vpop.f32.mrf.mxu0
        %v1043 = vadd.f32 0.0, %v1042
        %v1044 = vpop.f32.mrf.mxu0
        %v1045 = vadd.f32 0.0, %v1044
        %1046 = vmatmul.bf16.gmra.mxu0 %v867
        %v1047 = vpop.f32.mrf.mxu0
        %v1048 = vadd.f32 0.0, %v1047
        %v1049 = vpop.f32.mrf.mxu0
        %v1050 = vadd.f32 0.0, %v1049
        %1051 = vmatmul.bf16.gmra.mxu0 %v870
        %v1052 = vpop.f32.mrf.mxu0
        %v1053 = vadd.f32 0.0, %v1052
        %v1054 = vpop.f32.mrf.mxu0
        %v1055 = vadd.f32 0.0, %v1054
        %1056 = vdwg.mxu0
        %v1057 = vld [vmem:[#allocation4] sm:$0xff]
        %v1058 = vld [vmem:[#allocation4 + $0x8] sm:$0xff]
        %v1059 = vld [vmem:[#allocation4 + $0x10] sm:$0xff]
        %v1060 = vld [vmem:[#allocation4 + $0x18] sm:$0xff]
        %v1061 = vld [vmem:[#allocation4 + $0x20] sm:$0xff]
        %v1062 = vld [vmem:[#allocation4 + $0x28] sm:$0xff]
        %v1063 = vld [vmem:[#allocation4 + $0x30] sm:$0xff]
        %v1064 = vld [vmem:[#allocation4 + $0x38] sm:$0xff]
        %v1065 = vld [vmem:[#allocation4 + $0x40] sm:$0xff]
        %v1066 = vld [vmem:[#allocation4 + $0x48] sm:$0xff]
        %v1067 = vld [vmem:[#allocation4 + $0x50] sm:$0xff]
        %v1068 = vld [vmem:[#allocation4 + $0x58] sm:$0xff]
        %v1069 = vld [vmem:[#allocation4 + $0x60] sm:$0xff]
        %v1070 = vld [vmem:[#allocation4 + $0x68] sm:$0xff]
        %v1071 = vld [vmem:[#allocation4 + $0x70] sm:$0xff]
        %v1072 = vld [vmem:[#allocation4 + $0x78] sm:$0xff]
        %v1073 = vld [vmem:[#allocation4 + $0x80] sm:$0xff]
        %v1074 = vld [vmem:[#allocation4 + $0x88] sm:$0xff]
        %v1075 = vld [vmem:[#allocation4 + $0x90] sm:$0xff]
        %v1076 = vld [vmem:[#allocation4 + $0x98] sm:$0xff]
        %v1077 = vld [vmem:[#allocation4 + $0xa0] sm:$0xff]
        %v1078 = vld [vmem:[#allocation4 + $0xa8] sm:$0xff]
        %v1079 = vld [vmem:[#allocation4 + $0xb0] sm:$0xff]
        %v1080 = vld [vmem:[#allocation4 + $0xb8] sm:$0xff]
        %v1081 = vld [vmem:[#allocation4 + $0xc0] sm:$0xff]
        %v1082 = vld [vmem:[#allocation4 + $0xc8] sm:$0xff]
        %v1083 = vld [vmem:[#allocation4 + $0xd0] sm:$0xff]
        %v1084 = vld [vmem:[#allocation4 + $0xd8] sm:$0xff]
        %v1085 = vld [vmem:[#allocation4 + $0xe0] sm:$0xff]
        %v1086 = vld [vmem:[#allocation4 + $0xe8] sm:$0xff]
        %v1087 = vld [vmem:[#allocation4 + $0xf0] sm:$0xff]
        %v1088 = vld [vmem:[#allocation4 + $0xf8] sm:$0xff]
        %v1089 = vmax.f32 %v889, %v978
        %1090 = vmax.xlane.f32.xlu0 %v1089
        %v1091 = vpop.xlane.xlu0 %1090
        %v1092 = vmax.f32 %v891, %v980
        %1093 = vmax.xlane.f32.xlu0 %v1092
        %v1094 = vpop.xlane.xlu0 %1093
        %v1095 = vmax.f32 %v894, %v983
        %1096 = vmax.xlane.f32.xlu0 %v1095
        %v1097 = vpop.xlane.xlu0 %1096
        %v1098 = vmax.f32 %v896, %v985
        %1099 = vmax.xlane.f32.xlu0 %v1098
        %v1100 = vpop.xlane.xlu0 %1099
        %v1101 = vmax.f32 %v899, %v988
        %1102 = vmax.xlane.f32.xlu0 %v1101
        %v1103 = vpop.xlane.xlu0 %1102
        %v1104 = vmax.f32 %v901, %v990
        %1105 = vmax.xlane.f32.xlu0 %v1104
        %v1106 = vpop.xlane.xlu0 %1105
        %v1107 = vmax.f32 %v904, %v993
        %1108 = vmax.xlane.f32.xlu0 %v1107
        %v1109 = vpop.xlane.xlu0 %1108
        %v1110 = vmax.f32 %v906, %v995
        %1111 = vmax.xlane.f32.xlu0 %v1110
        %v1112 = vpop.xlane.xlu0 %1111
        %v1113 = vmax.f32 %v909, %v998
        %1114 = vmax.xlane.f32.xlu0 %v1113
        %v1115 = vpop.xlane.xlu0 %1114
        %v1116 = vmax.f32 %v911, %v1000
        %1117 = vmax.xlane.f32.xlu0 %v1116
        %v1118 = vpop.xlane.xlu0 %1117
        %v1119 = vmax.f32 %v914, %v1003
        %1120 = vmax.xlane.f32.xlu0 %v1119
        %v1121 = vpop.xlane.xlu0 %1120
        %v1122 = vmax.f32 %v916, %v1005
        %1123 = vmax.xlane.f32.xlu0 %v1122
        %v1124 = vpop.xlane.xlu0 %1123
        %v1125 = vmax.f32 %v919, %v1008
        %1126 = vmax.xlane.f32.xlu0 %v1125
        %v1127 = vpop.xlane.xlu0 %1126
        %v1128 = vmax.f32 %v921, %v1010
        %1129 = vmax.xlane.f32.xlu0 %v1128
        %v1130 = vpop.xlane.xlu0 %1129
        %v1131 = vmax.f32 %v924, %v1013
        %1132 = vmax.xlane.f32.xlu0 %v1131
        %v1133 = vpop.xlane.xlu0 %1132
        %v1134 = vmax.f32 %v926, %v1015
        %1135 = vmax.xlane.f32.xlu0 %v1134
        %v1136 = vpop.xlane.xlu0 %1135
        %v1137 = vmax.f32 %v929, %v1018
        %1138 = vmax.xlane.f32.xlu0 %v1137
        %v1139 = vpop.xlane.xlu0 %1138
        %v1140 = vmax.f32 %v931, %v1020
        %1141 = vmax.xlane.f32.xlu0 %v1140
        %v1142 = vpop.xlane.xlu0 %1141
        %v1143 = vmax.f32 %v934, %v1023
        %1144 = vmax.xlane.f32.xlu0 %v1143
        %v1145 = vpop.xlane.xlu0 %1144
        %v1146 = vmax.f32 %v936, %v1025
        %1147 = vmax.xlane.f32.xlu0 %v1146
        %v1148 = vpop.xlane.xlu0 %1147
        %v1149 = vmax.f32 %v939, %v1028
        %1150 = vmax.xlane.f32.xlu0 %v1149
        %v1151 = vpop.xlane.xlu0 %1150
        %v1152 = vmax.f32 %v941, %v1030
        %1153 = vmax.xlane.f32.xlu0 %v1152
        %v1154 = vpop.xlane.xlu0 %1153
        %v1155 = vmax.f32 %v944, %v1033
        %1156 = vmax.xlane.f32.xlu0 %v1155
        %v1157 = vpop.xlane.xlu0 %1156
        %v1158 = vmax.f32 %v946, %v1035
        %1159 = vmax.xlane.f32.xlu0 %v1158
        %v1160 = vpop.xlane.xlu0 %1159
        %v1161 = vmax.f32 %v949, %v1038
        %1162 = vmax.xlane.f32.xlu0 %v1161
        %v1163 = vpop.xlane.xlu0 %1162
        %v1164 = vmax.f32 %v951, %v1040
        %1165 = vmax.xlane.f32.xlu0 %v1164
        %v1166 = vpop.xlane.xlu0 %1165
        %v1167 = vmax.f32 %v954, %v1043
        %1168 = vmax.xlane.f32.xlu0 %v1167
        %v1169 = vpop.xlane.xlu0 %1168
        %v1170 = vmax.f32 %v956, %v1045
        %1171 = vmax.xlane.f32.xlu0 %v1170
        %v1172 = vpop.xlane.xlu0 %1171
        %v1173 = vmax.f32 %v959, %v1048
        %1174 = vmax.xlane.f32.xlu0 %v1173
        %v1175 = vpop.xlane.xlu0 %1174
        %v1176 = vmax.f32 %v961, %v1050
        %1177 = vmax.xlane.f32.xlu0 %v1176
        %v1178 = vpop.xlane.xlu0 %1177
        %v1179 = vmax.f32 %v964, %v1053
        %1180 = vmax.xlane.f32.xlu0 %v1179
        %v1181 = vpop.xlane.xlu0 %1180
        %v1182 = vmax.f32 %v966, %v1055
        %1183 = vmax.xlane.f32.xlu0 %v1182
        %v1184 = vpop.xlane.xlu0 %1183
        %v1185 = vmax.f32 %v1057, %v1091
        %v1186 = vmax.f32 %v1058, %v1094
        %v1187 = vmax.f32 %v1059, %v1097
        %v1188 = vmax.f32 %v1060, %v1100
        %v1189 = vmax.f32 %v1061, %v1103
        %v1190 = vmax.f32 %v1062, %v1106
        %v1191 = vmax.f32 %v1063, %v1109
        %v1192 = vmax.f32 %v1064, %v1112
        %v1193 = vmax.f32 %v1065, %v1115
        %v1194 = vmax.f32 %v1066, %v1118
        %v1195 = vmax.f32 %v1067, %v1121
        %v1196 = vmax.f32 %v1068, %v1124
        %v1197 = vmax.f32 %v1069, %v1127
        %v1198 = vmax.f32 %v1070, %v1130
        %v1199 = vmax.f32 %v1071, %v1133
        %v1200 = vmax.f32 %v1072, %v1136
        %v1201 = vmax.f32 %v1073, %v1139
        %v1202 = vmax.f32 %v1074, %v1142
        %v1203 = vmax.f32 %v1075, %v1145
        %v1204 = vmax.f32 %v1076, %v1148
        %v1205 = vmax.f32 %v1077, %v1151
        %v1206 = vmax.f32 %v1078, %v1154
        %v1207 = vmax.f32 %v1079, %v1157
        %v1208 = vmax.f32 %v1080, %v1160
        %v1209 = vmax.f32 %v1081, %v1163
        %v1210 = vmax.f32 %v1082, %v1166
        %v1211 = vmax.f32 %v1083, %v1169
        %v1212 = vmax.f32 %v1084, %v1172
        %v1213 = vmax.f32 %v1085, %v1175
        %v1214 = vmax.f32 %v1086, %v1178
        %v1215 = vmax.f32 %v1087, %v1181
        %v1216 = vmax.f32 %v1088, %v1184
        %v1217 = vsub.f32 %v1057, %v1185
        %v1218 = vsub.f32 %v1058, %v1186
        %v1219 = vsub.f32 %v1059, %v1187
        %v1220 = vsub.f32 %v1060, %v1188
        %v1221 = vsub.f32 %v1061, %v1189
        %v1222 = vsub.f32 %v1062, %v1190
        %v1223 = vsub.f32 %v1063, %v1191
        %v1224 = vsub.f32 %v1064, %v1192
        %v1225 = vsub.f32 %v1065, %v1193
        %v1226 = vsub.f32 %v1066, %v1194
        %v1227 = vsub.f32 %v1067, %v1195
        %v1228 = vsub.f32 %v1068, %v1196
        %v1229 = vsub.f32 %v1069, %v1197
        %v1230 = vsub.f32 %v1070, %v1198
        %v1231 = vsub.f32 %v1071, %v1199
        %v1232 = vsub.f32 %v1072, %v1200
        %v1233 = vsub.f32 %v1073, %v1201
        %v1234 = vsub.f32 %v1074, %v1202
        %v1235 = vsub.f32 %v1075, %v1203
        %v1236 = vsub.f32 %v1076, %v1204
        %v1237 = vsub.f32 %v1077, %v1205
        %v1238 = vsub.f32 %v1078, %v1206
        %v1239 = vsub.f32 %v1079, %v1207
        %v1240 = vsub.f32 %v1080, %v1208
        %v1241 = vsub.f32 %v1081, %v1209
        %v1242 = vsub.f32 %v1082, %v1210
        %v1243 = vsub.f32 %v1083, %v1211
        %v1244 = vsub.f32 %v1084, %v1212
        %v1245 = vsub.f32 %v1085, %v1213
        %v1246 = vsub.f32 %v1086, %v1214
        %v1247 = vsub.f32 %v1087, %v1215
        %v1248 = vsub.f32 %v1088, %v1216
        %v1249 = vmul.f32 %v1217, 1.442695
        %v1250 = vpow.pop %v1249
        %v1251 = vmul.f32 %v1218, 1.442695
        %v1252 = vpow.pop %v1251
        %v1253 = vmul.f32 %v1219, 1.442695
        %v1254 = vpow.pop %v1253
        %v1255 = vmul.f32 %v1220, 1.442695
        %v1256 = vpow.pop %v1255
        %v1257 = vmul.f32 %v1221, 1.442695
        %v1258 = vpow.pop %v1257
        %v1259 = vmul.f32 %v1222, 1.442695
        %v1260 = vpow.pop %v1259
        %v1261 = vmul.f32 %v1223, 1.442695
        %v1262 = vpow.pop %v1261
        %v1263 = vmul.f32 %v1224, 1.442695
        %v1264 = vpow.pop %v1263
        %v1265 = vmul.f32 %v1225, 1.442695
        %v1266 = vpow.pop %v1265
        %v1267 = vmul.f32 %v1226, 1.442695
        %v1268 = vpow.pop %v1267
        %v1269 = vmul.f32 %v1227, 1.442695
        %v1270 = vpow.pop %v1269
        %v1271 = vmul.f32 %v1228, 1.442695
        %v1272 = vpow.pop %v1271
        %v1273 = vmul.f32 %v1229, 1.442695
        %v1274 = vpow.pop %v1273
        %v1275 = vmul.f32 %v1230, 1.442695
        %v1276 = vpow.pop %v1275
        %v1277 = vmul.f32 %v1231, 1.442695
        %v1278 = vpow.pop %v1277
        %v1279 = vmul.f32 %v1232, 1.442695
        %v1280 = vpow.pop %v1279
        %v1281 = vmul.f32 %v1233, 1.442695
        %v1282 = vpow.pop %v1281
        %v1283 = vmul.f32 %v1234, 1.442695
        %v1284 = vpow.pop %v1283
        %v1285 = vmul.f32 %v1235, 1.442695
        %v1286 = vpow.pop %v1285
        %v1287 = vmul.f32 %v1236, 1.442695
        %v1288 = vpow.pop %v1287
        %v1289 = vmul.f32 %v1237, 1.442695
        %v1290 = vpow.pop %v1289
        %v1291 = vmul.f32 %v1238, 1.442695
        %v1292 = vpow.pop %v1291
        %v1293 = vmul.f32 %v1239, 1.442695
        %v1294 = vpow.pop %v1293
        %v1295 = vmul.f32 %v1240, 1.442695
        %v1296 = vpow.pop %v1295
        %v1297 = vmul.f32 %v1241, 1.442695
        %v1298 = vpow.pop %v1297
        %v1299 = vmul.f32 %v1242, 1.442695
        %v1300 = vpow.pop %v1299
        %v1301 = vmul.f32 %v1243, 1.442695
        %v1302 = vpow.pop %v1301
        %v1303 = vmul.f32 %v1244, 1.442695
        %v1304 = vpow.pop %v1303
        %v1305 = vmul.f32 %v1245, 1.442695
        %v1306 = vpow.pop %v1305
        %v1307 = vmul.f32 %v1246, 1.442695
        %v1308 = vpow.pop %v1307
        %v1309 = vmul.f32 %v1247, 1.442695
        %v1310 = vpow.pop %v1309
        %v1311 = vmul.f32 %v1248, 1.442695
        %v1312 = vpow.pop %v1311
        %1314 = vset.pattern.permute.xlu0 0
        %1315 = vperm.xlu0 %1314, %v1185
        %v1316 = vpop.permute.xlu0 %1315
        %1319 = vset.pattern.permute.xlu0 0
        %1320 = vperm.xlu0 %1319, %v1186
        %v1321 = vpop.permute.xlu0 %1320
        %1324 = vset.pattern.permute.xlu0 0
        %1325 = vperm.xlu0 %1324, %v1187
        %v1326 = vpop.permute.xlu0 %1325
        %1329 = vset.pattern.permute.xlu0 0
        %1330 = vperm.xlu0 %1329, %v1188
        %v1331 = vpop.permute.xlu0 %1330
        %1334 = vset.pattern.permute.xlu0 0
        %1335 = vperm.xlu0 %1334, %v1189
        %v1336 = vpop.permute.xlu0 %1335
        %1339 = vset.pattern.permute.xlu0 0
        %1340 = vperm.xlu0 %1339, %v1190
        %v1341 = vpop.permute.xlu0 %1340
        %1344 = vset.pattern.permute.xlu0 0
        %1345 = vperm.xlu0 %1344, %v1191
        %v1346 = vpop.permute.xlu0 %1345
        %1349 = vset.pattern.permute.xlu0 0
        %1350 = vperm.xlu0 %1349, %v1192
        %v1351 = vpop.permute.xlu0 %1350
        %1354 = vset.pattern.permute.xlu0 0
        %1355 = vperm.xlu0 %1354, %v1193
        %v1356 = vpop.permute.xlu0 %1355
        %1359 = vset.pattern.permute.xlu0 0
        %1360 = vperm.xlu0 %1359, %v1194
        %v1361 = vpop.permute.xlu0 %1360
        %1364 = vset.pattern.permute.xlu0 0
        %1365 = vperm.xlu0 %1364, %v1195
        %v1366 = vpop.permute.xlu0 %1365
        %1369 = vset.pattern.permute.xlu0 0
        %1370 = vperm.xlu0 %1369, %v1196
        %v1371 = vpop.permute.xlu0 %1370
        %1374 = vset.pattern.permute.xlu0 0
        %1375 = vperm.xlu0 %1374, %v1197
        %v1376 = vpop.permute.xlu0 %1375
        %1379 = vset.pattern.permute.xlu0 0
        %1380 = vperm.xlu0 %1379, %v1198
        %v1381 = vpop.permute.xlu0 %1380
        %1384 = vset.pattern.permute.xlu0 0
        %1385 = vperm.xlu0 %1384, %v1199
        %v1386 = vpop.permute.xlu0 %1385
        %1389 = vset.pattern.permute.xlu0 0
        %1390 = vperm.xlu0 %1389, %v1200
        %v1391 = vpop.permute.xlu0 %1390
        %1394 = vset.pattern.permute.xlu0 0
        %1395 = vperm.xlu0 %1394, %v1201
        %v1396 = vpop.permute.xlu0 %1395
        %1399 = vset.pattern.permute.xlu0 0
        %1400 = vperm.xlu0 %1399, %v1202
        %v1401 = vpop.permute.xlu0 %1400
        %1404 = vset.pattern.permute.xlu0 0
        %1405 = vperm.xlu0 %1404, %v1203
        %v1406 = vpop.permute.xlu0 %1405
        %1409 = vset.pattern.permute.xlu0 0
        %1410 = vperm.xlu0 %1409, %v1204
        %v1411 = vpop.permute.xlu0 %1410
        %1414 = vset.pattern.permute.xlu0 0
        %1415 = vperm.xlu0 %1414, %v1205
        %v1416 = vpop.permute.xlu0 %1415
        %1419 = vset.pattern.permute.xlu0 0
        %1420 = vperm.xlu0 %1419, %v1206
        %v1421 = vpop.permute.xlu0 %1420
        %1424 = vset.pattern.permute.xlu0 0
        %1425 = vperm.xlu0 %1424, %v1207
        %v1426 = vpop.permute.xlu0 %1425
        %1429 = vset.pattern.permute.xlu0 0
        %1430 = vperm.xlu0 %1429, %v1208
        %v1431 = vpop.permute.xlu0 %1430
        %1434 = vset.pattern.permute.xlu0 0
        %1435 = vperm.xlu0 %1434, %v1209
        %v1436 = vpop.permute.xlu0 %1435
        %1439 = vset.pattern.permute.xlu0 0
        %1440 = vperm.xlu0 %1439, %v1210
        %v1441 = vpop.permute.xlu0 %1440
        %1444 = vset.pattern.permute.xlu0 0
        %1445 = vperm.xlu0 %1444, %v1211
        %v1446 = vpop.permute.xlu0 %1445
        %1449 = vset.pattern.permute.xlu0 0
        %1450 = vperm.xlu0 %1449, %v1212
        %v1451 = vpop.permute.xlu0 %1450
        %1454 = vset.pattern.permute.xlu0 0
        %1455 = vperm.xlu0 %1454, %v1213
        %v1456 = vpop.permute.xlu0 %1455
        %1459 = vset.pattern.permute.xlu0 0
        %1460 = vperm.xlu0 %1459, %v1214
        %v1461 = vpop.permute.xlu0 %1460
        %1464 = vset.pattern.permute.xlu0 0
        %1465 = vperm.xlu0 %1464, %v1215
        %v1466 = vpop.permute.xlu0 %1465
        %1469 = vset.pattern.permute.xlu0 0
        %1470 = vperm.xlu0 %1469, %v1216
        %v1471 = vpop.permute.xlu0 %1470
        %v1473 = vsub.f32 %v889, %v1316
        %v1474 = vsub.f32 %v978, %v1316
        %v1475 = vsub.f32 %v891, %v1321
        %v1476 = vsub.f32 %v980, %v1321
        %v1477 = vsub.f32 %v894, %v1326
        %v1478 = vsub.f32 %v983, %v1326
        %v1479 = vsub.f32 %v896, %v1331
        %v1480 = vsub.f32 %v985, %v1331
        %v1481 = vsub.f32 %v899, %v1336
        %v1482 = vsub.f32 %v988, %v1336
        %v1483 = vsub.f32 %v901, %v1341
        %v1484 = vsub.f32 %v990, %v1341
        %v1485 = vsub.f32 %v904, %v1346
        %v1486 = vsub.f32 %v993, %v1346
        %v1487 = vsub.f32 %v906, %v1351
        %v1488 = vsub.f32 %v995, %v1351
        %v1489 = vsub.f32 %v909, %v1356
        %v1490 = vsub.f32 %v998, %v1356
        %v1491 = vsub.f32 %v911, %v1361
        %v1492 = vsub.f32 %v1000, %v1361
        %v1493 = vsub.f32 %v914, %v1366
        %v1494 = vsub.f32 %v1003, %v1366
        %v1495 = vsub.f32 %v916, %v1371
        %v1496 = vsub.f32 %v1005, %v1371
        %v1497 = vsub.f32 %v919, %v1376
        %v1498 = vsub.f32 %v1008, %v1376
        %v1499 = vsub.f32 %v921, %v1381
        %v1500 = vsub.f32 %v1010, %v1381
        %v1501 = vsub.f32 %v924, %v1386
        %v1502 = vsub.f32 %v1013, %v1386
        %v1503 = vsub.f32 %v926, %v1391
        %v1504 = vsub.f32 %v1015, %v1391
        %v1505 = vsub.f32 %v929, %v1396
        %v1506 = vsub.f32 %v1018, %v1396
        %v1507 = vsub.f32 %v931, %v1401
        %v1508 = vsub.f32 %v1020, %v1401
        %v1509 = vsub.f32 %v934, %v1406
        %v1510 = vsub.f32 %v1023, %v1406
        %v1511 = vsub.f32 %v936, %v1411
        %v1512 = vsub.f32 %v1025, %v1411
        %v1513 = vsub.f32 %v939, %v1416
        %v1514 = vsub.f32 %v1028, %v1416
        %v1515 = vsub.f32 %v941, %v1421
        %v1516 = vsub.f32 %v1030, %v1421
        %v1517 = vsub.f32 %v944, %v1426
        %v1518 = vsub.f32 %v1033, %v1426
        %v1519 = vsub.f32 %v946, %v1431
        %v1520 = vsub.f32 %v1035, %v1431
        %v1521 = vsub.f32 %v949, %v1436
        %v1522 = vsub.f32 %v1038, %v1436
        %v1523 = vsub.f32 %v951, %v1441
        %v1524 = vsub.f32 %v1040, %v1441
        %v1525 = vsub.f32 %v954, %v1446
        %v1526 = vsub.f32 %v1043, %v1446
        %v1527 = vsub.f32 %v956, %v1451
        %v1528 = vsub.f32 %v1045, %v1451
        %v1529 = vsub.f32 %v959, %v1456
        %v1530 = vsub.f32 %v1048, %v1456
        %v1531 = vsub.f32 %v961, %v1461
        %v1532 = vsub.f32 %v1050, %v1461
        %v1533 = vsub.f32 %v964, %v1466
        %v1534 = vsub.f32 %v1053, %v1466
        %v1535 = vsub.f32 %v966, %v1471
        %v1536 = vsub.f32 %v1055, %v1471
        %v1537 = vmul.f32 %v1473, 1.442695
        %v1538 = vpow.pop %v1537
        %v1539 = vmul.f32 %v1474, 1.442695
        %v1540 = vpow.pop %v1539
        %v1541 = vmul.f32 %v1475, 1.442695
        %v1542 = vpow.pop %v1541
        %v1543 = vmul.f32 %v1476, 1.442695
        %v1544 = vpow.pop %v1543
        %v1545 = vmul.f32 %v1477, 1.442695
        %v1546 = vpow.pop %v1545
        %v1547 = vmul.f32 %v1478, 1.442695
        %v1548 = vpow.pop %v1547
        %v1549 = vmul.f32 %v1479, 1.442695
        %v1550 = vpow.pop %v1549
        %v1551 = vmul.f32 %v1480, 1.442695
        %v1552 = vpow.pop %v1551
        %v1553 = vmul.f32 %v1481, 1.442695
        %v1554 = vpow.pop %v1553
        %v1555 = vmul.f32 %v1482, 1.442695
        %v1556 = vpow.pop %v1555
        %v1557 = vmul.f32 %v1483, 1.442695
        %v1558 = vpow.pop %v1557
        %v1559 = vmul.f32 %v1484, 1.442695
        %v1560 = vpow.pop %v1559
        %v1561 = vmul.f32 %v1485, 1.442695
        %v1562 = vpow.pop %v1561
        %v1563 = vmul.f32 %v1486, 1.442695
        %v1564 = vpow.pop %v1563
        %v1565 = vmul.f32 %v1487, 1.442695
        %v1566 = vpow.pop %v1565
        %v1567 = vmul.f32 %v1488, 1.442695
        %v1568 = vpow.pop %v1567
        %v1569 = vmul.f32 %v1489, 1.442695
        %v1570 = vpow.pop %v1569
        %v1571 = vmul.f32 %v1490, 1.442695
        %v1572 = vpow.pop %v1571
        %v1573 = vmul.f32 %v1491, 1.442695
        %v1574 = vpow.pop %v1573
        %v1575 = vmul.f32 %v1492, 1.442695
        %v1576 = vpow.pop %v1575
        %v1577 = vmul.f32 %v1493, 1.442695
        %v1578 = vpow.pop %v1577
        %v1579 = vmul.f32 %v1494, 1.442695
        %v1580 = vpow.pop %v1579
        %v1581 = vmul.f32 %v1495, 1.442695
        %v1582 = vpow.pop %v1581
        %v1583 = vmul.f32 %v1496, 1.442695
        %v1584 = vpow.pop %v1583
        %v1585 = vmul.f32 %v1497, 1.442695
        %v1586 = vpow.pop %v1585
        %v1587 = vmul.f32 %v1498, 1.442695
        %v1588 = vpow.pop %v1587
        %v1589 = vmul.f32 %v1499, 1.442695
        %v1590 = vpow.pop %v1589
        %v1591 = vmul.f32 %v1500, 1.442695
        %v1592 = vpow.pop %v1591
        %v1593 = vmul.f32 %v1501, 1.442695
        %v1594 = vpow.pop %v1593
        %v1595 = vmul.f32 %v1502, 1.442695
        %v1596 = vpow.pop %v1595
        %v1597 = vmul.f32 %v1503, 1.442695
        %v1598 = vpow.pop %v1597
        %v1599 = vmul.f32 %v1504, 1.442695
        %v1600 = vpow.pop %v1599
        %v1601 = vmul.f32 %v1505, 1.442695
        %v1602 = vpow.pop %v1601
        %v1603 = vmul.f32 %v1506, 1.442695
        %v1604 = vpow.pop %v1603
        %v1605 = vmul.f32 %v1507, 1.442695
        %v1606 = vpow.pop %v1605
        %v1607 = vmul.f32 %v1508, 1.442695
        %v1608 = vpow.pop %v1607
        %v1609 = vmul.f32 %v1509, 1.442695
        %v1610 = vpow.pop %v1609
        %v1611 = vmul.f32 %v1510, 1.442695
        %v1612 = vpow.pop %v1611
        %v1613 = vmul.f32 %v1511, 1.442695
        %v1614 = vpow.pop %v1613
        %v1615 = vmul.f32 %v1512, 1.442695
        %v1616 = vpow.pop %v1615
        %v1617 = vmul.f32 %v1513, 1.442695
        %v1618 = vpow.pop %v1617
        %v1619 = vmul.f32 %v1514, 1.442695
        %v1620 = vpow.pop %v1619
        %v1621 = vmul.f32 %v1515, 1.442695
        %v1622 = vpow.pop %v1621
        %v1623 = vmul.f32 %v1516, 1.442695
        %v1624 = vpow.pop %v1623
        %v1625 = vmul.f32 %v1517, 1.442695
        %v1626 = vpow.pop %v1625
        %v1627 = vmul.f32 %v1518, 1.442695
        %v1628 = vpow.pop %v1627
        %v1629 = vmul.f32 %v1519, 1.442695
        %v1630 = vpow.pop %v1629
        %v1631 = vmul.f32 %v1520, 1.442695
        %v1632 = vpow.pop %v1631
        %v1633 = vmul.f32 %v1521, 1.442695
        %v1634 = vpow.pop %v1633
        %v1635 = vmul.f32 %v1522, 1.442695
        %v1636 = vpow.pop %v1635
        %v1637 = vmul.f32 %v1523, 1.442695
        %v1638 = vpow.pop %v1637
        %v1639 = vmul.f32 %v1524, 1.442695
        %v1640 = vpow.pop %v1639
        %v1641 = vmul.f32 %v1525, 1.442695
        %v1642 = vpow.pop %v1641
        %v1643 = vmul.f32 %v1526, 1.442695
        %v1644 = vpow.pop %v1643
        %v1645 = vmul.f32 %v1527, 1.442695
        %v1646 = vpow.pop %v1645
        %v1647 = vmul.f32 %v1528, 1.442695
        %v1648 = vpow.pop %v1647
        %v1649 = vmul.f32 %v1529, 1.442695
        %v1650 = vpow.pop %v1649
        %v1651 = vmul.f32 %v1530, 1.442695
        %v1652 = vpow.pop %v1651
        %v1653 = vmul.f32 %v1531, 1.442695
        %v1654 = vpow.pop %v1653
        %v1655 = vmul.f32 %v1532, 1.442695
        %v1656 = vpow.pop %v1655
        %v1657 = vmul.f32 %v1533, 1.442695
        %v1658 = vpow.pop %v1657
        %v1659 = vmul.f32 %v1534, 1.442695
        %v1660 = vpow.pop %v1659
        %v1661 = vmul.f32 %v1535, 1.442695
        %v1662 = vpow.pop %v1661
        %v1663 = vmul.f32 %v1536, 1.442695
        %v1664 = vpow.pop %v1663
        %v1665 = vld [vmem:[#allocation5] sm:$0xff]
        %v1666 = vld [vmem:[#allocation5 + $0x8] sm:$0xff]
        %v1667 = vld [vmem:[#allocation5 + $0x10] sm:$0xff]
        %v1668 = vld [vmem:[#allocation5 + $0x18] sm:$0xff]
        %v1669 = vld [vmem:[#allocation5 + $0x20] sm:$0xff]
        %v1670 = vld [vmem:[#allocation5 + $0x28] sm:$0xff]
        %v1671 = vld [vmem:[#allocation5 + $0x30] sm:$0xff]
        %v1672 = vld [vmem:[#allocation5 + $0x38] sm:$0xff]
        %v1673 = vld [vmem:[#allocation5 + $0x40] sm:$0xff]
        %v1674 = vld [vmem:[#allocation5 + $0x48] sm:$0xff]
        %v1675 = vld [vmem:[#allocation5 + $0x50] sm:$0xff]
        %v1676 = vld [vmem:[#allocation5 + $0x58] sm:$0xff]
        %v1677 = vld [vmem:[#allocation5 + $0x60] sm:$0xff]
        %v1678 = vld [vmem:[#allocation5 + $0x68] sm:$0xff]
        %v1679 = vld [vmem:[#allocation5 + $0x70] sm:$0xff]
        %v1680 = vld [vmem:[#allocation5 + $0x78] sm:$0xff]
        %v1681 = vld [vmem:[#allocation5 + $0x80] sm:$0xff]
        %v1682 = vld [vmem:[#allocation5 + $0x88] sm:$0xff]
        %v1683 = vld [vmem:[#allocation5 + $0x90] sm:$0xff]
        %v1684 = vld [vmem:[#allocation5 + $0x98] sm:$0xff]
        %v1685 = vld [vmem:[#allocation5 + $0xa0] sm:$0xff]
        %v1686 = vld [vmem:[#allocation5 + $0xa8] sm:$0xff]
        %v1687 = vld [vmem:[#allocation5 + $0xb0] sm:$0xff]
        %v1688 = vld [vmem:[#allocation5 + $0xb8] sm:$0xff]
        %v1689 = vld [vmem:[#allocation5 + $0xc0] sm:$0xff]
        %v1690 = vld [vmem:[#allocation5 + $0xc8] sm:$0xff]
        %v1691 = vld [vmem:[#allocation5 + $0xd0] sm:$0xff]
        %v1692 = vld [vmem:[#allocation5 + $0xd8] sm:$0xff]
        %v1693 = vld [vmem:[#allocation5 + $0xe0] sm:$0xff]
        %v1694 = vld [vmem:[#allocation5 + $0xe8] sm:$0xff]
        %v1695 = vld [vmem:[#allocation5 + $0xf0] sm:$0xff]
        %v1696 = vld [vmem:[#allocation5 + $0xf8] sm:$0xff]
        %v1697 = vmul.f32 %v1250, %v1665
        %v1698 = vmul.f32 %v1252, %v1666
        %v1699 = vmul.f32 %v1254, %v1667
        %v1700 = vmul.f32 %v1256, %v1668
        %v1701 = vmul.f32 %v1258, %v1669
        %v1702 = vmul.f32 %v1260, %v1670
        %v1703 = vmul.f32 %v1262, %v1671
        %v1704 = vmul.f32 %v1264, %v1672
        %v1705 = vmul.f32 %v1266, %v1673
        %v1706 = vmul.f32 %v1268, %v1674
        %v1707 = vmul.f32 %v1270, %v1675
        %v1708 = vmul.f32 %v1272, %v1676
        %v1709 = vmul.f32 %v1274, %v1677
        %v1710 = vmul.f32 %v1276, %v1678
        %v1711 = vmul.f32 %v1278, %v1679
        %v1712 = vmul.f32 %v1280, %v1680
        %v1713 = vmul.f32 %v1282, %v1681
        %v1714 = vmul.f32 %v1284, %v1682
        %v1715 = vmul.f32 %v1286, %v1683
        %v1716 = vmul.f32 %v1288, %v1684
        %v1717 = vmul.f32 %v1290, %v1685
        %v1718 = vmul.f32 %v1292, %v1686
        %v1719 = vmul.f32 %v1294, %v1687
        %v1720 = vmul.f32 %v1296, %v1688
        %v1721 = vmul.f32 %v1298, %v1689
        %v1722 = vmul.f32 %v1300, %v1690
        %v1723 = vmul.f32 %v1302, %v1691
        %v1724 = vmul.f32 %v1304, %v1692
        %v1725 = vmul.f32 %v1306, %v1693
        %v1726 = vmul.f32 %v1308, %v1694
        %v1727 = vmul.f32 %v1310, %v1695
        %v1728 = vmul.f32 %v1312, %v1696
        %v1729 = vadd.f32 %v1538, %v1540
        %1730 = vadd.xlane.f32.xlu0 %v1729
        %v1731 = vpop.xlane.xlu0 %1730
        %v1732 = vadd.f32 %v1542, %v1544
        %1733 = vadd.xlane.f32.xlu0 %v1732
        %v1734 = vpop.xlane.xlu0 %1733
        %v1735 = vadd.f32 %v1546, %v1548
        %1736 = vadd.xlane.f32.xlu0 %v1735
        %v1737 = vpop.xlane.xlu0 %1736
        %v1738 = vadd.f32 %v1550, %v1552
        %1739 = vadd.xlane.f32.xlu0 %v1738
        %v1740 = vpop.xlane.xlu0 %1739
        %v1741 = vadd.f32 %v1554, %v1556
        %1742 = vadd.xlane.f32.xlu0 %v1741
        %v1743 = vpop.xlane.xlu0 %1742
        %v1744 = vadd.f32 %v1558, %v1560
        %1745 = vadd.xlane.f32.xlu0 %v1744
        %v1746 = vpop.xlane.xlu0 %1745
        %v1747 = vadd.f32 %v1562, %v1564
        %1748 = vadd.xlane.f32.xlu0 %v1747
        %v1749 = vpop.xlane.xlu0 %1748
        %v1750 = vadd.f32 %v1566, %v1568
        %1751 = vadd.xlane.f32.xlu0 %v1750
        %v1752 = vpop.xlane.xlu0 %1751
        %v1753 = vadd.f32 %v1570, %v1572
        %1754 = vadd.xlane.f32.xlu0 %v1753
        %v1755 = vpop.xlane.xlu0 %1754
        %v1756 = vadd.f32 %v1574, %v1576
        %1757 = vadd.xlane.f32.xlu0 %v1756
        %v1758 = vpop.xlane.xlu0 %1757
        %v1759 = vadd.f32 %v1578, %v1580
        %1760 = vadd.xlane.f32.xlu0 %v1759
        %v1761 = vpop.xlane.xlu0 %1760
        %v1762 = vadd.f32 %v1582, %v1584
        %1763 = vadd.xlane.f32.xlu0 %v1762
        %v1764 = vpop.xlane.xlu0 %1763
        %v1765 = vadd.f32 %v1586, %v1588
        %1766 = vadd.xlane.f32.xlu0 %v1765
        %v1767 = vpop.xlane.xlu0 %1766
        %v1768 = vadd.f32 %v1590, %v1592
        %1769 = vadd.xlane.f32.xlu0 %v1768
        %v1770 = vpop.xlane.xlu0 %1769
        %v1771 = vadd.f32 %v1594, %v1596
        %1772 = vadd.xlane.f32.xlu0 %v1771
        %v1773 = vpop.xlane.xlu0 %1772
        %v1774 = vadd.f32 %v1598, %v1600
        %1775 = vadd.xlane.f32.xlu0 %v1774
        %v1776 = vpop.xlane.xlu0 %1775
        %v1777 = vadd.f32 %v1602, %v1604
        %1778 = vadd.xlane.f32.xlu0 %v1777
        %v1779 = vpop.xlane.xlu0 %1778
        %v1780 = vadd.f32 %v1606, %v1608
        %1781 = vadd.xlane.f32.xlu0 %v1780
        %v1782 = vpop.xlane.xlu0 %1781
        %v1783 = vadd.f32 %v1610, %v1612
        %1784 = vadd.xlane.f32.xlu0 %v1783
        %v1785 = vpop.xlane.xlu0 %1784
        %v1786 = vadd.f32 %v1614, %v1616
        %1787 = vadd.xlane.f32.xlu0 %v1786
        %v1788 = vpop.xlane.xlu0 %1787
        %v1789 = vadd.f32 %v1618, %v1620
        %1790 = vadd.xlane.f32.xlu0 %v1789
        %v1791 = vpop.xlane.xlu0 %1790
        %v1792 = vadd.f32 %v1622, %v1624
        %1793 = vadd.xlane.f32.xlu0 %v1792
        %v1794 = vpop.xlane.xlu0 %1793
        %v1795 = vadd.f32 %v1626, %v1628
        %1796 = vadd.xlane.f32.xlu0 %v1795
        %v1797 = vpop.xlane.xlu0 %1796
        %v1798 = vadd.f32 %v1630, %v1632
        %1799 = vadd.xlane.f32.xlu0 %v1798
        %v1800 = vpop.xlane.xlu0 %1799
        %v1801 = vadd.f32 %v1634, %v1636
        %1802 = vadd.xlane.f32.xlu0 %v1801
        %v1803 = vpop.xlane.xlu0 %1802
        %v1804 = vadd.f32 %v1638, %v1640
        %1805 = vadd.xlane.f32.xlu0 %v1804
        %v1806 = vpop.xlane.xlu0 %1805
        %v1807 = vadd.f32 %v1642, %v1644
        %1808 = vadd.xlane.f32.xlu0 %v1807
        %v1809 = vpop.xlane.xlu0 %1808
        %v1810 = vadd.f32 %v1646, %v1648
        %1811 = vadd.xlane.f32.xlu0 %v1810
        %v1812 = vpop.xlane.xlu0 %1811
        %v1813 = vadd.f32 %v1650, %v1652
        %1814 = vadd.xlane.f32.xlu0 %v1813
        %v1815 = vpop.xlane.xlu0 %1814
        %v1816 = vadd.f32 %v1654, %v1656
        %1817 = vadd.xlane.f32.xlu0 %v1816
        %v1818 = vpop.xlane.xlu0 %1817
        %v1819 = vadd.f32 %v1658, %v1660
        %1820 = vadd.xlane.f32.xlu0 %v1819
        %v1821 = vpop.xlane.xlu0 %1820
        %v1822 = vadd.f32 %v1662, %v1664
        %1823 = vadd.xlane.f32.xlu0 %v1822
        %v1824 = vpop.xlane.xlu0 %1823
        %v1825 = vadd.f32 %v1697, %v1731
        %v1826 = vadd.f32 %v1698, %v1734
        %v1827 = vadd.f32 %v1699, %v1737
        %v1828 = vadd.f32 %v1700, %v1740
        %v1829 = vadd.f32 %v1701, %v1743
        %v1830 = vadd.f32 %v1702, %v1746
        %v1831 = vadd.f32 %v1703, %v1749
        %v1832 = vadd.f32 %v1704, %v1752
        %v1833 = vadd.f32 %v1705, %v1755
        %v1834 = vadd.f32 %v1706, %v1758
        %v1835 = vadd.f32 %v1707, %v1761
        %v1836 = vadd.f32 %v1708, %v1764
        %v1837 = vadd.f32 %v1709, %v1767
        %v1838 = vadd.f32 %v1710, %v1770
        %v1839 = vadd.f32 %v1711, %v1773
        %v1840 = vadd.f32 %v1712, %v1776
        %v1841 = vadd.f32 %v1713, %v1779
        %v1842 = vadd.f32 %v1714, %v1782
        %v1843 = vadd.f32 %v1715, %v1785
        %v1844 = vadd.f32 %v1716, %v1788
        %v1845 = vadd.f32 %v1717, %v1791
        %v1846 = vadd.f32 %v1718, %v1794
        %v1847 = vadd.f32 %v1719, %v1797
        %v1848 = vadd.f32 %v1720, %v1800
        %v1849 = vadd.f32 %v1721, %v1803
        %v1850 = vadd.f32 %v1722, %v1806
        %v1851 = vadd.f32 %v1723, %v1809
        %v1852 = vadd.f32 %v1724, %v1812
        %v1853 = vadd.f32 %v1725, %v1815
        %v1854 = vadd.f32 %v1726, %v1818
        %v1855 = vadd.f32 %v1727, %v1821
        %v1856 = vadd.f32 %v1728, %v1824
        %vm1857 = vcmask 7168
        %1858 = vst.msk [vmem:[#allocation5] sm:$0xff] %vm1857, %v1825
        %1859 = vst.msk [vmem:[#allocation5 + $0x8] sm:$0xff] %vm1857, %v1826
        %1860 = vst.msk [vmem:[#allocation5 + $0x10] sm:$0xff] %vm1857, %v1827
        %1861 = vst.msk [vmem:[#allocation5 + $0x18] sm:$0xff] %vm1857, %v1828
        %1862 = vst.msk [vmem:[#allocation5 + $0x20] sm:$0xff] %vm1857, %v1829
        %1863 = vst.msk [vmem:[#allocation5 + $0x28] sm:$0xff] %vm1857, %v1830
        %1864 = vst.msk [vmem:[#allocation5 + $0x30] sm:$0xff] %vm1857, %v1831
        %1865 = vst.msk [vmem:[#allocation5 + $0x38] sm:$0xff] %vm1857, %v1832
        %1866 = vst.msk [vmem:[#allocation5 + $0x40] sm:$0xff] %vm1857, %v1833
        %1867 = vst.msk [vmem:[#allocation5 + $0x48] sm:$0xff] %vm1857, %v1834
        %1868 = vst.msk [vmem:[#allocation5 + $0x50] sm:$0xff] %vm1857, %v1835
        %1869 = vst.msk [vmem:[#allocation5 + $0x58] sm:$0xff] %vm1857, %v1836
        %1870 = vst.msk [vmem:[#allocation5 + $0x60] sm:$0xff] %vm1857, %v1837
        %1871 = vst.msk [vmem:[#allocation5 + $0x68] sm:$0xff] %vm1857, %v1838
        %1872 = vst.msk [vmem:[#allocation5 + $0x70] sm:$0xff] %vm1857, %v1839
        %1873 = vst.msk [vmem:[#allocation5 + $0x78] sm:$0xff] %vm1857, %v1840
        %1874 = vst.msk [vmem:[#allocation5 + $0x80] sm:$0xff] %vm1857, %v1841
        %1875 = vst.msk [vmem:[#allocation5 + $0x88] sm:$0xff] %vm1857, %v1842
        %1876 = vst.msk [vmem:[#allocation5 + $0x90] sm:$0xff] %vm1857, %v1843
        %1877 = vst.msk [vmem:[#allocation5 + $0x98] sm:$0xff] %vm1857, %v1844
        %1878 = vst.msk [vmem:[#allocation5 + $0xa0] sm:$0xff] %vm1857, %v1845
        %1879 = vst.msk [vmem:[#allocation5 + $0xa8] sm:$0xff] %vm1857, %v1846
        %1880 = vst.msk [vmem:[#allocation5 + $0xb0] sm:$0xff] %vm1857, %v1847
        %1881 = vst.msk [vmem:[#allocation5 + $0xb8] sm:$0xff] %vm1857, %v1848
        %1882 = vst.msk [vmem:[#allocation5 + $0xc0] sm:$0xff] %vm1857, %v1849
        %1883 = vst.msk [vmem:[#allocation5 + $0xc8] sm:$0xff] %vm1857, %v1850
        %1884 = vst.msk [vmem:[#allocation5 + $0xd0] sm:$0xff] %vm1857, %v1851
        %1885 = vst.msk [vmem:[#allocation5 + $0xd8] sm:$0xff] %vm1857, %v1852
        %1886 = vst.msk [vmem:[#allocation5 + $0xe0] sm:$0xff] %vm1857, %v1853
        %1887 = vst.msk [vmem:[#allocation5 + $0xe8] sm:$0xff] %vm1857, %v1854
        %1888 = vst.msk [vmem:[#allocation5 + $0xf0] sm:$0xff] %vm1857, %v1855
        %1889 = vst.msk [vmem:[#allocation5 + $0xf8] sm:$0xff] %vm1857, %v1856
        %v1890 = vpack.c.bf16 %v1542, %v1538
        %v1891 = vpack.c.bf16 %v1544, %v1540
        %v1892 = vpack.c.bf16 %v1550, %v1546
        %v1893 = vpack.c.bf16 %v1552, %v1548
        %v1894 = vpack.c.bf16 %v1558, %v1554
        %v1895 = vpack.c.bf16 %v1560, %v1556
        %v1896 = vpack.c.bf16 %v1566, %v1562
        %v1897 = vpack.c.bf16 %v1568, %v1564
        %v1898 = vpack.c.bf16 %v1574, %v1570
        %v1899 = vpack.c.bf16 %v1576, %v1572
        %v1900 = vpack.c.bf16 %v1582, %v1578
        %v1901 = vpack.c.bf16 %v1584, %v1580
        %v1902 = vpack.c.bf16 %v1590, %v1586
        %v1903 = vpack.c.bf16 %v1592, %v1588
        %v1904 = vpack.c.bf16 %v1598, %v1594
        %v1905 = vpack.c.bf16 %v1600, %v1596
        %v1906 = vpack.c.bf16 %v1606, %v1602
        %v1907 = vpack.c.bf16 %v1608, %v1604
        %v1908 = vpack.c.bf16 %v1614, %v1610
        %v1909 = vpack.c.bf16 %v1616, %v1612
        %v1910 = vpack.c.bf16 %v1622, %v1618
        %v1911 = vpack.c.bf16 %v1624, %v1620
        %v1912 = vpack.c.bf16 %v1630, %v1626
        %v1913 = vpack.c.bf16 %v1632, %v1628
        %v1914 = vpack.c.bf16 %v1638, %v1634
        %v1915 = vpack.c.bf16 %v1640, %v1636
        %v1916 = vpack.c.bf16 %v1646, %v1642
        %v1917 = vpack.c.bf16 %v1648, %v1644
        %v1918 = vpack.c.bf16 %v1654, %v1650
        %v1919 = vpack.c.bf16 %v1656, %v1652
        %v1920 = vpack.c.bf16 %v1662, %v1658
        %v1921 = vpack.c.bf16 %v1664, %v1660
        %v1923 = vunpack.c.l.b16 %v705
        %v1924 = vunpack.c.h.b16 %v705
        %v1925 = vpack.c.b16 %v1923, %v1923
        %v1926 = vpack.c.b16 %v1924, %v1924
        %1929 = vmatpush.bf16.xpose.msra.mxu0 0
        %1930 = vmatpush.bf16.xpose.msra.mxu0 0
        %1931 = vmatpush.bf16.xpose.msra.mxu0 0
        %1932 = vmatpush.bf16.xpose.msra.mxu0 0
        %1933 = vmatpush.bf16.xpose.msra.mxu0 0
        %1934 = vmatpush.bf16.xpose.msra.mxu0 0
        %1935 = vmatpush.bf16.xpose.msra.mxu0 0
        %1936 = vmatpush.bf16.xpose.msra.mxu0 %v1925
        %1937 = vmatmul.bf16.gmra.mxu0 %v1890
        %v1938 = vpop.f32.mrf.mxu0
        %v1939 = vadd.f32 0.0, %v1938
        %v1940 = vpop.f32.mrf.mxu0
        %v1941 = vadd.f32 0.0, %v1940
        %1942 = vmatmul.bf16.gmra.mxu0 %v1892
        %v1943 = vpop.f32.mrf.mxu0
        %v1944 = vadd.f32 0.0, %v1943
        %v1945 = vpop.f32.mrf.mxu0
        %v1946 = vadd.f32 0.0, %v1945
        %1947 = vmatmul.bf16.gmra.mxu0 %v1894
        %v1948 = vpop.f32.mrf.mxu0
        %v1949 = vadd.f32 0.0, %v1948
        %v1950 = vpop.f32.mrf.mxu0
        %v1951 = vadd.f32 0.0, %v1950
        %1952 = vmatmul.bf16.gmra.mxu0 %v1896
        %v1953 = vpop.f32.mrf.mxu0
        %v1954 = vadd.f32 0.0, %v1953
        %v1955 = vpop.f32.mrf.mxu0
        %v1956 = vadd.f32 0.0, %v1955
        %1957 = vmatmul.bf16.gmra.mxu0 %v1898
        %v1958 = vpop.f32.mrf.mxu0
        %v1959 = vadd.f32 0.0, %v1958
        %v1960 = vpop.f32.mrf.mxu0
        %v1961 = vadd.f32 0.0, %v1960
        %1962 = vmatmul.bf16.gmra.mxu0 %v1900
        %v1963 = vpop.f32.mrf.mxu0
        %v1964 = vadd.f32 0.0, %v1963
        %v1965 = vpop.f32.mrf.mxu0
        %v1966 = vadd.f32 0.0, %v1965
        %1967 = vmatmul.bf16.gmra.mxu0 %v1902
        %v1968 = vpop.f32.mrf.mxu0
        %v1969 = vadd.f32 0.0, %v1968
        %v1970 = vpop.f32.mrf.mxu0
        %v1971 = vadd.f32 0.0, %v1970
        %1972 = vmatmul.bf16.gmra.mxu0 %v1904
        %v1973 = vpop.f32.mrf.mxu0
        %v1974 = vadd.f32 0.0, %v1973
        %v1975 = vpop.f32.mrf.mxu0
        %v1976 = vadd.f32 0.0, %v1975
        %1977 = vmatmul.bf16.gmra.mxu0 %v1906
        %v1978 = vpop.f32.mrf.mxu0
        %v1979 = vadd.f32 0.0, %v1978
        %v1980 = vpop.f32.mrf.mxu0
        %v1981 = vadd.f32 0.0, %v1980
        %1982 = vmatmul.bf16.gmra.mxu0 %v1908
        %v1983 = vpop.f32.mrf.mxu0
        %v1984 = vadd.f32 0.0, %v1983
        %v1985 = vpop.f32.mrf.mxu0
        %v1986 = vadd.f32 0.0, %v1985
        %1987 = vmatmul.bf16.gmra.mxu0 %v1910
        %v1988 = vpop.f32.mrf.mxu0
        %v1989 = vadd.f32 0.0, %v1988
        %v1990 = vpop.f32.mrf.mxu0
        %v1991 = vadd.f32 0.0, %v1990
        %1992 = vmatmul.bf16.gmra.mxu0 %v1912
        %v1993 = vpop.f32.mrf.mxu0
        %v1994 = vadd.f32 0.0, %v1993
        %v1995 = vpop.f32.mrf.mxu0
        %v1996 = vadd.f32 0.0, %v1995
        %1997 = vmatmul.bf16.gmra.mxu0 %v1914
        %v1998 = vpop.f32.mrf.mxu0
        %v1999 = vadd.f32 0.0, %v1998
        %v2000 = vpop.f32.mrf.mxu0
        %v2001 = vadd.f32 0.0, %v2000
        %2002 = vmatmul.bf16.gmra.mxu0 %v1916
        %v2003 = vpop.f32.mrf.mxu0
        %v2004 = vadd.f32 0.0, %v2003
        %v2005 = vpop.f32.mrf.mxu0
        %v2006 = vadd.f32 0.0, %v2005
        %2007 = vmatmul.bf16.gmra.mxu0 %v1918
        %v2008 = vpop.f32.mrf.mxu0
        %v2009 = vadd.f32 0.0, %v2008
        %v2010 = vpop.f32.mrf.mxu0
        %v2011 = vadd.f32 0.0, %v2010
        %2012 = vmatmul.bf16.gmra.mxu0 %v1920
        %v2013 = vpop.f32.mrf.mxu0
        %v2014 = vadd.f32 0.0, %v2013
        %v2015 = vpop.f32.mrf.mxu0
        %v2016 = vadd.f32 0.0, %v2015
        %2017 = vdwg.mxu0
        %2018 = vmatpush.bf16.xpose.msra.mxu0 0
        %2019 = vmatpush.bf16.xpose.msra.mxu0 0
        %2020 = vmatpush.bf16.xpose.msra.mxu0 0
        %2021 = vmatpush.bf16.xpose.msra.mxu0 0
        %2022 = vmatpush.bf16.xpose.msra.mxu0 0
        %2023 = vmatpush.bf16.xpose.msra.mxu0 0
        %2024 = vmatpush.bf16.xpose.msra.mxu0 0
        %2025 = vmatpush.bf16.xpose.msra.mxu0 %v1926
        %2026 = vmatmul.bf16.gmra.mxu0 %v1891
        %v2027 = vpop.f32.mrf.mxu0
        %v2028 = vadd.f32 %v1939, %v2027
        %v2029 = vpop.f32.mrf.mxu0
        %v2030 = vadd.f32 %v1941, %v2029
        %2031 = vmatmul.bf16.gmra.mxu0 %v1893
        %v2032 = vpop.f32.mrf.mxu0
        %v2033 = vadd.f32 %v1944, %v2032
        %v2034 = vpop.f32.mrf.mxu0
        %v2035 = vadd.f32 %v1946, %v2034
        %2036 = vmatmul.bf16.gmra.mxu0 %v1895
        %v2037 = vpop.f32.mrf.mxu0
        %v2038 = vadd.f32 %v1949, %v2037
        %v2039 = vpop.f32.mrf.mxu0
        %v2040 = vadd.f32 %v1951, %v2039
        %2041 = vmatmul.bf16.gmra.mxu0 %v1897
        %v2042 = vpop.f32.mrf.mxu0
        %v2043 = vadd.f32 %v1954, %v2042
        %v2044 = vpop.f32.mrf.mxu0
        %v2045 = vadd.f32 %v1956, %v2044
        %2046 = vmatmul.bf16.gmra.mxu0 %v1899
        %v2047 = vpop.f32.mrf.mxu0
        %v2048 = vadd.f32 %v1959, %v2047
        %v2049 = vpop.f32.mrf.mxu0
        %v2050 = vadd.f32 %v1961, %v2049
        %2051 = vmatmul.bf16.gmra.mxu0 %v1901
        %v2052 = vpop.f32.mrf.mxu0
        %v2053 = vadd.f32 %v1964, %v2052
        %v2054 = vpop.f32.mrf.mxu0
        %v2055 = vadd.f32 %v1966, %v2054
        %2056 = vmatmul.bf16.gmra.mxu0 %v1903
        %v2057 = vpop.f32.mrf.mxu0
        %v2058 = vadd.f32 %v1969, %v2057
        %v2059 = vpop.f32.mrf.mxu0
        %v2060 = vadd.f32 %v1971, %v2059
        %2061 = vmatmul.bf16.gmra.mxu0 %v1905
        %v2062 = vpop.f32.mrf.mxu0
        %v2063 = vadd.f32 %v1974, %v2062
        %v2064 = vpop.f32.mrf.mxu0
        %v2065 = vadd.f32 %v1976, %v2064
        %2066 = vmatmul.bf16.gmra.mxu0 %v1907
        %v2067 = vpop.f32.mrf.mxu0
        %v2068 = vadd.f32 %v1979, %v2067
        %v2069 = vpop.f32.mrf.mxu0
        %v2070 = vadd.f32 %v1981, %v2069
        %2071 = vmatmul.bf16.gmra.mxu0 %v1909
        %v2072 = vpop.f32.mrf.mxu0
        %v2073 = vadd.f32 %v1984, %v2072
        %v2074 = vpop.f32.mrf.mxu0
        %v2075 = vadd.f32 %v1986, %v2074
        %2076 = vmatmul.bf16.gmra.mxu0 %v1911
        %v2077 = vpop.f32.mrf.mxu0
        %v2078 = vadd.f32 %v1989, %v2077
        %v2079 = vpop.f32.mrf.mxu0
        %v2080 = vadd.f32 %v1991, %v2079
        %2081 = vmatmul.bf16.gmra.mxu0 %v1913
        %v2082 = vpop.f32.mrf.mxu0
        %v2083 = vadd.f32 %v1994, %v2082
        %v2084 = vpop.f32.mrf.mxu0
        %v2085 = vadd.f32 %v1996, %v2084
        %2086 = vmatmul.bf16.gmra.mxu0 %v1915
        %v2087 = vpop.f32.mrf.mxu0
        %v2088 = vadd.f32 %v1999, %v2087
        %v2089 = vpop.f32.mrf.mxu0
        %v2090 = vadd.f32 %v2001, %v2089
        %2091 = vmatmul.bf16.gmra.mxu0 %v1917
        %v2092 = vpop.f32.mrf.mxu0
        %v2093 = vadd.f32 %v2004, %v2092
        %v2094 = vpop.f32.mrf.mxu0
        %v2095 = vadd.f32 %v2006, %v2094
        %2096 = vmatmul.bf16.gmra.mxu0 %v1919
        %v2097 = vpop.f32.mrf.mxu0
        %v2098 = vadd.f32 %v2009, %v2097
        %v2099 = vpop.f32.mrf.mxu0
        %v2100 = vadd.f32 %v2011, %v2099
        %2101 = vmatmul.bf16.gmra.mxu0 %v1921
        %v2102 = vpop.f32.mrf.mxu0
        %v2103 = vadd.f32 %v2014, %v2102
        %v2104 = vpop.f32.mrf.mxu0
        %v2105 = vadd.f32 %v2016, %v2104
        %2106 = vdwg.mxu0
        %v2107 = vld [vmem:[#allocation6] sm:$0xff]
        %v2108 = vld [vmem:[#allocation6 + $0x8] sm:$0xff]
        %v2109 = vld [vmem:[#allocation6 + $0x10] sm:$0xff]
        %v2110 = vld [vmem:[#allocation6 + $0x18] sm:$0xff]
        %v2111 = vld [vmem:[#allocation6 + $0x20] sm:$0xff]
        %v2112 = vld [vmem:[#allocation6 + $0x28] sm:$0xff]
        %v2113 = vld [vmem:[#allocation6 + $0x30] sm:$0xff]
        %v2114 = vld [vmem:[#allocation6 + $0x38] sm:$0xff]
        %v2115 = vld [vmem:[#allocation6 + $0x40] sm:$0xff]
        %v2116 = vld [vmem:[#allocation6 + $0x48] sm:$0xff]
        %v2117 = vld [vmem:[#allocation6 + $0x50] sm:$0xff]
        %v2118 = vld [vmem:[#allocation6 + $0x58] sm:$0xff]
        %v2119 = vld [vmem:[#allocation6 + $0x60] sm:$0xff]
        %v2120 = vld [vmem:[#allocation6 + $0x68] sm:$0xff]
        %v2121 = vld [vmem:[#allocation6 + $0x70] sm:$0xff]
        %v2122 = vld [vmem:[#allocation6 + $0x78] sm:$0xff]
        %v2123 = vld [vmem:[#allocation6 + $0x80] sm:$0xff]
        %v2124 = vld [vmem:[#allocation6 + $0x88] sm:$0xff]
        %v2125 = vld [vmem:[#allocation6 + $0x90] sm:$0xff]
        %v2126 = vld [vmem:[#allocation6 + $0x98] sm:$0xff]
        %v2127 = vld [vmem:[#allocation6 + $0xa0] sm:$0xff]
        %v2128 = vld [vmem:[#allocation6 + $0xa8] sm:$0xff]
        %v2129 = vld [vmem:[#allocation6 + $0xb0] sm:$0xff]
        %v2130 = vld [vmem:[#allocation6 + $0xb8] sm:$0xff]
        %v2131 = vld [vmem:[#allocation6 + $0xc0] sm:$0xff]
        %v2132 = vld [vmem:[#allocation6 + $0xc8] sm:$0xff]
        %v2133 = vld [vmem:[#allocation6 + $0xd0] sm:$0xff]
        %v2134 = vld [vmem:[#allocation6 + $0xd8] sm:$0xff]
        %v2135 = vld [vmem:[#allocation6 + $0xe0] sm:$0xff]
        %v2136 = vld [vmem:[#allocation6 + $0xe8] sm:$0xff]
        %v2137 = vld [vmem:[#allocation6 + $0xf0] sm:$0xff]
        %v2138 = vld [vmem:[#allocation6 + $0xf8] sm:$0xff]
        %2140 = vset.pattern.permute.xlu0 0
        %2141 = vperm.xlu0 %2140, %v1250
        %v2142 = vpop.permute.xlu0 %2141
        %2145 = vset.pattern.permute.xlu0 0
        %2146 = vperm.xlu0 %2145, %v1252
        %v2147 = vpop.permute.xlu0 %2146
        %2150 = vset.pattern.permute.xlu0 0
        %2151 = vperm.xlu0 %2150, %v1254
        %v2152 = vpop.permute.xlu0 %2151
        %2155 = vset.pattern.permute.xlu0 0
        %2156 = vperm.xlu0 %2155, %v1256
        %v2157 = vpop.permute.xlu0 %2156
        %2160 = vset.pattern.permute.xlu0 0
        %2161 = vperm.xlu0 %2160, %v1258
        %v2162 = vpop.permute.xlu0 %2161
        %2165 = vset.pattern.permute.xlu0 0
        %2166 = vperm.xlu0 %2165, %v1260
        %v2167 = vpop.permute.xlu0 %2166
        %2170 = vset.pattern.permute.xlu0 0
        %2171 = vperm.xlu0 %2170, %v1262
        %v2172 = vpop.permute.xlu0 %2171
        %2175 = vset.pattern.permute.xlu0 0
        %2176 = vperm.xlu0 %2175, %v1264
        %v2177 = vpop.permute.xlu0 %2176
        %2180 = vset.pattern.permute.xlu0 0
        %2181 = vperm.xlu0 %2180, %v1266
        %v2182 = vpop.permute.xlu0 %2181
        %2185 = vset.pattern.permute.xlu0 0
        %2186 = vperm.xlu0 %2185, %v1268
        %v2187 = vpop.permute.xlu0 %2186
        %2190 = vset.pattern.permute.xlu0 0
        %2191 = vperm.xlu0 %2190, %v1270
        %v2192 = vpop.permute.xlu0 %2191
        %2195 = vset.pattern.permute.xlu0 0
        %2196 = vperm.xlu0 %2195, %v1272
        %v2197 = vpop.permute.xlu0 %2196
        %2200 = vset.pattern.permute.xlu0 0
        %2201 = vperm.xlu0 %2200, %v1274
        %v2202 = vpop.permute.xlu0 %2201
        %2205 = vset.pattern.permute.xlu0 0
        %2206 = vperm.xlu0 %2205, %v1276
        %v2207 = vpop.permute.xlu0 %2206
        %2210 = vset.pattern.permute.xlu0 0
        %2211 = vperm.xlu0 %2210, %v1278
        %v2212 = vpop.permute.xlu0 %2211
        %2215 = vset.pattern.permute.xlu0 0
        %2216 = vperm.xlu0 %2215, %v1280
        %v2217 = vpop.permute.xlu0 %2216
        %2220 = vset.pattern.permute.xlu0 0
        %2221 = vperm.xlu0 %2220, %v1282
        %v2222 = vpop.permute.xlu0 %2221
        %2225 = vset.pattern.permute.xlu0 0
        %2226 = vperm.xlu0 %2225, %v1284
        %v2227 = vpop.permute.xlu0 %2226
        %2230 = vset.pattern.permute.xlu0 0
        %2231 = vperm.xlu0 %2230, %v1286
        %v2232 = vpop.permute.xlu0 %2231
        %2235 = vset.pattern.permute.xlu0 0
        %2236 = vperm.xlu0 %2235, %v1288
        %v2237 = vpop.permute.xlu0 %2236
        %2240 = vset.pattern.permute.xlu0 0
        %2241 = vperm.xlu0 %2240, %v1290
        %v2242 = vpop.permute.xlu0 %2241
        %2245 = vset.pattern.permute.xlu0 0
        %2246 = vperm.xlu0 %2245, %v1292
        %v2247 = vpop.permute.xlu0 %2246
        %2250 = vset.pattern.permute.xlu0 0
        %2251 = vperm.xlu0 %2250, %v1294
        %v2252 = vpop.permute.xlu0 %2251
        %2255 = vset.pattern.permute.xlu0 0
        %2256 = vperm.xlu0 %2255, %v1296
        %v2257 = vpop.permute.xlu0 %2256
        %2260 = vset.pattern.permute.xlu0 0
        %2261 = vperm.xlu0 %2260, %v1298
        %v2262 = vpop.permute.xlu0 %2261
        %2265 = vset.pattern.permute.xlu0 0
        %2266 = vperm.xlu0 %2265, %v1300
        %v2267 = vpop.permute.xlu0 %2266
        %2270 = vset.pattern.permute.xlu0 0
        %2271 = vperm.xlu0 %2270, %v1302
        %v2272 = vpop.permute.xlu0 %2271
        %2275 = vset.pattern.permute.xlu0 0
        %2276 = vperm.xlu0 %2275, %v1304
        %v2277 = vpop.permute.xlu0 %2276
        %2280 = vset.pattern.permute.xlu0 0
        %2281 = vperm.xlu0 %2280, %v1306
        %v2282 = vpop.permute.xlu0 %2281
        %2285 = vset.pattern.permute.xlu0 0
        %2286 = vperm.xlu0 %2285, %v1308
        %v2287 = vpop.permute.xlu0 %2286
        %2290 = vset.pattern.permute.xlu0 0
        %2291 = vperm.xlu0 %2290, %v1310
        %v2292 = vpop.permute.xlu0 %2291
        %2295 = vset.pattern.permute.xlu0 0
        %2296 = vperm.xlu0 %2295, %v1312
        %v2297 = vpop.permute.xlu0 %2296
        %v2299 = vmul.f32 %v2142, %v2107
        %v2300 = vmul.f32 %v2147, %v2108
        %v2301 = vmul.f32 %v2152, %v2109
        %v2302 = vmul.f32 %v2157, %v2110
        %v2303 = vmul.f32 %v2162, %v2111
        %v2304 = vmul.f32 %v2167, %v2112
        %v2305 = vmul.f32 %v2172, %v2113
        %v2306 = vmul.f32 %v2177, %v2114
        %v2307 = vmul.f32 %v2182, %v2115
        %v2308 = vmul.f32 %v2187, %v2116
        %v2309 = vmul.f32 %v2192, %v2117
        %v2310 = vmul.f32 %v2197, %v2118
        %v2311 = vmul.f32 %v2202, %v2119
        %v2312 = vmul.f32 %v2207, %v2120
        %v2313 = vmul.f32 %v2212, %v2121
        %v2314 = vmul.f32 %v2217, %v2122
        %v2315 = vmul.f32 %v2222, %v2123
        %v2316 = vmul.f32 %v2227, %v2124
        %v2317 = vmul.f32 %v2232, %v2125
        %v2318 = vmul.f32 %v2237, %v2126
        %v2319 = vmul.f32 %v2242, %v2127
        %v2320 = vmul.f32 %v2247, %v2128
        %v2321 = vmul.f32 %v2252, %v2129
        %v2322 = vmul.f32 %v2257, %v2130
        %v2323 = vmul.f32 %v2262, %v2131
        %v2324 = vmul.f32 %v2267, %v2132
        %v2325 = vmul.f32 %v2272, %v2133
        %v2326 = vmul.f32 %v2277, %v2134
        %v2327 = vmul.f32 %v2282, %v2135
        %v2328 = vmul.f32 %v2287, %v2136
        %v2329 = vmul.f32 %v2292, %v2137
        %v2330 = vmul.f32 %v2297, %v2138
        %v2331 = vadd.f32 %v2299, %v2028
        %v2332 = vadd.f32 %v2300, %v2030
        %v2333 = vadd.f32 %v2301, %v2033
        %v2334 = vadd.f32 %v2302, %v2035
        %v2335 = vadd.f32 %v2303, %v2038
        %v2336 = vadd.f32 %v2304, %v2040
        %v2337 = vadd.f32 %v2305, %v2043
        %v2338 = vadd.f32 %v2306, %v2045
        %v2339 = vadd.f32 %v2307, %v2048
        %v2340 = vadd.f32 %v2308, %v2050
        %v2341 = vadd.f32 %v2309, %v2053
        %v2342 = vadd.f32 %v2310, %v2055
        %v2343 = vadd.f32 %v2311, %v2058
        %v2344 = vadd.f32 %v2312, %v2060
        %v2345 = vadd.f32 %v2313, %v2063
        %v2346 = vadd.f32 %v2314, %v2065
        %v2347 = vadd.f32 %v2315, %v2068
        %v2348 = vadd.f32 %v2316, %v2070
        %v2349 = vadd.f32 %v2317, %v2073
        %v2350 = vadd.f32 %v2318, %v2075
        %v2351 = vadd.f32 %v2319, %v2078
        %v2352 = vadd.f32 %v2320, %v2080
        %v2353 = vadd.f32 %v2321, %v2083
        %v2354 = vadd.f32 %v2322, %v2085
        %v2355 = vadd.f32 %v2323, %v2088
        %v2356 = vadd.f32 %v2324, %v2090
        %v2357 = vadd.f32 %v2325, %v2093
        %v2358 = vadd.f32 %v2326, %v2095
        %v2359 = vadd.f32 %v2327, %v2098
        %v2360 = vadd.f32 %v2328, %v2100
        %v2361 = vadd.f32 %v2329, %v2103
        %v2362 = vadd.f32 %v2330, %v2105
        %2363 = vst.msk [vmem:[#allocation6] sm:$0xff] %vm823, %v2331
        %2364 = vst.msk [vmem:[#allocation6 + $0x8] sm:$0xff] %vm823, %v2332
        %2365 = vst.msk [vmem:[#allocation6 + $0x10] sm:$0xff] %vm823, %v2333
        %2366 = vst.msk [vmem:[#allocation6 + $0x18] sm:$0xff] %vm823, %v2334
        %2367 = vst.msk [vmem:[#allocation6 + $0x20] sm:$0xff] %vm823, %v2335
        %2368 = vst.msk [vmem:[#allocation6 + $0x28] sm:$0xff] %vm823, %v2336
        %2369 = vst.msk [vmem:[#allocation6 + $0x30] sm:$0xff] %vm823, %v2337
        %2370 = vst.msk [vmem:[#allocation6 + $0x38] sm:$0xff] %vm823, %v2338
        %2371 = vst.msk [vmem:[#allocation6 + $0x40] sm:$0xff] %vm823, %v2339
        %2372 = vst.msk [vmem:[#allocation6 + $0x48] sm:$0xff] %vm823, %v2340
        %2373 = vst.msk [vmem:[#allocation6 + $0x50] sm:$0xff] %vm823, %v2341
        %2374 = vst.msk [vmem:[#allocation6 + $0x58] sm:$0xff] %vm823, %v2342
        %2375 = vst.msk [vmem:[#allocation6 + $0x60] sm:$0xff] %vm823, %v2343
        %2376 = vst.msk [vmem:[#allocation6 + $0x68] sm:$0xff] %vm823, %v2344
        %2377 = vst.msk [vmem:[#allocation6 + $0x70] sm:$0xff] %vm823, %v2345
        %2378 = vst.msk [vmem:[#allocation6 + $0x78] sm:$0xff] %vm823, %v2346
        %2379 = vst.msk [vmem:[#allocation6 + $0x80] sm:$0xff] %vm823, %v2347
        %2380 = vst.msk [vmem:[#allocation6 + $0x88] sm:$0xff] %vm823, %v2348
        %2381 = vst.msk [vmem:[#allocation6 + $0x90] sm:$0xff] %vm823, %v2349
        %2382 = vst.msk [vmem:[#allocation6 + $0x98] sm:$0xff] %vm823, %v2350
        %2383 = vst.msk [vmem:[#allocation6 + $0xa0] sm:$0xff] %vm823, %v2351
        %2384 = vst.msk [vmem:[#allocation6 + $0xa8] sm:$0xff] %vm823, %v2352
        %2385 = vst.msk [vmem:[#allocation6 + $0xb0] sm:$0xff] %vm823, %v2353
        %2386 = vst.msk [vmem:[#allocation6 + $0xb8] sm:$0xff] %vm823, %v2354
        %2387 = vst.msk [vmem:[#allocation6 + $0xc0] sm:$0xff] %vm823, %v2355
        %2388 = vst.msk [vmem:[#allocation6 + $0xc8] sm:$0xff] %vm823, %v2356
        %2389 = vst.msk [vmem:[#allocation6 + $0xd0] sm:$0xff] %vm823, %v2357
        %2390 = vst.msk [vmem:[#allocation6 + $0xd8] sm:$0xff] %vm823, %v2358
        %2391 = vst.msk [vmem:[#allocation6 + $0xe0] sm:$0xff] %vm823, %v2359
        %2392 = vst.msk [vmem:[#allocation6 + $0xe8] sm:$0xff] %vm823, %v2360
        %2393 = vst.msk [vmem:[#allocation6 + $0xf0] sm:$0xff] %vm823, %v2361
        %2394 = vst.msk [vmem:[#allocation6 + $0xf8] sm:$0xff] %vm823, %v2362
        %2395 = vst.msk [vmem:[#allocation4] sm:$0xff] %vm1857, %v1185
        %2396 = vst.msk [vmem:[#allocation4 + $0x8] sm:$0xff] %vm1857, %v1186
        %2397 = vst.msk [vmem:[#allocation4 + $0x10] sm:$0xff] %vm1857, %v1187
        %2398 = vst.msk [vmem:[#allocation4 + $0x18] sm:$0xff] %vm1857, %v1188
        %2399 = vst.msk [vmem:[#allocation4 + $0x20] sm:$0xff] %vm1857, %v1189
        %2400 = vst.msk [vmem:[#allocation4 + $0x28] sm:$0xff] %vm1857, %v1190
        %2401 = vst.msk [vmem:[#allocation4 + $0x30] sm:$0xff] %vm1857, %v1191
        %2402 = vst.msk [vmem:[#allocation4 + $0x38] sm:$0xff] %vm1857, %v1192
        %2403 = vst.msk [vmem:[#allocation4 + $0x40] sm:$0xff] %vm1857, %v1193
        %2404 = vst.msk [vmem:[#allocation4 + $0x48] sm:$0xff] %vm1857, %v1194
        %2405 = vst.msk [vmem:[#allocation4 + $0x50] sm:$0xff] %vm1857, %v1195
        %2406 = vst.msk [vmem:[#allocation4 + $0x58] sm:$0xff] %vm1857, %v1196
        %2407 = vst.msk [vmem:[#allocation4 + $0x60] sm:$0xff] %vm1857, %v1197
        %2408 = vst.msk [vmem:[#allocation4 + $0x68] sm:$0xff] %vm1857, %v1198
        %2409 = vst.msk [vmem:[#allocation4 + $0x70] sm:$0xff] %vm1857, %v1199
        %2410 = vst.msk [vmem:[#allocation4 + $0x78] sm:$0xff] %vm1857, %v1200
        %2411 = vst.msk [vmem:[#allocation4 + $0x80] sm:$0xff] %vm1857, %v1201
        %2412 = vst.msk [vmem:[#allocation4 + $0x88] sm:$0xff] %vm1857, %v1202
        %2413 = vst.msk [vmem:[#allocation4 + $0x90] sm:$0xff] %vm1857, %v1203
        %2414 = vst.msk [vmem:[#allocation4 + $0x98] sm:$0xff] %vm1857, %v1204
        %2415 = vst.msk [vmem:[#allocation4 + $0xa0] sm:$0xff] %vm1857, %v1205
        %2416 = vst.msk [vmem:[#allocation4 + $0xa8] sm:$0xff] %vm1857, %v1206
        %2417 = vst.msk [vmem:[#allocation4 + $0xb0] sm:$0xff] %vm1857, %v1207
        %2418 = vst.msk [vmem:[#allocation4 + $0xb8] sm:$0xff] %vm1857, %v1208
        %2419 = vst.msk [vmem:[#allocation4 + $0xc0] sm:$0xff] %vm1857, %v1209
        %2420 = vst.msk [vmem:[#allocation4 + $0xc8] sm:$0xff] %vm1857, %v1210
        %2421 = vst.msk [vmem:[#allocation4 + $0xd0] sm:$0xff] %vm1857, %v1211
        %2422 = vst.msk [vmem:[#allocation4 + $0xd8] sm:$0xff] %vm1857, %v1212
        %2423 = vst.msk [vmem:[#allocation4 + $0xe0] sm:$0xff] %vm1857, %v1213
        %2424 = vst.msk [vmem:[#allocation4 + $0xe8] sm:$0xff] %vm1857, %v1214
        %2425 = vst.msk [vmem:[#allocation4 + $0xf0] sm:$0xff] %vm1857, %v1215
        %2426 = vst.msk [vmem:[#allocation4 + $0xf8] sm:$0xff] %vm1857, %v1216
        // Predicated region
        $region53: #{tpu_custom_call.1} parent=43 // pred_check
          %p2427 = pneg %p339
        $region54: #{tpu_custom_call.1} parent=43 // pred_check_branch
          %2429 = sbr.rel (%p2427) target = $region56
        $region55: #{tpu_custom_call.1} parent=43 // pred_region
          %v2430 = vld [vmem:[#allocation6] sm:$0xff]
          %v2431 = vld [vmem:[#allocation6 + $0x8] sm:$0xff]
          %v2432 = vld [vmem:[#allocation6 + $0x10] sm:$0xff]
          %v2433 = vld [vmem:[#allocation6 + $0x18] sm:$0xff]
          %v2434 = vld [vmem:[#allocation6 + $0x20] sm:$0xff]
          %v2435 = vld [vmem:[#allocation6 + $0x28] sm:$0xff]
          %v2436 = vld [vmem:[#allocation6 + $0x30] sm:$0xff]
          %v2437 = vld [vmem:[#allocation6 + $0x38] sm:$0xff]
          %v2438 = vld [vmem:[#allocation6 + $0x40] sm:$0xff]
          %v2439 = vld [vmem:[#allocation6 + $0x48] sm:$0xff]
          %v2440 = vld [vmem:[#allocation6 + $0x50] sm:$0xff]
          %v2441 = vld [vmem:[#allocation6 + $0x58] sm:$0xff]
          %v2442 = vld [vmem:[#allocation6 + $0x60] sm:$0xff]
          %v2443 = vld [vmem:[#allocation6 + $0x68] sm:$0xff]
          %v2444 = vld [vmem:[#allocation6 + $0x70] sm:$0xff]
          %v2445 = vld [vmem:[#allocation6 + $0x78] sm:$0xff]
          %v2446 = vld [vmem:[#allocation6 + $0x80] sm:$0xff]
          %v2447 = vld [vmem:[#allocation6 + $0x88] sm:$0xff]
          %v2448 = vld [vmem:[#allocation6 + $0x90] sm:$0xff]
          %v2449 = vld [vmem:[#allocation6 + $0x98] sm:$0xff]
          %v2450 = vld [vmem:[#allocation6 + $0xa0] sm:$0xff]
          %v2451 = vld [vmem:[#allocation6 + $0xa8] sm:$0xff]
          %v2452 = vld [vmem:[#allocation6 + $0xb0] sm:$0xff]
          %v2453 = vld [vmem:[#allocation6 + $0xb8] sm:$0xff]
          %v2454 = vld [vmem:[#allocation6 + $0xc0] sm:$0xff]
          %v2455 = vld [vmem:[#allocation6 + $0xc8] sm:$0xff]
          %v2456 = vld [vmem:[#allocation6 + $0xd0] sm:$0xff]
          %v2457 = vld [vmem:[#allocation6 + $0xd8] sm:$0xff]
          %v2458 = vld [vmem:[#allocation6 + $0xe0] sm:$0xff]
          %v2459 = vld [vmem:[#allocation6 + $0xe8] sm:$0xff]
          %v2460 = vld [vmem:[#allocation6 + $0xf0] sm:$0xff]
          %v2461 = vld [vmem:[#allocation6 + $0xf8] sm:$0xff]
          %v2462 = vld [vmem:[#allocation5] sm:$0xff]
          %v2463 = vld [vmem:[#allocation5 + $0x8] sm:$0xff]
          %v2464 = vld [vmem:[#allocation5 + $0x10] sm:$0xff]
          %v2465 = vld [vmem:[#allocation5 + $0x18] sm:$0xff]
          %v2466 = vld [vmem:[#allocation5 + $0x20] sm:$0xff]
          %v2467 = vld [vmem:[#allocation5 + $0x28] sm:$0xff]
          %v2468 = vld [vmem:[#allocation5 + $0x30] sm:$0xff]
          %v2469 = vld [vmem:[#allocation5 + $0x38] sm:$0xff]
          %v2470 = vld [vmem:[#allocation5 + $0x40] sm:$0xff]
          %v2471 = vld [vmem:[#allocation5 + $0x48] sm:$0xff]
          %v2472 = vld [vmem:[#allocation5 + $0x50] sm:$0xff]
          %v2473 = vld [vmem:[#allocation5 + $0x58] sm:$0xff]
          %v2474 = vld [vmem:[#allocation5 + $0x60] sm:$0xff]
          %v2475 = vld [vmem:[#allocation5 + $0x68] sm:$0xff]
          %v2476 = vld [vmem:[#allocation5 + $0x70] sm:$0xff]
          %v2477 = vld [vmem:[#allocation5 + $0x78] sm:$0xff]
          %v2478 = vld [vmem:[#allocation5 + $0x80] sm:$0xff]
          %v2479 = vld [vmem:[#allocation5 + $0x88] sm:$0xff]
          %v2480 = vld [vmem:[#allocation5 + $0x90] sm:$0xff]
          %v2481 = vld [vmem:[#allocation5 + $0x98] sm:$0xff]
          %v2482 = vld [vmem:[#allocation5 + $0xa0] sm:$0xff]
          %v2483 = vld [vmem:[#allocation5 + $0xa8] sm:$0xff]
          %v2484 = vld [vmem:[#allocation5 + $0xb0] sm:$0xff]
          %v2485 = vld [vmem:[#allocation5 + $0xb8] sm:$0xff]
          %v2486 = vld [vmem:[#allocation5 + $0xc0] sm:$0xff]
          %v2487 = vld [vmem:[#allocation5 + $0xc8] sm:$0xff]
          %v2488 = vld [vmem:[#allocation5 + $0xd0] sm:$0xff]
          %v2489 = vld [vmem:[#allocation5 + $0xd8] sm:$0xff]
          %v2490 = vld [vmem:[#allocation5 + $0xe0] sm:$0xff]
          %v2491 = vld [vmem:[#allocation5 + $0xe8] sm:$0xff]
          %v2492 = vld [vmem:[#allocation5 + $0xf0] sm:$0xff]
          %v2493 = vld [vmem:[#allocation5 + $0xf8] sm:$0xff]
          %v2494 = vrcp.pop %v2462
          %v2495 = vrcp.pop %v2463
          %v2496 = vrcp.pop %v2464
          %v2497 = vrcp.pop %v2465
          %v2498 = vrcp.pop %v2466
          %v2499 = vrcp.pop %v2467
          %v2500 = vrcp.pop %v2468
          %v2501 = vrcp.pop %v2469
          %v2502 = vrcp.pop %v2470
          %v2503 = vrcp.pop %v2471
          %v2504 = vrcp.pop %v2472
          %v2505 = vrcp.pop %v2473
          %v2506 = vrcp.pop %v2474
          %v2507 = vrcp.pop %v2475
          %v2508 = vrcp.pop %v2476
          %v2509 = vrcp.pop %v2477
          %v2510 = vrcp.pop %v2478
          %v2511 = vrcp.pop %v2479
          %v2512 = vrcp.pop %v2480
          %v2513 = vrcp.pop %v2481
          %v2514 = vrcp.pop %v2482
          %v2515 = vrcp.pop %v2483
          %v2516 = vrcp.pop %v2484
          %v2517 = vrcp.pop %v2485
          %v2518 = vrcp.pop %v2486
          %v2519 = vrcp.pop %v2487
          %v2520 = vrcp.pop %v2488
          %v2521 = vrcp.pop %v2489
          %v2522 = vrcp.pop %v2490
          %v2523 = vrcp.pop %v2491
          %v2524 = vrcp.pop %v2492
          %v2525 = vrcp.pop %v2493
          %2527 = vset.pattern.permute.xlu0 0
          %2528 = vperm.xlu0 %2527, %v2494
          %v2529 = vpop.permute.xlu0 %2528
          %2532 = vset.pattern.permute.xlu0 0
          %2533 = vperm.xlu0 %2532, %v2495
          %v2534 = vpop.permute.xlu0 %2533
          %2537 = vset.pattern.permute.xlu0 0
          %2538 = vperm.xlu0 %2537, %v2496
          %v2539 = vpop.permute.xlu0 %2538
          %2542 = vset.pattern.permute.xlu0 0
          %2543 = vperm.xlu0 %2542, %v2497
          %v2544 = vpop.permute.xlu0 %2543
          %2547 = vset.pattern.permute.xlu0 0
          %2548 = vperm.xlu0 %2547, %v2498
          %v2549 = vpop.permute.xlu0 %2548
          %2552 = vset.pattern.permute.xlu0 0
          %2553 = vperm.xlu0 %2552, %v2499
          %v2554 = vpop.permute.xlu0 %2553
          %2557 = vset.pattern.permute.xlu0 0
          %2558 = vperm.xlu0 %2557, %v2500
          %v2559 = vpop.permute.xlu0 %2558
          %2562 = vset.pattern.permute.xlu0 0
          %2563 = vperm.xlu0 %2562, %v2501
          %v2564 = vpop.permute.xlu0 %2563
          %2567 = vset.pattern.permute.xlu0 0
          %2568 = vperm.xlu0 %2567, %v2502
          %v2569 = vpop.permute.xlu0 %2568
          %2572 = vset.pattern.permute.xlu0 0
          %2573 = vperm.xlu0 %2572, %v2503
          %v2574 = vpop.permute.xlu0 %2573
          %2577 = vset.pattern.permute.xlu0 0
          %2578 = vperm.xlu0 %2577, %v2504
          %v2579 = vpop.permute.xlu0 %2578
          %2582 = vset.pattern.permute.xlu0 0
          %2583 = vperm.xlu0 %2582, %v2505
          %v2584 = vpop.permute.xlu0 %2583
          %2587 = vset.pattern.permute.xlu0 0
          %2588 = vperm.xlu0 %2587, %v2506
          %v2589 = vpop.permute.xlu0 %2588
          %2592 = vset.pattern.permute.xlu0 0
          %2593 = vperm.xlu0 %2592, %v2507
          %v2594 = vpop.permute.xlu0 %2593
          %2597 = vset.pattern.permute.xlu0 0
          %2598 = vperm.xlu0 %2597, %v2508
          %v2599 = vpop.permute.xlu0 %2598
          %2602 = vset.pattern.permute.xlu0 0
          %2603 = vperm.xlu0 %2602, %v2509
          %v2604 = vpop.permute.xlu0 %2603
          %2607 = vset.pattern.permute.xlu0 0
          %2608 = vperm.xlu0 %2607, %v2510
          %v2609 = vpop.permute.xlu0 %2608
          %2612 = vset.pattern.permute.xlu0 0
          %2613 = vperm.xlu0 %2612, %v2511
          %v2614 = vpop.permute.xlu0 %2613
          %2617 = vset.pattern.permute.xlu0 0
          %2618 = vperm.xlu0 %2617, %v2512
          %v2619 = vpop.permute.xlu0 %2618
          %2622 = vset.pattern.permute.xlu0 0
          %2623 = vperm.xlu0 %2622, %v2513
          %v2624 = vpop.permute.xlu0 %2623
          %2627 = vset.pattern.permute.xlu0 0
          %2628 = vperm.xlu0 %2627, %v2514
          %v2629 = vpop.permute.xlu0 %2628
          %2632 = vset.pattern.permute.xlu0 0
          %2633 = vperm.xlu0 %2632, %v2515
          %v2634 = vpop.permute.xlu0 %2633
          %2637 = vset.pattern.permute.xlu0 0
          %2638 = vperm.xlu0 %2637, %v2516
          %v2639 = vpop.permute.xlu0 %2638
          %2642 = vset.pattern.permute.xlu0 0
          %2643 = vperm.xlu0 %2642, %v2517
          %v2644 = vpop.permute.xlu0 %2643
          %2647 = vset.pattern.permute.xlu0 0
          %2648 = vperm.xlu0 %2647, %v2518
          %v2649 = vpop.permute.xlu0 %2648
          %2652 = vset.pattern.permute.xlu0 0
          %2653 = vperm.xlu0 %2652, %v2519
          %v2654 = vpop.permute.xlu0 %2653
          %2657 = vset.pattern.permute.xlu0 0
          %2658 = vperm.xlu0 %2657, %v2520
          %v2659 = vpop.permute.xlu0 %2658
          %2662 = vset.pattern.permute.xlu0 0
          %2663 = vperm.xlu0 %2662, %v2521
          %v2664 = vpop.permute.xlu0 %2663
          %2667 = vset.pattern.permute.xlu0 0
          %2668 = vperm.xlu0 %2667, %v2522
          %v2669 = vpop.permute.xlu0 %2668
          %2672 = vset.pattern.permute.xlu0 0
          %2673 = vperm.xlu0 %2672, %v2523
          %v2674 = vpop.permute.xlu0 %2673
          %2677 = vset.pattern.permute.xlu0 0
          %2678 = vperm.xlu0 %2677, %v2524
          %v2679 = vpop.permute.xlu0 %2678
          %2682 = vset.pattern.permute.xlu0 0
          %2683 = vperm.xlu0 %2682, %v2525
          %v2684 = vpop.permute.xlu0 %2683
          %v2686 = vmul.f32 %v2430, %v2529
          %v2687 = vmul.f32 %v2431, %v2534
          %v2688 = vmul.f32 %v2432, %v2539
          %v2689 = vmul.f32 %v2433, %v2544
          %v2690 = vmul.f32 %v2434, %v2549
          %v2691 = vmul.f32 %v2435, %v2554
          %v2692 = vmul.f32 %v2436, %v2559
          %v2693 = vmul.f32 %v2437, %v2564
          %v2694 = vmul.f32 %v2438, %v2569
          %v2695 = vmul.f32 %v2439, %v2574
          %v2696 = vmul.f32 %v2440, %v2579
          %v2697 = vmul.f32 %v2441, %v2584
          %v2698 = vmul.f32 %v2442, %v2589
          %v2699 = vmul.f32 %v2443, %v2594
          %v2700 = vmul.f32 %v2444, %v2599
          %v2701 = vmul.f32 %v2445, %v2604
          %v2702 = vmul.f32 %v2446, %v2609
          %v2703 = vmul.f32 %v2447, %v2614
          %v2704 = vmul.f32 %v2448, %v2619
          %v2705 = vmul.f32 %v2449, %v2624
          %v2706 = vmul.f32 %v2450, %v2629
          %v2707 = vmul.f32 %v2451, %v2634
          %v2708 = vmul.f32 %v2452, %v2639
          %v2709 = vmul.f32 %v2453, %v2644
          %v2710 = vmul.f32 %v2454, %v2649
          %v2711 = vmul.f32 %v2455, %v2654
          %v2712 = vmul.f32 %v2456, %v2659
          %v2713 = vmul.f32 %v2457, %v2664
          %v2714 = vmul.f32 %v2458, %v2669
          %v2715 = vmul.f32 %v2459, %v2674
          %v2716 = vmul.f32 %v2460, %v2679
          %v2717 = vmul.f32 %v2461, %v2684
          %v2718 = vld [vmem:[%s4] sm:$0xf]
          %v2719 = vld [vmem:[%s5] sm:$0xf]
          %2721 = vset.pattern.permute.xlu0 0
          %2722 = vperm.xlu0 %2721, %v2719
          %v2723 = vpop.permute.xlu0 %2722
          %v2726 = vsel %vm823, %v2718, 0
          %v2729 = vsel %vm823, %v2686, 0
          %v2732 = vsel %vm823, %v2687, 0
          %v2735 = vsel %vm823, %v2688, 0
          %v2738 = vsel %vm823, %v2689, 0
          %v2741 = vsel %vm823, %v2690, 0
          %v2744 = vsel %vm823, %v2691, 0
          %v2747 = vsel %vm823, %v2692, 0
          %v2750 = vsel %vm823, %v2693, 0
          %v2753 = vsel %vm823, %v2694, 0
          %v2756 = vsel %vm823, %v2695, 0
          %v2759 = vsel %vm823, %v2696, 0
          %v2762 = vsel %vm823, %v2697, 0
          %v2765 = vsel %vm823, %v2698, 0
          %v2768 = vsel %vm823, %v2699, 0
          %v2771 = vsel %vm823, %v2700, 0
          %v2774 = vsel %vm823, %v2701, 0
          %v2777 = vsel %vm823, %v2702, 0
          %v2780 = vsel %vm823, %v2703, 0
          %v2783 = vsel %vm823, %v2704, 0
          %v2786 = vsel %vm823, %v2705, 0
          %v2789 = vsel %vm823, %v2706, 0
          %v2792 = vsel %vm823, %v2707, 0
          %v2795 = vsel %vm823, %v2708, 0
          %v2798 = vsel %vm823, %v2709, 0
          %v2801 = vsel %vm823, %v2710, 0
          %v2804 = vsel %vm823, %v2711, 0
          %v2807 = vsel %vm823, %v2712, 0
          %v2810 = vsel %vm823, %v2713, 0
          %v2813 = vsel %vm823, %v2714, 0
          %v2816 = vsel %vm823, %v2715, 0
          %v2819 = vsel %vm823, %v2716, 0
          %v2822 = vsel %vm823, %v2717, 0
          %2824 = vmatpush.xpose.msra.mxu0 %v2774
          %2825 = vmatpush.xpose.msra.mxu0 %v2771
          %2826 = vmatpush.xpose.msra.mxu0 %v2768
          %2827 = vmatpush.xpose.msra.mxu0 %v2765
          %2828 = vmatpush.xpose.msra.mxu0 %v2762
          %2829 = vmatpush.xpose.msra.mxu0 %v2759
          %2830 = vmatpush.xpose.msra.mxu0 %v2756
          %2831 = vmatpush.xpose.msra.mxu0 %v2753
          %2832 = vmatpush.xpose.msra.mxu0 %v2750
          %2833 = vmatpush.xpose.msra.mxu0 %v2747
          %2834 = vmatpush.xpose.msra.mxu0 %v2744
          %2835 = vmatpush.xpose.msra.mxu0 %v2741
          %2836 = vmatpush.xpose.msra.mxu0 %v2738
          %2837 = vmatpush.xpose.msra.mxu0 %v2735
          %2838 = vmatpush.xpose.msra.mxu0 %v2732
          %2839 = vmatpush.xpose.msra.mxu0 %v2729
          %2840 = vmatmul.f32.gmra.mxu0 %v2726
          %v2841 = vpop.f32.mrf.mxu0
          %v2842 = vadd.f32 %v2723, %v2841
          %2843 = vdwg.mxu0
          %2844 = vmatpush.xpose.msra.mxu0 %v2822
          %2845 = vmatpush.xpose.msra.mxu0 %v2819
          %2846 = vmatpush.xpose.msra.mxu0 %v2816
          %2847 = vmatpush.xpose.msra.mxu0 %v2813
          %2848 = vmatpush.xpose.msra.mxu0 %v2810
          %2849 = vmatpush.xpose.msra.mxu0 %v2807
          %2850 = vmatpush.xpose.msra.mxu0 %v2804
          %2851 = vmatpush.xpose.msra.mxu0 %v2801
          %2852 = vmatpush.xpose.msra.mxu0 %v2798
          %2853 = vmatpush.xpose.msra.mxu0 %v2795
          %2854 = vmatpush.xpose.msra.mxu0 %v2792
          %2855 = vmatpush.xpose.msra.mxu0 %v2789
          %2856 = vmatpush.xpose.msra.mxu0 %v2786
          %2857 = vmatpush.xpose.msra.mxu0 %v2783
          %2858 = vmatpush.xpose.msra.mxu0 %v2780
          %2859 = vmatpush.xpose.msra.mxu0 %v2777
          %2860 = vmatmul.f32.gmra.mxu0 %v2726
          %v2861 = vpop.f32.mrf.mxu0
          %v2862 = vadd.f32 %v2723, %v2861
          %2863 = vdwg.mxu0
          %v2864 = vld [vmem:[%s321] sm:$0xff]
          %2866 = vst [vmem:[#allocation1] ss:$2 sm:$0xff] %v2864
          %v2867 = vld.sshfl [vmem:[#allocation1] sm:$0xff pattern:$0x75316420]
          %v2868 = vld.sshfl [vmem:[#allocation1 + $0x8] sm:$0xff pattern:$0x75316420]
          %v2871 = vadd.f32 %v2842, %v2867
          %v2872 = vadd.f32 %v2862, %v2868
          %v2875 = vrot.slane %v2872, 4
          %v2876 = vsel %vm872, %v2871, %v2875
          %2878 = vst [vmem:[%s312] sm:$0xff] %v2876
        $region56: #{tpu_custom_call.1} parent=43 // pred_fallthru
          _
        %s2879 = sand.u32 %s193, 1
        %s2880 = scalar_lea.sflag [#allocation8], %s2879
        %s2881 = sand.u32 %s193, 1
        %s2882 = smul.addr %s2881, 8
        %s2883 = scalar_lea.vmem [#allocation7], %s2882
        // Predicated region
        $region57: #{tpu_custom_call.1} parent=43 // pred_check
          %p2884 = pneg %p203
        $region58: #{tpu_custom_call.1} parent=43 // pred_check_branch
          %2886 = sbr.rel (%p2884) target = $region60
        $region59: #{tpu_custom_call.1} parent=43 // pred_region
          %s2887 = smul.u32 2, %s26
          %2889 = vsyncadd %s2880, 0
          %s2890 = smul.addr %s25, 2
          %s2891 = sadd.s32 %s2887, %s2890
          %s2892 = smul.addr %s2891, 4
          %s2893 = scalar_lea.hbm %s6, %s2892
          %s2895 = sshll.u32 %s2883, 4
          %s2896 = int_to_ptr.vmem [resolvable:$true] %s2895
          %s2897 = sshll.u32 %s2893, 4
          %s2898 = int_to_ptr.hbm [resolvable:$true] %s2897
          %2900 = dma.vmem_to_hbm [thread:$0]  %s2896, 128, %s2898, %s2880
        $region60: #{tpu_custom_call.1} parent=43 // pred_fallthru
          _
      $region44: #{tpu_custom_call.1} parent=5 // pred_fallthru
        _
      %p2901 = scmp.le.s32.totalorder 2, %s15
      // Predicated region
      $region61: #{tpu_custom_call.1} parent=5 // pred_check
        %p2902 = pneg %p2901
      $region62: #{tpu_custom_call.1} parent=5 // pred_check_branch
        %2904 = sbr.rel (%p2902) target = $region64
      $region63: #{tpu_custom_call.1} parent=5 // pred_region
        %s2905 = ssub.s32 %s15, 2
        // Predicated region
        $region65: #{tpu_custom_call.1} parent=63 // pred_check
          %p2906 = pneg %p209
        $region66: #{tpu_custom_call.1} parent=63 // pred_check_branch
          %2908 = sbr.rel (%p2906) target = $region68
        $region67: #{tpu_custom_call.1} parent=63 // pred_region
          %s2909 = sand.u32 %s194, 1
          %s2910 = scalar_lea.sflag [#allocation8], %s2909
          %s2911 = sand.u32 %s194, 1
          %s2912 = smul.addr %s2911, 8
          %s2913 = scalar_lea.vmem [#allocation7], %s2912
          %2915 = dma.done %s2910, 128
        $region68: #{tpu_custom_call.1} parent=63 // pred_fallthru
          _
      $region64: #{tpu_custom_call.1} parent=5 // pred_fallthru
        _
    $region6: #{tpu_custom_call.1} parent=1 // loop_footer
      %s19 = sadd.s32 1, %s15
    $region7: #{tpu_custom_call.1} parent=1 // loop_footer_branch
      %14 = sbr.rel target = $region3
    $region8: #{tpu_custom_call.1} parent=1 // loop_exit
      _
    %2916 = vsyncpa [#allocation8], 1
    %s2917 = scalar_lea.sflag [#allocation8], 1
    %2918 = vsyncpa %s2917, 1

</llo_original>
